<compile_context>
chip_gen: v5e
topology: v5e:2x2
jax: 0.10.0
libtpu: 0.0.40
codegen_flags: <defaults>
</compile_context>

<pallas_src>
from functools import partial

import jax
import jax.numpy as jnp
from jax.experimental import pallas as pl
from jax.experimental.pallas import tpu as pltpu

LN_EPS = 1e-5      # nn.LayerNorm default eps
L2_EPS = 1e-12     # F.normalize default eps
MASK_NEG = 1e30    # additive mask magnitude


def _round_up(x, m):
    return ((x + m - 1) // m) * m


def _layernorm(x, gamma, beta):
    mu = jnp.mean(x, axis=-1, keepdims=True)
    var = jnp.mean(jnp.square(x - mu), axis=-1, keepdims=True)
    return (x - mu) * jax.lax.rsqrt(var + LN_EPS) * gamma + beta


def network_kernel(feat_ref, amask_ref,
                   w1_ref, b1_ref,                       # first_projector
                   attw_ref, attb_ref,                   # attention pooling scorer
                   bng_ref, bnb_ref,                     # self.bn LayerNorm
                   ln1g_ref, ln1b_ref, w2_ref, b2_ref,   # projector: LN, Linear
                   ln2g_ref, ln2b_ref, w3_ref, b3_ref,   # projector: LN, Linear
                   w4_ref, b4_ref,                       # classifier Linear (lane-padded)
                   emb_ref, out_ref, *, seq_len):
    rows, _ = feat_ref.shape            # rows = TB * S, bf16 tokens
    H = w1_ref.shape[1]
    S = seq_len
    TB = rows // S

    # ---- first_projector: Linear(D_in -> H) over every token (bf16 MXU) ------
    x = jnp.dot(feat_ref[...], w1_ref[...], preferred_element_type=jnp.float32)
    x = x + b1_ref[...]                                   # [TB*S, H] f32
    # Layout-trivial f32 retile (S % 8 == 0, H % 128 == 0 for module defaults).
    x3 = x.reshape(TB, S, H)

    # ---- AttentionPooling: VPU scorer + additive-mask softmax + weighted sum -
    attw = attw_ref[...].reshape(1, 1, H)                 # f32 scoring vector
    scores = jnp.sum(x3 * attw, axis=-1) + attb_ref[...] + amask_ref[...]  # [TB,S]
    scores = scores - jnp.max(scores, axis=-1, keepdims=True)
    p = jnp.exp(scores)
    inv_denom = pl.reciprocal(jnp.sum(p, axis=-1, keepdims=True), approx=True)
    w = p * inv_denom                                     # [TB, S]
    pooled = jnp.sum(w[:, :, None] * x3, axis=1)          # [TB, H] f32

    # ---- self.bn LayerNorm ----------------------------------------------------
    y = _layernorm(pooled, bng_ref[...], bnb_ref[...])

    # ---- projector: LN -> Linear -> ReLU -> LN -> Linear ----------------------
    z = _layernorm(y, ln1g_ref[...], ln1b_ref[...])
    z = jnp.dot(z.astype(jnp.bfloat16), w2_ref[...],
                preferred_element_type=jnp.float32) + b2_ref[...]
    z = jnp.maximum(z, 0.0)
    z = _layernorm(z, ln2g_ref[...], ln2b_ref[...])
    z = jnp.dot(z.astype(jnp.bfloat16), w3_ref[...],
                preferred_element_type=jnp.float32) + b3_ref[...]

    # ---- classifier: ReLU -> Linear(H -> num_labels_padded) -------------------
    c = jnp.maximum(z, 0.0)
    logits = jnp.dot(c.astype(jnp.bfloat16), w4_ref[...],
                     preferred_element_type=jnp.float32) + b4_ref[...]

    # ---- F.normalize(z, p=2, dim=1): exact rsqrt -------------------------------
    ss = jnp.sum(z * z, axis=-1, keepdims=True)
    emb = z * jax.lax.rsqrt(jnp.maximum(ss, L2_EPS * L2_EPS))

    emb_ref[...] = emb.astype(emb_ref.dtype)
    out_ref[...] = logits.astype(out_ref.dtype)


def _vmem_capacity_bytes():
    try:
        return int(pltpu.get_tpu_info().vmem_capacity_bytes)
    except Exception:
        return 64 * 1024 * 1024   # conservative: v7x per-TensorCore VMEM


def _pick_batch_tile(B, S, Din, H, L_pad, vmem_cap, weight_bytes, max_block_b):
    # Rough per-batch-row VMEM bytes (double-buffered IO + f32 intermediates).
    per_row = (2 * S * Din * 2          # bf16 feature tile, double-buffered
               + 2 * S * 4              # additive mask, double-buffered
               + 2 * (H + L_pad) * 4    # f32 emb/logits tiles, double-buffered
               + 4 * S * H * 4          # token activations / softmax temporaries
               + 8 * H * 4)             # pooled / LN / projector temporaries
    budget = int(vmem_cap * 0.55) - weight_bytes
    tb = max(8, min(max_block_b, (budget // per_row) // 8 * 8))
    b8 = _round_up(B, 8)
    tb = min(tb, b8)
    # Prefer >= 2 grid steps when the batch allows it, so dimension_semantics
    # ("parallel",) can shard the batch tiles across both TensorCores on v7x.
    if b8 >= 16 and tb >= b8:
        tb = _round_up((b8 + 1) // 2, 8)
    return tb


def prepare_params(params):
    """One-time prep: bf16 matmul weights, lane-dense (padded) classifier."""
    L = params["w4"].shape[1]
    L_pad = _round_up(L, 128)
    w4 = params["w4"]
    b4 = params["b4"]
    if L_pad != L:
        w4 = jnp.pad(w4, ((0, 0), (0, L_pad - L)))
        b4 = jnp.pad(b4, ((0, 0), (0, L_pad - L)))
    prepared = dict(params)
    prepared["w1"] = params["w1"].astype(jnp.bfloat16)
    prepared["w2"] = params["w2"].astype(jnp.bfloat16)
    prepared["w3"] = params["w3"].astype(jnp.bfloat16)
    prepared["w4"] = w4.astype(jnp.bfloat16)
    prepared["b4"] = b4
    prepared["num_labels"] = L
    prepared["_prepared"] = True
    return prepared


def network_forward(features, mask, params, *, max_block_b=1024):
    if not params.get("_prepared", False):
        params = prepare_params(params)

    B, S, Din = features.shape
    H = params["w1"].shape[1]
    L = int(params["num_labels"])
    L_pad = params["w4"].shape[1]

    weight_args = (params["w1"], params["b1"],
                   params["att_w"], params["att_b"],
                   params["bn_g"], params["bn_b"],
                   params["ln1_g"], params["ln1_b"], params["w2"], params["b2"],
                   params["ln2_g"], params["ln2_b"], params["w3"], params["b3"],
                   params["w4"], params["b4"])
    weight_bytes = sum(int(a.size) * a.dtype.itemsize for a in weight_args)

    vmem_cap = _vmem_capacity_bytes()
    TB = _pick_batch_tile(B, S, Din, H, L_pad, vmem_cap, weight_bytes, max_block_b)
    B_pad = _round_up(B, TB)

    # Additive attention mask: 0 where valid, -1e30 where padded.
    amask = (mask.astype(jnp.float32) - 1.0) * MASK_NEG
    if B_pad != B:
        features = jnp.pad(features, ((0, B_pad - B), (0, 0), (0, 0)))
        amask = jnp.pad(amask, ((0, B_pad - B), (0, 0)), constant_values=-MASK_NEG)

    # Pre-cast + pre-flatten: lane-dense 2-D bf16 token matrix (no in-kernel repack).
    feat2d = features.reshape(B_pad * S, Din).astype(jnp.bfloat16)

    args = (feat2d, amask) + weight_args
    grid = (B_pad // TB,)

    flops = 2 * B_pad * (S * Din * H + 2 * H * H + H * L_pad)
    bytes_accessed = (feat2d.size * feat2d.dtype.itemsize
                      + amask.size * amask.dtype.itemsize
                      + weight_bytes
                      + B_pad * (H + L_pad) * 4)
    cost = pl.CostEstimate(flops=int(flops),
                           transcendentals=int(B_pad * (S + 8)),
                           bytes_accessed=int(bytes_accessed))

    def _run(single_buffer_weights):
        def resident(arr):
            kwargs = {"pipeline_mode": pl.Buffered(1)} if single_buffer_weights else {}
            return pl.BlockSpec(arr.shape,
                                lambda i, _nd=arr.ndim: (0,) * _nd,
                                **kwargs)

        in_specs = ([pl.BlockSpec((TB * S, Din), lambda i: (i, 0)),
                     pl.BlockSpec((TB, S), lambda i: (i, 0))]
                    + [resident(a) for a in weight_args])
        out_specs = (pl.BlockSpec((TB, H), lambda i: (i, 0)),
                     pl.BlockSpec((TB, L_pad), lambda i: (i, 0)))

        weight_resident = weight_bytes * (1 if single_buffer_weights else 2)
        needed = (2 * TB * S * Din * 2            # feature tiles
                  + 2 * TB * S * 4                # mask tiles
                  + 2 * TB * (H + L_pad) * 4      # output tiles
                  + TB * (4 * S * H + 8 * H) * 4  # f32 intermediates
                  + weight_resident)
        vmem_limit = int(min(vmem_cap - (2 << 20),
                             max(needed + (4 << 20), 32 << 20)))

        return pl.pallas_call(
            partial(network_kernel, seq_len=S),
            out_shape=(jax.ShapeDtypeStruct((B_pad, H), jnp.float32),
                       jax.ShapeDtypeStruct((B_pad, L_pad), jnp.float32)),
            grid_spec=pltpu.PrefetchScalarGridSpec(
                num_scalar_prefetch=0,
                grid=grid,
                in_specs=in_specs,
                out_specs=out_specs,
            ),
            compiler_params=pltpu.CompilerParams(
                dimension_semantics=("parallel",),   # shard batch tiles across TCs
                vmem_limit_bytes=vmem_limit,
            ),
            cost_estimate=cost,
        )(*args)

    try:
        emb, logits = _run(True)
    except Exception:
        # Fallback: default double-buffered weight specs (costs only VMEM headroom).
        emb, logits = _run(False)

    return emb[:B], logits[:B, :L]


# ---------------------------------------------------------------------------
# Pure-JAX f32 reference (for correctness checking only).
# ---------------------------------------------------------------------------
def network_reference(features, mask, params):
    def ln(v, g, b):
        mu = v.mean(-1, keepdims=True)
        var = ((v - mu) ** 2).mean(-1, keepdims=True)
        return (v - mu) / jnp.sqrt(var + LN_EPS) * g + b

    x = features @ params["w1"] + params["b1"]                       # [B,S,H]
    scores = jnp.einsum("bsh,h->bs", x, params["att_w"][0]) + params["att_b"][0, 0]
    scores = jnp.where(mask > 0.0, scores, -MASK_NEG)
    w = jax.nn.softmax(scores, axis=-1)
    pooled = jnp.einsum("bs,bsh->bh", w, x)                          # [B,H]
    y = ln(pooled, params["bn_g"], params["bn_b"])
    z = ln(y, params["ln1_g"], params["ln1_b"]) @ params["w2"] + params["b2"]
    z = jnp.maximum(z, 0.0)
    z = ln(z, params["ln2_g"], params["ln2_b"]) @ params["w3"] + params["b3"]
    logits = jnp.maximum(z, 0.0) @ params["w4"] + params["b4"]
    norm = jnp.linalg.norm(z, axis=-1, keepdims=True)
    emb = z / jnp.maximum(norm, L2_EPS)
    return emb, logits


def init_params(key, input_dim, hidden_dim, num_labels):
    ks = jax.random.split(key, 8)
    s = 0.02
    return {
        "w1":    jax.random.normal(ks[0], (input_dim, hidden_dim), jnp.float32) * s,
        "b1":    jnp.zeros((1, hidden_dim), jnp.float32),
        # AttentionPooling scorer: Linear(hidden_dim, 1) weight stored transposed
        # as a (1, hidden_dim) row so the kernel can do a lane reduce (no N=1 matmul).
        "att_w": jax.random.normal(ks[1], (1, hidden_dim), jnp.float32) * s,
        "att_b": jnp.zeros((1, 1), jnp.float32),
        "bn_g":  jnp.ones((1, hidden_dim), jnp.float32),
        "bn_b":  jnp.zeros((1, hidden_dim), jnp.float32),
        "ln1_g": jnp.ones((1, hidden_dim), jnp.float32),
        "ln1_b": jnp.zeros((1, hidden_dim), jnp.float32),
        "w2":    jax.random.normal(ks[2], (hidden_dim, hidden_dim), jnp.float32) * s,
        "b2":    jnp.zeros((1, hidden_dim), jnp.float32),
        "ln2_g": jnp.ones((1, hidden_dim), jnp.float32),
        "ln2_b": jnp.zeros((1, hidden_dim), jnp.float32),
        "w3":    jax.random.normal(ks[3], (hidden_dim, hidden_dim), jnp.float32) * s,
        "b3":    jnp.zeros((1, hidden_dim), jnp.float32),
        "w4":    jax.random.normal(ks[4], (hidden_dim, num_labels), jnp.float32) * s,  # xavier-style
        "b4":    jnp.zeros((1, num_labels), jnp.float32),
    }


if __name__ == "__main__":
    # Small shapes consistent with the module (defaults are 768/512/256).
    B, S = 2, 8
    INPUT_DIM, HIDDEN_DIM, NUM_LABELS = 128, 128, 128

    key = jax.random.PRNGKey(0)
    k_feat, k_param = jax.random.split(key)

    features = jax.random.normal(k_feat, (B, S, INPUT_DIM), jnp.float32)
    # mask: first batch has 6 valid tokens, second has all 8 valid.
    mask = jnp.array([[1, 1, 1, 1, 1, 1, 0, 0],
                      [1, 1, 1, 1, 1, 1, 1, 1]], jnp.float32)

    params = init_params(k_param, INPUT_DIM, HIDDEN_DIM, NUM_LABELS)
    pparams = prepare_params(params)   # bf16 weights / padded classifier, cached

    emb, logits = network_forward(features, mask, pparams)
    jax.block_until_ready((emb, logits))

    assert emb.shape == (B, HIDDEN_DIM)
    assert logits.shape == (B, NUM_LABELS)
    assert bool(jnp.all(jnp.isfinite(emb))) and bool(jnp.all(jnp.isfinite(logits)))
    # embedding rows should be unit L2-norm (exact rsqrt in f32)
    assert bool(jnp.allclose(jnp.linalg.norm(emb, axis=1), 1.0, atol=1e-2))

    # compare against pure-JAX f32 reference (bf16 matmuls -> loose tolerance)
    emb_ref, logits_ref = network_reference(features, mask, params)
    assert float(jnp.max(jnp.abs(emb - emb_ref))) < 5e-2
    assert float(jnp.max(jnp.abs(logits - logits_ref))) < 5e-2

    print("KERNEL_OK")
</pallas_src>

<mosaic_0001>
module attributes {stable_mosaic.version = 11 : i64} {
  func.func @network_kernel(%arg0: i32, %arg1: memref<64x128xbf16, #tpu.memory_space<vmem>>, %arg2: memref<8x8xf32, #tpu.memory_space<vmem>>, %arg3: memref<128x128xbf16, #tpu.memory_space<vmem>>, %arg4: memref<1x128xf32, #tpu.memory_space<vmem>>, %arg5: memref<1x128xf32, #tpu.memory_space<vmem>>, %arg6: memref<1x1xf32, #tpu.memory_space<vmem>>, %arg7: memref<1x128xf32, #tpu.memory_space<vmem>>, %arg8: memref<1x128xf32, #tpu.memory_space<vmem>>, %arg9: memref<1x128xf32, #tpu.memory_space<vmem>>, %arg10: memref<1x128xf32, #tpu.memory_space<vmem>>, %arg11: memref<128x128xbf16, #tpu.memory_space<vmem>>, %arg12: memref<1x128xf32, #tpu.memory_space<vmem>>, %arg13: memref<1x128xf32, #tpu.memory_space<vmem>>, %arg14: memref<1x128xf32, #tpu.memory_space<vmem>>, %arg15: memref<128x128xbf16, #tpu.memory_space<vmem>>, %arg16: memref<1x128xf32, #tpu.memory_space<vmem>>, %arg17: memref<128x128xbf16, #tpu.memory_space<vmem>>, %arg18: memref<1x128xf32, #tpu.memory_space<vmem>>, %arg19: memref<8x128xf32, #tpu.memory_space<vmem>>, %arg20: memref<8x128xf32, #tpu.memory_space<vmem>>) attributes {dimension_semantics = [#tpu.dimension_semantics<parallel>], iteration_bounds = array<i64: 1>, scalar_prefetch = 0 : i64, scratch_operands = 0 : i64, tpu.core_type = #tpu.core_type<tc>, window_params = [{transform_indices = @transform_0, window_bounds = array<i64: 64, 128>}, {transform_indices = @transform_1, window_bounds = array<i64: 8, 8>}, {pipeline_mode = #tpu.pipeline_mode<synchronous>, transform_indices = @transform_2, window_bounds = array<i64: 128, 128>}, {pipeline_mode = #tpu.pipeline_mode<synchronous>, transform_indices = @transform_3, window_bounds = array<i64: 1, 128>}, {pipeline_mode = #tpu.pipeline_mode<synchronous>, transform_indices = @transform_4, window_bounds = array<i64: 1, 128>}, {pipeline_mode = #tpu.pipeline_mode<synchronous>, transform_indices = @transform_5, window_bounds = array<i64: 1, 1>}, {pipeline_mode = #tpu.pipeline_mode<synchronous>, transform_indices = @transform_6, window_bounds = array<i64: 1, 128>}, {pipeline_mode = #tpu.pipeline_mode<synchronous>, transform_indices = @transform_7, window_bounds = array<i64: 1, 128>}, {pipeline_mode = #tpu.pipeline_mode<synchronous>, transform_indices = @transform_8, window_bounds = array<i64: 1, 128>}, {pipeline_mode = #tpu.pipeline_mode<synchronous>, transform_indices = @transform_9, window_bounds = array<i64: 1, 128>}, {pipeline_mode = #tpu.pipeline_mode<synchronous>, transform_indices = @transform_10, window_bounds = array<i64: 128, 128>}, {pipeline_mode = #tpu.pipeline_mode<synchronous>, transform_indices = @transform_11, window_bounds = array<i64: 1, 128>}, {pipeline_mode = #tpu.pipeline_mode<synchronous>, transform_indices = @transform_12, window_bounds = array<i64: 1, 128>}, {pipeline_mode = #tpu.pipeline_mode<synchronous>, transform_indices = @transform_13, window_bounds = array<i64: 1, 128>}, {pipeline_mode = #tpu.pipeline_mode<synchronous>, transform_indices = @transform_14, window_bounds = array<i64: 128, 128>}, {pipeline_mode = #tpu.pipeline_mode<synchronous>, transform_indices = @transform_15, window_bounds = array<i64: 1, 128>}, {pipeline_mode = #tpu.pipeline_mode<synchronous>, transform_indices = @transform_16, window_bounds = array<i64: 128, 128>}, {pipeline_mode = #tpu.pipeline_mode<synchronous>, transform_indices = @transform_17, window_bounds = array<i64: 1, 128>}, {transform_indices = @transform_18, window_bounds = array<i64: 8, 128>}, {transform_indices = @transform_19, window_bounds = array<i64: 8, 128>}]} {
    %c0 = arith.constant 0 : index
    %c0_0 = arith.constant 0 : index
    %0 = vector.load %arg1[%c0, %c0_0] : memref<64x128xbf16, #tpu.memory_space<vmem>>, vector<64x128xbf16>
    %c0_1 = arith.constant 0 : index
    %c0_2 = arith.constant 0 : index
    %1 = vector.load %arg3[%c0_1, %c0_2] : memref<128x128xbf16, #tpu.memory_space<vmem>>, vector<128x128xbf16>
    %cst = arith.constant dense<0.000000e+00> : vector<64x128xf32>
    %2 = tpu.matmul %0, %1, %cst {dimension_numbers = #tpu.dot_dimension_numbers<[1], [0], [0], [1], [0, 0, 1, 1], [], []>} : vector<64x128xbf16>, vector<128x128xbf16>, vector<64x128xf32> -> vector<64x128xf32>
    %c0_3 = arith.constant 0 : index
    %c0_4 = arith.constant 0 : index
    %3 = vector.load %arg4[%c0_3, %c0_4] : memref<1x128xf32, #tpu.memory_space<vmem>>, vector<1x128xf32>
    %4 = vector.broadcast %3 : vector<1x128xf32> to vector<64x128xf32>
    %5 = arith.addf %2, %4 : vector<64x128xf32>
    %6 = vector.shape_cast %5 : vector<64x128xf32> to vector<8x8x128xf32>
    %c0_5 = arith.constant 0 : index
    %c0_6 = arith.constant 0 : index
    %7 = vector.load %arg5[%c0_5, %c0_6] : memref<1x128xf32, #tpu.memory_space<vmem>>, vector<1x128xf32>
    %8 = vector.shape_cast %7 : vector<1x128xf32> to vector<1x1x128xf32>
    %9 = vector.broadcast %8 : vector<1x1x128xf32> to vector<8x8x128xf32>
    %10 = arith.mulf %6, %9 : vector<8x8x128xf32>
    %cst_7 = arith.constant dense<0.000000e+00> : vector<8x8xf32>
    %11 = vector.multi_reduction <add>, %10, %cst_7 [2] : vector<8x8x128xf32> to vector<8x8xf32>
    %c0_8 = arith.constant 0 : index
    %c0_9 = arith.constant 0 : index
    %12 = vector.load %arg6[%c0_8, %c0_9] : memref<1x1xf32, #tpu.memory_space<vmem>>, vector<1x1xf32>
    %13 = vector.broadcast %12 : vector<1x1xf32> to vector<8x8xf32>
    %14 = arith.addf %11, %13 : vector<8x8xf32>
    %c0_10 = arith.constant 0 : index
    %c0_11 = arith.constant 0 : index
    %15 = vector.load %arg2[%c0_10, %c0_11] : memref<8x8xf32, #tpu.memory_space<vmem>>, vector<8x8xf32>
    %16 = arith.addf %14, %15 : vector<8x8xf32>
    %cst_12 = arith.constant dense<0xFF800000> : vector<8xf32>
    %17 = vector.multi_reduction <maximumf>, %16, %cst_12 [1] : vector<8x8xf32> to vector<8xf32>
    %18 = vector.shape_cast %17 : vector<8xf32> to vector<8x1xf32>
    %19 = vector.broadcast %18 : vector<8x1xf32> to vector<8x8xf32>
    %20 = arith.subf %16, %19 : vector<8x8xf32>
    %21 = math.exp %20 : vector<8x8xf32>
    %cst_13 = arith.constant dense<0.000000e+00> : vector<8xf32>
    %22 = vector.multi_reduction <add>, %21, %cst_13 [1] : vector<8x8xf32> to vector<8xf32>
    %23 = vector.shape_cast %22 : vector<8xf32> to vector<8x1xf32>
    %24 = tpu.reciprocal %23 {approx = true} : vector<8x1xf32> -> vector<8x1xf32>
    %25 = vector.broadcast %24 : vector<8x1xf32> to vector<8x8xf32>
    %26 = arith.mulf %21, %25 : vector<8x8xf32>
    %27 = vector.shape_cast %26 : vector<8x8xf32> to vector<8x8x1xf32>
    %28 = vector.broadcast %27 : vector<8x8x1xf32> to vector<8x8x128xf32>
    %29 = arith.mulf %28, %6 : vector<8x8x128xf32>
    %cst_14 = arith.constant dense<0.000000e+00> : vector<8x128xf32>
    %30 = vector.multi_reduction <add>, %29, %cst_14 [1] : vector<8x8x128xf32> to vector<8x128xf32>
    %c0_15 = arith.constant 0 : index
    %c0_16 = arith.constant 0 : index
    %31 = vector.load %arg7[%c0_15, %c0_16] : memref<1x128xf32, #tpu.memory_space<vmem>>, vector<1x128xf32>
    %c0_17 = arith.constant 0 : index
    %c0_18 = arith.constant 0 : index
    %32 = vector.load %arg8[%c0_17, %c0_18] : memref<1x128xf32, #tpu.memory_space<vmem>>, vector<1x128xf32>
    %cst_19 = arith.constant dense<0.000000e+00> : vector<8xf32>
    %33 = vector.multi_reduction <add>, %30, %cst_19 [1] : vector<8x128xf32> to vector<8xf32>
    %34 = vector.shape_cast %33 : vector<8xf32> to vector<8x1xf32>
    %cst_20 = arith.constant 1.280000e+02 : f32
    %35 = vector.broadcast %cst_20 : f32 to vector<8x1xf32>
    %36 = arith.divf %34, %35 : vector<8x1xf32>
    %37 = vector.broadcast %36 : vector<8x1xf32> to vector<8x128xf32>
    %38 = arith.subf %30, %37 : vector<8x128xf32>
    %39 = arith.mulf %38, %38 : vector<8x128xf32>
    %cst_21 = arith.constant dense<0.000000e+00> : vector<8xf32>
    %40 = vector.multi_reduction <add>, %39, %cst_21 [1] : vector<8x128xf32> to vector<8xf32>
    %41 = vector.shape_cast %40 : vector<8xf32> to vector<8x1xf32>
    %cst_22 = arith.constant 1.280000e+02 : f32
    %42 = vector.broadcast %cst_22 : f32 to vector<8x1xf32>
    %43 = arith.divf %41, %42 : vector<8x1xf32>
    %44 = vector.broadcast %36 : vector<8x1xf32> to vector<8x128xf32>
    %45 = arith.subf %30, %44 : vector<8x128xf32>
    %cst_23 = arith.constant 9.99999974E-6 : f32
    %46 = vector.broadcast %cst_23 : f32 to vector<8x1xf32>
    %47 = arith.addf %43, %46 : vector<8x1xf32>
    %48 = math.rsqrt %47 : vector<8x1xf32>
    %49 = vector.broadcast %48 : vector<8x1xf32> to vector<8x128xf32>
    %50 = arith.mulf %45, %49 : vector<8x128xf32>
    %51 = vector.broadcast %31 : vector<1x128xf32> to vector<8x128xf32>
    %52 = arith.mulf %50, %51 : vector<8x128xf32>
    %53 = vector.broadcast %32 : vector<1x128xf32> to vector<8x128xf32>
    %54 = arith.addf %52, %53 : vector<8x128xf32>
    %c0_24 = arith.constant 0 : index
    %c0_25 = arith.constant 0 : index
    %55 = vector.load %arg9[%c0_24, %c0_25] : memref<1x128xf32, #tpu.memory_space<vmem>>, vector<1x128xf32>
    %c0_26 = arith.constant 0 : index
    %c0_27 = arith.constant 0 : index
    %56 = vector.load %arg10[%c0_26, %c0_27] : memref<1x128xf32, #tpu.memory_space<vmem>>, vector<1x128xf32>
    %cst_28 = arith.constant dense<0.000000e+00> : vector<8xf32>
    %57 = vector.multi_reduction <add>, %54, %cst_28 [1] : vector<8x128xf32> to vector<8xf32>
    %58 = vector.shape_cast %57 : vector<8xf32> to vector<8x1xf32>
    %cst_29 = arith.constant 1.280000e+02 : f32
    %59 = vector.broadcast %cst_29 : f32 to vector<8x1xf32>
    %60 = arith.divf %58, %59 : vector<8x1xf32>
    %61 = vector.broadcast %60 : vector<8x1xf32> to vector<8x128xf32>
    %62 = arith.subf %54, %61 : vector<8x128xf32>
    %63 = arith.mulf %62, %62 : vector<8x128xf32>
    %cst_30 = arith.constant dense<0.000000e+00> : vector<8xf32>
    %64 = vector.multi_reduction <add>, %63, %cst_30 [1] : vector<8x128xf32> to vector<8xf32>
    %65 = vector.shape_cast %64 : vector<8xf32> to vector<8x1xf32>
    %cst_31 = arith.constant 1.280000e+02 : f32
    %66 = vector.broadcast %cst_31 : f32 to vector<8x1xf32>
    %67 = arith.divf %65, %66 : vector<8x1xf32>
    %68 = vector.broadcast %60 : vector<8x1xf32> to vector<8x128xf32>
    %69 = arith.subf %54, %68 : vector<8x128xf32>
    %cst_32 = arith.constant 9.99999974E-6 : f32
    %70 = vector.broadcast %cst_32 : f32 to vector<8x1xf32>
    %71 = arith.addf %67, %70 : vector<8x1xf32>
    %72 = math.rsqrt %71 : vector<8x1xf32>
    %73 = vector.broadcast %72 : vector<8x1xf32> to vector<8x128xf32>
    %74 = arith.mulf %69, %73 : vector<8x128xf32>
    %75 = vector.broadcast %55 : vector<1x128xf32> to vector<8x128xf32>
    %76 = arith.mulf %74, %75 : vector<8x128xf32>
    %77 = vector.broadcast %56 : vector<1x128xf32> to vector<8x128xf32>
    %78 = arith.addf %76, %77 : vector<8x128xf32>
    %79 = arith.truncf %78 : vector<8x128xf32> to vector<8x128xbf16>
    %c0_33 = arith.constant 0 : index
    %c0_34 = arith.constant 0 : index
    %80 = vector.load %arg11[%c0_33, %c0_34] : memref<128x128xbf16, #tpu.memory_space<vmem>>, vector<128x128xbf16>
    %cst_35 = arith.constant dense<0.000000e+00> : vector<8x128xf32>
    %81 = tpu.matmul %79, %80, %cst_35 {dimension_numbers = #tpu.dot_dimension_numbers<[1], [0], [0], [1], [0, 0, 1, 1], [], []>} : vector<8x128xbf16>, vector<128x128xbf16>, vector<8x128xf32> -> vector<8x128xf32>
    %c0_36 = arith.constant 0 : index
    %c0_37 = arith.constant 0 : index
    %82 = vector.load %arg12[%c0_36, %c0_37] : memref<1x128xf32, #tpu.memory_space<vmem>>, vector<1x128xf32>
    %83 = vector.broadcast %82 : vector<1x128xf32> to vector<8x128xf32>
    %84 = arith.addf %81, %83 : vector<8x128xf32>
    %cst_38 = arith.constant 0.000000e+00 : f32
    %85 = vector.broadcast %cst_38 : f32 to vector<8x128xf32>
    %86 = arith.maximumf %84, %85 : vector<8x128xf32>
    %c0_39 = arith.constant 0 : index
    %c0_40 = arith.constant 0 : index
    %87 = vector.load %arg13[%c0_39, %c0_40] : memref<1x128xf32, #tpu.memory_space<vmem>>, vector<1x128xf32>
    %c0_41 = arith.constant 0 : index
    %c0_42 = arith.constant 0 : index
    %88 = vector.load %arg14[%c0_41, %c0_42] : memref<1x128xf32, #tpu.memory_space<vmem>>, vector<1x128xf32>
    %cst_43 = arith.constant dense<0.000000e+00> : vector<8xf32>
    %89 = vector.multi_reduction <add>, %86, %cst_43 [1] : vector<8x128xf32> to vector<8xf32>
    %90 = vector.shape_cast %89 : vector<8xf32> to vector<8x1xf32>
    %cst_44 = arith.constant 1.280000e+02 : f32
    %91 = vector.broadcast %cst_44 : f32 to vector<8x1xf32>
    %92 = arith.divf %90, %91 : vector<8x1xf32>
    %93 = vector.broadcast %92 : vector<8x1xf32> to vector<8x128xf32>
    %94 = arith.subf %86, %93 : vector<8x128xf32>
    %95 = arith.mulf %94, %94 : vector<8x128xf32>
    %cst_45 = arith.constant dense<0.000000e+00> : vector<8xf32>
    %96 = vector.multi_reduction <add>, %95, %cst_45 [1] : vector<8x128xf32> to vector<8xf32>
    %97 = vector.shape_cast %96 : vector<8xf32> to vector<8x1xf32>
    %cst_46 = arith.constant 1.280000e+02 : f32
    %98 = vector.broadcast %cst_46 : f32 to vector<8x1xf32>
    %99 = arith.divf %97, %98 : vector<8x1xf32>
    %100 = vector.broadcast %92 : vector<8x1xf32> to vector<8x128xf32>
    %101 = arith.subf %86, %100 : vector<8x128xf32>
    %cst_47 = arith.constant 9.99999974E-6 : f32
    %102 = vector.broadcast %cst_47 : f32 to vector<8x1xf32>
    %103 = arith.addf %99, %102 : vector<8x1xf32>
    %104 = math.rsqrt %103 : vector<8x1xf32>
    %105 = vector.broadcast %104 : vector<8x1xf32> to vector<8x128xf32>
    %106 = arith.mulf %101, %105 : vector<8x128xf32>
    %107 = vector.broadcast %87 : vector<1x128xf32> to vector<8x128xf32>
    %108 = arith.mulf %106, %107 : vector<8x128xf32>
    %109 = vector.broadcast %88 : vector<1x128xf32> to vector<8x128xf32>
    %110 = arith.addf %108, %109 : vector<8x128xf32>
    %111 = arith.truncf %110 : vector<8x128xf32> to vector<8x128xbf16>
    %c0_48 = arith.constant 0 : index
    %c0_49 = arith.constant 0 : index
    %112 = vector.load %arg15[%c0_48, %c0_49] : memref<128x128xbf16, #tpu.memory_space<vmem>>, vector<128x128xbf16>
    %cst_50 = arith.constant dense<0.000000e+00> : vector<8x128xf32>
    %113 = tpu.matmul %111, %112, %cst_50 {dimension_numbers = #tpu.dot_dimension_numbers<[1], [0], [0], [1], [0, 0, 1, 1], [], []>} : vector<8x128xbf16>, vector<128x128xbf16>, vector<8x128xf32> -> vector<8x128xf32>
    %c0_51 = arith.constant 0 : index
    %c0_52 = arith.constant 0 : index
    %114 = vector.load %arg16[%c0_51, %c0_52] : memref<1x128xf32, #tpu.memory_space<vmem>>, vector<1x128xf32>
    %115 = vector.broadcast %114 : vector<1x128xf32> to vector<8x128xf32>
    %116 = arith.addf %113, %115 : vector<8x128xf32>
    %cst_53 = arith.constant 0.000000e+00 : f32
    %117 = vector.broadcast %cst_53 : f32 to vector<8x128xf32>
    %118 = arith.maximumf %116, %117 : vector<8x128xf32>
    %119 = arith.truncf %118 : vector<8x128xf32> to vector<8x128xbf16>
    %c0_54 = arith.constant 0 : index
    %c0_55 = arith.constant 0 : index
    %120 = vector.load %arg17[%c0_54, %c0_55] : memref<128x128xbf16, #tpu.memory_space<vmem>>, vector<128x128xbf16>
    %cst_56 = arith.constant dense<0.000000e+00> : vector<8x128xf32>
    %121 = tpu.matmul %119, %120, %cst_56 {dimension_numbers = #tpu.dot_dimension_numbers<[1], [0], [0], [1], [0, 0, 1, 1], [], []>} : vector<8x128xbf16>, vector<128x128xbf16>, vector<8x128xf32> -> vector<8x128xf32>
    %c0_57 = arith.constant 0 : index
    %c0_58 = arith.constant 0 : index
    %122 = vector.load %arg18[%c0_57, %c0_58] : memref<1x128xf32, #tpu.memory_space<vmem>>, vector<1x128xf32>
    %123 = vector.broadcast %122 : vector<1x128xf32> to vector<8x128xf32>
    %124 = arith.addf %121, %123 : vector<8x128xf32>
    %125 = arith.mulf %116, %116 : vector<8x128xf32>
    %cst_59 = arith.constant dense<0.000000e+00> : vector<8xf32>
    %126 = vector.multi_reduction <add>, %125, %cst_59 [1] : vector<8x128xf32> to vector<8xf32>
    %127 = vector.shape_cast %126 : vector<8xf32> to vector<8x1xf32>
    %cst_60 = arith.constant 1.000000e-24 : f32
    %128 = vector.broadcast %cst_60 : f32 to vector<8x1xf32>
    %129 = arith.maximumf %127, %128 : vector<8x1xf32>
    %130 = math.rsqrt %129 : vector<8x1xf32>
    %131 = vector.broadcast %130 : vector<8x1xf32> to vector<8x128xf32>
    %132 = arith.mulf %116, %131 : vector<8x128xf32>
    %c0_61 = arith.constant 0 : index
    %c0_62 = arith.constant 0 : index
    %133 = vector.load %arg19[%c0_61, %c0_62] : memref<8x128xf32, #tpu.memory_space<vmem>>, vector<8x128xf32>
    tpu.vector_store %arg19[%c0_61, %c0_62], %132 {strides = array<i32>} : memref<8x128xf32, #tpu.memory_space<vmem>>, vector<8x128xf32>,
    %c0_63 = arith.constant 0 : index
    %c0_64 = arith.constant 0 : index
    %134 = vector.load %arg20[%c0_63, %c0_64] : memref<8x128xf32, #tpu.memory_space<vmem>>, vector<8x128xf32>
    tpu.vector_store %arg20[%c0_63, %c0_64], %124 {strides = array<i32>} : memref<8x128xf32, #tpu.memory_space<vmem>>, vector<8x128xf32>,
    return
  }
  func.func @transform_0(%arg0: i32) -> (i32, i32) {
    %c0_i32 = arith.constant 0 : i32
    %c0_i32_0 = arith.constant 0 : i32
    return %arg0, %c0_i32 : i32, i32
  }
  func.func @transform_1(%arg0: i32) -> (i32, i32) {
    %c0_i32 = arith.constant 0 : i32
    %c0_i32_0 = arith.constant 0 : i32
    return %arg0, %c0_i32 : i32, i32
  }
  func.func @transform_2(%arg0: i32) -> (i32, i32) {
    %c0_i32 = arith.constant 0 : i32
    %c0_i32_0 = arith.constant 0 : i32
    %c0_i32_1 = arith.constant 0 : i32
    return %c0_i32, %c0_i32_0 : i32, i32
  }
  func.func @transform_3(%arg0: i32) -> (i32, i32) {
    %c0_i32 = arith.constant 0 : i32
    %c0_i32_0 = arith.constant 0 : i32
    %c0_i32_1 = arith.constant 0 : i32
    return %c0_i32, %c0_i32_0 : i32, i32
  }
  func.func @transform_4(%arg0: i32) -> (i32, i32) {
    %c0_i32 = arith.constant 0 : i32
    %c0_i32_0 = arith.constant 0 : i32
    %c0_i32_1 = arith.constant 0 : i32
    return %c0_i32, %c0_i32_0 : i32, i32
  }
  func.func @transform_5(%arg0: i32) -> (i32, i32) {
    %c0_i32 = arith.constant 0 : i32
    %c0_i32_0 = arith.constant 0 : i32
    %c0_i32_1 = arith.constant 0 : i32
    return %c0_i32, %c0_i32_0 : i32, i32
  }
  func.func @transform_6(%arg0: i32) -> (i32, i32) {
    %c0_i32 = arith.constant 0 : i32
    %c0_i32_0 = arith.constant 0 : i32
    %c0_i32_1 = arith.constant 0 : i32
    return %c0_i32, %c0_i32_0 : i32, i32
  }
  func.func @transform_7(%arg0: i32) -> (i32, i32) {
    %c0_i32 = arith.constant 0 : i32
    %c0_i32_0 = arith.constant 0 : i32
    %c0_i32_1 = arith.constant 0 : i32
    return %c0_i32, %c0_i32_0 : i32, i32
  }
  func.func @transform_8(%arg0: i32) -> (i32, i32) {
    %c0_i32 = arith.constant 0 : i32
    %c0_i32_0 = arith.constant 0 : i32
    %c0_i32_1 = arith.constant 0 : i32
    return %c0_i32, %c0_i32_0 : i32, i32
  }
  func.func @transform_9(%arg0: i32) -> (i32, i32) {
    %c0_i32 = arith.constant 0 : i32
    %c0_i32_0 = arith.constant 0 : i32
    %c0_i32_1 = arith.constant 0 : i32
    return %c0_i32, %c0_i32_0 : i32, i32
  }
  func.func @transform_10(%arg0: i32) -> (i32, i32) {
    %c0_i32 = arith.constant 0 : i32
    %c0_i32_0 = arith.constant 0 : i32
    %c0_i32_1 = arith.constant 0 : i32
    return %c0_i32, %c0_i32_0 : i32, i32
  }
  func.func @transform_11(%arg0: i32) -> (i32, i32) {
    %c0_i32 = arith.constant 0 : i32
    %c0_i32_0 = arith.constant 0 : i32
    %c0_i32_1 = arith.constant 0 : i32
    return %c0_i32, %c0_i32_0 : i32, i32
  }
  func.func @transform_12(%arg0: i32) -> (i32, i32) {
    %c0_i32 = arith.constant 0 : i32
    %c0_i32_0 = arith.constant 0 : i32
    %c0_i32_1 = arith.constant 0 : i32
    return %c0_i32, %c0_i32_0 : i32, i32
  }
  func.func @transform_13(%arg0: i32) -> (i32, i32) {
    %c0_i32 = arith.constant 0 : i32
    %c0_i32_0 = arith.constant 0 : i32
    %c0_i32_1 = arith.constant 0 : i32
    return %c0_i32, %c0_i32_0 : i32, i32
  }
  func.func @transform_14(%arg0: i32) -> (i32, i32) {
    %c0_i32 = arith.constant 0 : i32
    %c0_i32_0 = arith.constant 0 : i32
    %c0_i32_1 = arith.constant 0 : i32
    return %c0_i32, %c0_i32_0 : i32, i32
  }
  func.func @transform_15(%arg0: i32) -> (i32, i32) {
    %c0_i32 = arith.constant 0 : i32
    %c0_i32_0 = arith.constant 0 : i32
    %c0_i32_1 = arith.constant 0 : i32
    return %c0_i32, %c0_i32_0 : i32, i32
  }
  func.func @transform_16(%arg0: i32) -> (i32, i32) {
    %c0_i32 = arith.constant 0 : i32
    %c0_i32_0 = arith.constant 0 : i32
    %c0_i32_1 = arith.constant 0 : i32
    return %c0_i32, %c0_i32_0 : i32, i32
  }
  func.func @transform_17(%arg0: i32) -> (i32, i32) {
    %c0_i32 = arith.constant 0 : i32
    %c0_i32_0 = arith.constant 0 : i32
    %c0_i32_1 = arith.constant 0 : i32
    return %c0_i32, %c0_i32_0 : i32, i32
  }
  func.func @transform_18(%arg0: i32) -> (i32, i32) {
    %c0_i32 = arith.constant 0 : i32
    %c0_i32_0 = arith.constant 0 : i32
    return %arg0, %c0_i32 : i32, i32
  }
  func.func @transform_19(%arg0: i32) -> (i32, i32) {
    %c0_i32 = arith.constant 0 : i32
    %c0_i32_0 = arith.constant 0 : i32
    return %arg0, %c0_i32 : i32, i32
  }
}

module attributes {stable_mosaic.version = 11 : i64} {
  func.func @network_kernel(%arg0: i32, %arg1: memref<64x128xbf16, #tpu.memory_space<vmem>>, %arg2: memref<8x8xf32, #tpu.memory_space<vmem>>, %arg3: memref<128x128xbf16, #tpu.memory_space<vmem>>, %arg4: memref<1x128xf32, #tpu.memory_space<vmem>>, %arg5: memref<1x128xf32, #tpu.memory_space<vmem>>, %arg6: memref<1x1xf32, #tpu.memory_space<vmem>>, %arg7: memref<1x128xf32, #tpu.memory_space<vmem>>, %arg8: memref<1x128xf32, #tpu.memory_space<vmem>>, %arg9: memref<1x128xf32, #tpu.memory_space<vmem>>, %arg10: memref<1x128xf32, #tpu.memory_space<vmem>>, %arg11: memref<128x128xbf16, #tpu.memory_space<vmem>>, %arg12: memref<1x128xf32, #tpu.memory_space<vmem>>, %arg13: memref<1x128xf32, #tpu.memory_space<vmem>>, %arg14: memref<1x128xf32, #tpu.memory_space<vmem>>, %arg15: memref<128x128xbf16, #tpu.memory_space<vmem>>, %arg16: memref<1x128xf32, #tpu.memory_space<vmem>>, %arg17: memref<128x128xbf16, #tpu.memory_space<vmem>>, %arg18: memref<1x128xf32, #tpu.memory_space<vmem>>, %arg19: memref<8x128xf32, #tpu.memory_space<vmem>>, %arg20: memref<8x128xf32, #tpu.memory_space<vmem>>) attributes {dimension_semantics = [#tpu.dimension_semantics<parallel>], iteration_bounds = array<i64: 1>, scalar_prefetch = 0 : i64, scratch_operands = 0 : i64, tpu.core_type = #tpu.core_type<tc>, window_params = [{transform_indices = @transform_0, window_bounds = array<i64: 64, 128>}, {transform_indices = @transform_1, window_bounds = array<i64: 8, 8>}, {pipeline_mode = #tpu.pipeline_mode<synchronous>, transform_indices = @transform_2, window_bounds = array<i64: 128, 128>}, {pipeline_mode = #tpu.pipeline_mode<synchronous>, transform_indices = @transform_3, window_bounds = array<i64: 1, 128>}, {pipeline_mode = #tpu.pipeline_mode<synchronous>, transform_indices = @transform_4, window_bounds = array<i64: 1, 128>}, {pipeline_mode = #tpu.pipeline_mode<synchronous>, transform_indices = @transform_5, window_bounds = array<i64: 1, 1>}, {pipeline_mode = #tpu.pipeline_mode<synchronous>, transform_indices = @transform_6, window_bounds = array<i64: 1, 128>}, {pipeline_mode = #tpu.pipeline_mode<synchronous>, transform_indices = @transform_7, window_bounds = array<i64: 1, 128>}, {pipeline_mode = #tpu.pipeline_mode<synchronous>, transform_indices = @transform_8, window_bounds = array<i64: 1, 128>}, {pipeline_mode = #tpu.pipeline_mode<synchronous>, transform_indices = @transform_9, window_bounds = array<i64: 1, 128>}, {pipeline_mode = #tpu.pipeline_mode<synchronous>, transform_indices = @transform_10, window_bounds = array<i64: 128, 128>}, {pipeline_mode = #tpu.pipeline_mode<synchronous>, transform_indices = @transform_11, window_bounds = array<i64: 1, 128>}, {pipeline_mode = #tpu.pipeline_mode<synchronous>, transform_indices = @transform_12, window_bounds = array<i64: 1, 128>}, {pipeline_mode = #tpu.pipeline_mode<synchronous>, transform_indices = @transform_13, window_bounds = array<i64: 1, 128>}, {pipeline_mode = #tpu.pipeline_mode<synchronous>, transform_indices = @transform_14, window_bounds = array<i64: 128, 128>}, {pipeline_mode = #tpu.pipeline_mode<synchronous>, transform_indices = @transform_15, window_bounds = array<i64: 1, 128>}, {pipeline_mode = #tpu.pipeline_mode<synchronous>, transform_indices = @transform_16, window_bounds = array<i64: 128, 128>}, {pipeline_mode = #tpu.pipeline_mode<synchronous>, transform_indices = @transform_17, window_bounds = array<i64: 1, 128>}, {transform_indices = @transform_18, window_bounds = array<i64: 8, 128>}, {transform_indices = @transform_19, window_bounds = array<i64: 8, 128>}]} {
    %c0 = arith.constant 0 : index
    %c0_0 = arith.constant 0 : index
    %0 = vector.load %arg1[%c0, %c0_0] : memref<64x128xbf16, #tpu.memory_space<vmem>>, vector<64x128xbf16>
    %c0_1 = arith.constant 0 : index
    %c0_2 = arith.constant 0 : index
    %1 = vector.load %arg3[%c0_1, %c0_2] : memref<128x128xbf16, #tpu.memory_space<vmem>>, vector<128x128xbf16>
    %cst = arith.constant dense<0.000000e+00> : vector<64x128xf32>
    %2 = tpu.matmul %0, %1, %cst {dimension_numbers = #tpu.dot_dimension_numbers<[1], [0], [0], [1], [0, 0, 1, 1], [], []>} : vector<64x128xbf16>, vector<128x128xbf16>, vector<64x128xf32> -> vector<64x128xf32>
    %c0_3 = arith.constant 0 : index
    %c0_4 = arith.constant 0 : index
    %3 = vector.load %arg4[%c0_3, %c0_4] : memref<1x128xf32, #tpu.memory_space<vmem>>, vector<1x128xf32>
    %4 = vector.broadcast %3 : vector<1x128xf32> to vector<64x128xf32>
    %5 = arith.addf %2, %4 : vector<64x128xf32>
    %6 = vector.shape_cast %5 : vector<64x128xf32> to vector<8x8x128xf32>
    %c0_5 = arith.constant 0 : index
    %c0_6 = arith.constant 0 : index
    %7 = vector.load %arg5[%c0_5, %c0_6] : memref<1x128xf32, #tpu.memory_space<vmem>>, vector<1x128xf32>
    %8 = vector.shape_cast %7 : vector<1x128xf32> to vector<1x1x128xf32>
    %9 = vector.broadcast %8 : vector<1x1x128xf32> to vector<8x8x128xf32>
    %10 = arith.mulf %6, %9 : vector<8x8x128xf32>
    %cst_7 = arith.constant dense<0.000000e+00> : vector<8x8xf32>
    %11 = vector.multi_reduction <add>, %10, %cst_7 [2] : vector<8x8x128xf32> to vector<8x8xf32>
    %c0_8 = arith.constant 0 : index
    %c0_9 = arith.constant 0 : index
    %12 = vector.load %arg6[%c0_8, %c0_9] : memref<1x1xf32, #tpu.memory_space<vmem>>, vector<1x1xf32>
    %13 = vector.broadcast %12 : vector<1x1xf32> to vector<8x8xf32>
    %14 = arith.addf %11, %13 : vector<8x8xf32>
    %c0_10 = arith.constant 0 : index
    %c0_11 = arith.constant 0 : index
    %15 = vector.load %arg2[%c0_10, %c0_11] : memref<8x8xf32, #tpu.memory_space<vmem>>, vector<8x8xf32>
    %16 = arith.addf %14, %15 : vector<8x8xf32>
    %cst_12 = arith.constant dense<0xFF800000> : vector<8xf32>
    %17 = vector.multi_reduction <maximumf>, %16, %cst_12 [1] : vector<8x8xf32> to vector<8xf32>
    %18 = vector.shape_cast %17 : vector<8xf32> to vector<8x1xf32>
    %19 = vector.broadcast %18 : vector<8x1xf32> to vector<8x8xf32>
    %20 = arith.subf %16, %19 : vector<8x8xf32>
    %21 = math.exp %20 : vector<8x8xf32>
    %cst_13 = arith.constant dense<0.000000e+00> : vector<8xf32>
    %22 = vector.multi_reduction <add>, %21, %cst_13 [1] : vector<8x8xf32> to vector<8xf32>
    %23 = vector.shape_cast %22 : vector<8xf32> to vector<8x1xf32>
    %24 = tpu.reciprocal %23 {approx = true} : vector<8x1xf32> -> vector<8x1xf32>
    %25 = vector.broadcast %24 : vector<8x1xf32> to vector<8x8xf32>
    %26 = arith.mulf %21, %25 : vector<8x8xf32>
    %27 = vector.shape_cast %26 : vector<8x8xf32> to vector<8x8x1xf32>
    %28 = vector.broadcast %27 : vector<8x8x1xf32> to vector<8x8x128xf32>
    %29 = arith.mulf %28, %6 : vector<8x8x128xf32>
    %cst_14 = arith.constant dense<0.000000e+00> : vector<8x128xf32>
    %30 = vector.multi_reduction <add>, %29, %cst_14 [1] : vector<8x8x128xf32> to vector<8x128xf32>
    %c0_15 = arith.constant 0 : index
    %c0_16 = arith.constant 0 : index
    %31 = vector.load %arg7[%c0_15, %c0_16] : memref<1x128xf32, #tpu.memory_space<vmem>>, vector<1x128xf32>
    %c0_17 = arith.constant 0 : index
    %c0_18 = arith.constant 0 : index
    %32 = vector.load %arg8[%c0_17, %c0_18] : memref<1x128xf32, #tpu.memory_space<vmem>>, vector<1x128xf32>
    %cst_19 = arith.constant dense<0.000000e+00> : vector<8xf32>
    %33 = vector.multi_reduction <add>, %30, %cst_19 [1] : vector<8x128xf32> to vector<8xf32>
    %34 = vector.shape_cast %33 : vector<8xf32> to vector<8x1xf32>
    %cst_20 = arith.constant 1.280000e+02 : f32
    %35 = vector.broadcast %cst_20 : f32 to vector<8x1xf32>
    %36 = arith.divf %34, %35 : vector<8x1xf32>
    %37 = vector.broadcast %36 : vector<8x1xf32> to vector<8x128xf32>
    %38 = arith.subf %30, %37 : vector<8x128xf32>
    %39 = arith.mulf %38, %38 : vector<8x128xf32>
    %cst_21 = arith.constant dense<0.000000e+00> : vector<8xf32>
    %40 = vector.multi_reduction <add>, %39, %cst_21 [1] : vector<8x128xf32> to vector<8xf32>
    %41 = vector.shape_cast %40 : vector<8xf32> to vector<8x1xf32>
    %cst_22 = arith.constant 1.280000e+02 : f32
    %42 = vector.broadcast %cst_22 : f32 to vector<8x1xf32>
    %43 = arith.divf %41, %42 : vector<8x1xf32>
    %44 = vector.broadcast %36 : vector<8x1xf32> to vector<8x128xf32>
    %45 = arith.subf %30, %44 : vector<8x128xf32>
    %cst_23 = arith.constant 9.99999974E-6 : f32
    %46 = vector.broadcast %cst_23 : f32 to vector<8x1xf32>
    %47 = arith.addf %43, %46 : vector<8x1xf32>
    %48 = math.rsqrt %47 : vector<8x1xf32>
    %49 = vector.broadcast %48 : vector<8x1xf32> to vector<8x128xf32>
    %50 = arith.mulf %45, %49 : vector<8x128xf32>
    %51 = vector.broadcast %31 : vector<1x128xf32> to vector<8x128xf32>
    %52 = arith.mulf %50, %51 : vector<8x128xf32>
    %53 = vector.broadcast %32 : vector<1x128xf32> to vector<8x128xf32>
    %54 = arith.addf %52, %53 : vector<8x128xf32>
    %c0_24 = arith.constant 0 : index
    %c0_25 = arith.constant 0 : index
    %55 = vector.load %arg9[%c0_24, %c0_25] : memref<1x128xf32, #tpu.memory_space<vmem>>, vector<1x128xf32>
    %c0_26 = arith.constant 0 : index
    %c0_27 = arith.constant 0 : index
    %56 = vector.load %arg10[%c0_26, %c0_27] : memref<1x128xf32, #tpu.memory_space<vmem>>, vector<1x128xf32>
    %cst_28 = arith.constant dense<0.000000e+00> : vector<8xf32>
    %57 = vector.multi_reduction <add>, %54, %cst_28 [1] : vector<8x128xf32> to vector<8xf32>
    %58 = vector.shape_cast %57 : vector<8xf32> to vector<8x1xf32>
    %cst_29 = arith.constant 1.280000e+02 : f32
    %59 = vector.broadcast %cst_29 : f32 to vector<8x1xf32>
    %60 = arith.divf %58, %59 : vector<8x1xf32>
    %61 = vector.broadcast %60 : vector<8x1xf32> to vector<8x128xf32>
    %62 = arith.subf %54, %61 : vector<8x128xf32>
    %63 = arith.mulf %62, %62 : vector<8x128xf32>
    %cst_30 = arith.constant dense<0.000000e+00> : vector<8xf32>
    %64 = vector.multi_reduction <add>, %63, %cst_30 [1] : vector<8x128xf32> to vector<8xf32>
    %65 = vector.shape_cast %64 : vector<8xf32> to vector<8x1xf32>
    %cst_31 = arith.constant 1.280000e+02 : f32
    %66 = vector.broadcast %cst_31 : f32 to vector<8x1xf32>
    %67 = arith.divf %65, %66 : vector<8x1xf32>
    %68 = vector.broadcast %60 : vector<8x1xf32> to vector<8x128xf32>
    %69 = arith.subf %54, %68 : vector<8x128xf32>
    %cst_32 = arith.constant 9.99999974E-6 : f32
    %70 = vector.broadcast %cst_32 : f32 to vector<8x1xf32>
    %71 = arith.addf %67, %70 : vector<8x1xf32>
    %72 = math.rsqrt %71 : vector<8x1xf32>
    %73 = vector.broadcast %72 : vector<8x1xf32> to vector<8x128xf32>
    %74 = arith.mulf %69, %73 : vector<8x128xf32>
    %75 = vector.broadcast %55 : vector<1x128xf32> to vector<8x128xf32>
    %76 = arith.mulf %74, %75 : vector<8x128xf32>
    %77 = vector.broadcast %56 : vector<1x128xf32> to vector<8x128xf32>
    %78 = arith.addf %76, %77 : vector<8x128xf32>
    %79 = arith.truncf %78 : vector<8x128xf32> to vector<8x128xbf16>
    %c0_33 = arith.constant 0 : index
    %c0_34 = arith.constant 0 : index
    %80 = vector.load %arg11[%c0_33, %c0_34] : memref<128x128xbf16, #tpu.memory_space<vmem>>, vector<128x128xbf16>
    %cst_35 = arith.constant dense<0.000000e+00> : vector<8x128xf32>
    %81 = tpu.matmul %79, %80, %cst_35 {dimension_numbers = #tpu.dot_dimension_numbers<[1], [0], [0], [1], [0, 0, 1, 1], [], []>} : vector<8x128xbf16>, vector<128x128xbf16>, vector<8x128xf32> -> vector<8x128xf32>
    %c0_36 = arith.constant 0 : index
    %c0_37 = arith.constant 0 : index
    %82 = vector.load %arg12[%c0_36, %c0_37] : memref<1x128xf32, #tpu.memory_space<vmem>>, vector<1x128xf32>
    %83 = vector.broadcast %82 : vector<1x128xf32> to vector<8x128xf32>
    %84 = arith.addf %81, %83 : vector<8x128xf32>
    %cst_38 = arith.constant 0.000000e+00 : f32
    %85 = vector.broadcast %cst_38 : f32 to vector<8x128xf32>
    %86 = arith.maximumf %84, %85 : vector<8x128xf32>
    %c0_39 = arith.constant 0 : index
    %c0_40 = arith.constant 0 : index
    %87 = vector.load %arg13[%c0_39, %c0_40] : memref<1x128xf32, #tpu.memory_space<vmem>>, vector<1x128xf32>
    %c0_41 = arith.constant 0 : index
    %c0_42 = arith.constant 0 : index
    %88 = vector.load %arg14[%c0_41, %c0_42] : memref<1x128xf32, #tpu.memory_space<vmem>>, vector<1x128xf32>
    %cst_43 = arith.constant dense<0.000000e+00> : vector<8xf32>
    %89 = vector.multi_reduction <add>, %86, %cst_43 [1] : vector<8x128xf32> to vector<8xf32>
    %90 = vector.shape_cast %89 : vector<8xf32> to vector<8x1xf32>
    %cst_44 = arith.constant 1.280000e+02 : f32
    %91 = vector.broadcast %cst_44 : f32 to vector<8x1xf32>
    %92 = arith.divf %90, %91 : vector<8x1xf32>
    %93 = vector.broadcast %92 : vector<8x1xf32> to vector<8x128xf32>
    %94 = arith.subf %86, %93 : vector<8x128xf32>
    %95 = arith.mulf %94, %94 : vector<8x128xf32>
    %cst_45 = arith.constant dense<0.000000e+00> : vector<8xf32>
    %96 = vector.multi_reduction <add>, %95, %cst_45 [1] : vector<8x128xf32> to vector<8xf32>
    %97 = vector.shape_cast %96 : vector<8xf32> to vector<8x1xf32>
    %cst_46 = arith.constant 1.280000e+02 : f32
    %98 = vector.broadcast %cst_46 : f32 to vector<8x1xf32>
    %99 = arith.divf %97, %98 : vector<8x1xf32>
    %100 = vector.broadcast %92 : vector<8x1xf32> to vector<8x128xf32>
    %101 = arith.subf %86, %100 : vector<8x128xf32>
    %cst_47 = arith.constant 9.99999974E-6 : f32
    %102 = vector.broadcast %cst_47 : f32 to vector<8x1xf32>
    %103 = arith.addf %99, %102 : vector<8x1xf32>
    %104 = math.rsqrt %103 : vector<8x1xf32>
    %105 = vector.broadcast %104 : vector<8x1xf32> to vector<8x128xf32>
    %106 = arith.mulf %101, %105 : vector<8x128xf32>
    %107 = vector.broadcast %87 : vector<1x128xf32> to vector<8x128xf32>
    %108 = arith.mulf %106, %107 : vector<8x128xf32>
    %109 = vector.broadcast %88 : vector<1x128xf32> to vector<8x128xf32>
    %110 = arith.addf %108, %109 : vector<8x128xf32>
    %111 = arith.truncf %110 : vector<8x128xf32> to vector<8x128xbf16>
    %c0_48 = arith.constant 0 : index
    %c0_49 = arith.constant 0 : index
    %112 = vector.load %arg15[%c0_48, %c0_49] : memref<128x128xbf16, #tpu.memory_space<vmem>>, vector<128x128xbf16>
    %cst_50 = arith.constant dense<0.000000e+00> : vector<8x128xf32>
    %113 = tpu.matmul %111, %112, %cst_50 {dimension_numbers = #tpu.dot_dimension_numbers<[1], [0], [0], [1], [0, 0, 1, 1], [], []>} : vector<8x128xbf16>, vector<128x128xbf16>, vector<8x128xf32> -> vector<8x128xf32>
    %c0_51 = arith.constant 0 : index
    %c0_52 = arith.constant 0 : index
    %114 = vector.load %arg16[%c0_51, %c0_52] : memref<1x128xf32, #tpu.memory_space<vmem>>, vector<1x128xf32>
    %115 = vector.broadcast %114 : vector<1x128xf32> to vector<8x128xf32>
    %116 = arith.addf %113, %115 : vector<8x128xf32>
    %cst_53 = arith.constant 0.000000e+00 : f32
    %117 = vector.broadcast %cst_53 : f32 to vector<8x128xf32>
    %118 = arith.maximumf %116, %117 : vector<8x128xf32>
    %119 = arith.truncf %118 : vector<8x128xf32> to vector<8x128xbf16>
    %c0_54 = arith.constant 0 : index
    %c0_55 = arith.constant 0 : index
    %120 = vector.load %arg17[%c0_54, %c0_55] : memref<128x128xbf16, #tpu.memory_space<vmem>>, vector<128x128xbf16>
    %cst_56 = arith.constant dense<0.000000e+00> : vector<8x128xf32>
    %121 = tpu.matmul %119, %120, %cst_56 {dimension_numbers = #tpu.dot_dimension_numbers<[1], [0], [0], [1], [0, 0, 1, 1], [], []>} : vector<8x128xbf16>, vector<128x128xbf16>, vector<8x128xf32> -> vector<8x128xf32>
    %c0_57 = arith.constant 0 : index
    %c0_58 = arith.constant 0 : index
    %122 = vector.load %arg18[%c0_57, %c0_58] : memref<1x128xf32, #tpu.memory_space<vmem>>, vector<1x128xf32>
    %123 = vector.broadcast %122 : vector<1x128xf32> to vector<8x128xf32>
    %124 = arith.addf %121, %123 : vector<8x128xf32>
    %125 = arith.mulf %116, %116 : vector<8x128xf32>
    %cst_59 = arith.constant dense<0.000000e+00> : vector<8xf32>
    %126 = vector.multi_reduction <add>, %125, %cst_59 [1] : vector<8x128xf32> to vector<8xf32>
    %127 = vector.shape_cast %126 : vector<8xf32> to vector<8x1xf32>
    %cst_60 = arith.constant 1.000000e-24 : f32
    %128 = vector.broadcast %cst_60 : f32 to vector<8x1xf32>
    %129 = arith.maximumf %127, %128 : vector<8x1xf32>
    %130 = math.rsqrt %129 : vector<8x1xf32>
    %131 = vector.broadcast %130 : vector<8x1xf32> to vector<8x128xf32>
    %132 = arith.mulf %116, %131 : vector<8x128xf32>
    %c0_61 = arith.constant 0 : index
    %c0_62 = arith.constant 0 : index
    %133 = vector.load %arg19[%c0_61, %c0_62] : memref<8x128xf32, #tpu.memory_space<vmem>>, vector<8x128xf32>
    tpu.vector_store %arg19[%c0_61, %c0_62], %132 {strides = array<i32>} : memref<8x128xf32, #tpu.memory_space<vmem>>, vector<8x128xf32>,
    %c0_63 = arith.constant 0 : index
    %c0_64 = arith.constant 0 : index
    %134 = vector.load %arg20[%c0_63, %c0_64] : memref<8x128xf32, #tpu.memory_space<vmem>>, vector<8x128xf32>
    tpu.vector_store %arg20[%c0_63, %c0_64], %124 {strides = array<i32>} : memref<8x128xf32, #tpu.memory_space<vmem>>, vector<8x128xf32>,
    return
  }
  func.func @transform_0(%arg0: i32) -> (i32, i32) {
    %c0_i32 = arith.constant 0 : i32
    %c0_i32_0 = arith.constant 0 : i32
    return %arg0, %c0_i32 : i32, i32
  }
  func.func @transform_1(%arg0: i32) -> (i32, i32) {
    %c0_i32 = arith.constant 0 : i32
    %c0_i32_0 = arith.constant 0 : i32
    return %arg0, %c0_i32 : i32, i32
  }
  func.func @transform_2(%arg0: i32) -> (i32, i32) {
    %c0_i32 = arith.constant 0 : i32
    %c0_i32_0 = arith.constant 0 : i32
    %c0_i32_1 = arith.constant 0 : i32
    return %c0_i32, %c0_i32_0 : i32, i32
  }
  func.func @transform_3(%arg0: i32) -> (i32, i32) {
    %c0_i32 = arith.constant 0 : i32
    %c0_i32_0 = arith.constant 0 : i32
    %c0_i32_1 = arith.constant 0 : i32
    return %c0_i32, %c0_i32_0 : i32, i32
  }
  func.func @transform_4(%arg0: i32) -> (i32, i32) {
    %c0_i32 = arith.constant 0 : i32
    %c0_i32_0 = arith.constant 0 : i32
    %c0_i32_1 = arith.constant 0 : i32
    return %c0_i32, %c0_i32_0 : i32, i32
  }
  func.func @transform_5(%arg0: i32) -> (i32, i32) {
    %c0_i32 = arith.constant 0 : i32
    %c0_i32_0 = arith.constant 0 : i32
    %c0_i32_1 = arith.constant 0 : i32
    return %c0_i32, %c0_i32_0 : i32, i32
  }
  func.func @transform_6(%arg0: i32) -> (i32, i32) {
    %c0_i32 = arith.constant 0 : i32
    %c0_i32_0 = arith.constant 0 : i32
    %c0_i32_1 = arith.constant 0 : i32
    return %c0_i32, %c0_i32_0 : i32, i32
  }
  func.func @transform_7(%arg0: i32) -> (i32, i32) {
    %c0_i32 = arith.constant 0 : i32
    %c0_i32_0 = arith.constant 0 : i32
    %c0_i32_1 = arith.constant 0 : i32
    return %c0_i32, %c0_i32_0 : i32, i32
  }
  func.func @transform_8(%arg0: i32) -> (i32, i32) {
    %c0_i32 = arith.constant 0 : i32
    %c0_i32_0 = arith.constant 0 : i32
    %c0_i32_1 = arith.constant 0 : i32
    return %c0_i32, %c0_i32_0 : i32, i32
  }
  func.func @transform_9(%arg0: i32) -> (i32, i32) {
    %c0_i32 = arith.constant 0 : i32
    %c0_i32_0 = arith.constant 0 : i32
    %c0_i32_1 = arith.constant 0 : i32
    return %c0_i32, %c0_i32_0 : i32, i32
  }
  func.func @transform_10(%arg0: i32) -> (i32, i32) {
    %c0_i32 = arith.constant 0 : i32
    %c0_i32_0 = arith.constant 0 : i32
    %c0_i32_1 = arith.constant 0 : i32
    return %c0_i32, %c0_i32_0 : i32, i32
  }
  func.func @transform_11(%arg0: i32) -> (i32, i32) {
    %c0_i32 = arith.constant 0 : i32
    %c0_i32_0 = arith.constant 0 : i32
    %c0_i32_1 = arith.constant 0 : i32
    return %c0_i32, %c0_i32_0 : i32, i32
  }
  func.func @transform_12(%arg0: i32) -> (i32, i32) {
    %c0_i32 = arith.constant 0 : i32
    %c0_i32_0 = arith.constant 0 : i32
    %c0_i32_1 = arith.constant 0 : i32
    return %c0_i32, %c0_i32_0 : i32, i32
  }
  func.func @transform_13(%arg0: i32) -> (i32, i32) {
    %c0_i32 = arith.constant 0 : i32
    %c0_i32_0 = arith.constant 0 : i32
    %c0_i32_1 = arith.constant 0 : i32
    return %c0_i32, %c0_i32_0 : i32, i32
  }
  func.func @transform_14(%arg0: i32) -> (i32, i32) {
    %c0_i32 = arith.constant 0 : i32
    %c0_i32_0 = arith.constant 0 : i32
    %c0_i32_1 = arith.constant 0 : i32
    return %c0_i32, %c0_i32_0 : i32, i32
  }
  func.func @transform_15(%arg0: i32) -> (i32, i32) {
    %c0_i32 = arith.constant 0 : i32
    %c0_i32_0 = arith.constant 0 : i32
    %c0_i32_1 = arith.constant 0 : i32
    return %c0_i32, %c0_i32_0 : i32, i32
  }
  func.func @transform_16(%arg0: i32) -> (i32, i32) {
    %c0_i32 = arith.constant 0 : i32
    %c0_i32_0 = arith.constant 0 : i32
    %c0_i32_1 = arith.constant 0 : i32
    return %c0_i32, %c0_i32_0 : i32, i32
  }
  func.func @transform_17(%arg0: i32) -> (i32, i32) {
    %c0_i32 = arith.constant 0 : i32
    %c0_i32_0 = arith.constant 0 : i32
    %c0_i32_1 = arith.constant 0 : i32
    return %c0_i32, %c0_i32_0 : i32, i32
  }
  func.func @transform_18(%arg0: i32) -> (i32, i32) {
    %c0_i32 = arith.constant 0 : i32
    %c0_i32_0 = arith.constant 0 : i32
    return %arg0, %c0_i32 : i32, i32
  }
  func.func @transform_19(%arg0: i32) -> (i32, i32) {
    %c0_i32 = arith.constant 0 : i32
    %c0_i32_0 = arith.constant 0 : i32
    return %arg0, %c0_i32 : i32, i32
  }
}

</mosaic_0001>

<llo_original>
// kernel: tpu_custom_call.1
$region0: #{tpu_custom_call.1}
  #allocation0 [shape = 'u32[]', space=smem, size = 0x4, offset = 0x4, fixed_abs, tag = 'smem constant byte address 0x4 - core index']
  #allocation1 [shape = 'u32[72,128]{1,0:T(1,128)}', space=vmem, size = 0x9000, scoped, tag = 'internal scratch']
  #allocation2 [shape = 'f32[1,1]{1,0:T(1,128)S(1)}', space=vmem, size = 0x200, scoped, tag = 'scoped memory for tpu_custom_call.1']
  %s0 = inlined_call_operand.hbm [shape: bf16[64,128], index: 0, kind: input, shape index: {}]
  %s1 = inlined_call_operand.hbm [shape: f32[8,8], index: 1, kind: input, shape index: {}]
  %s2 = inlined_call_operand.hbm [shape: bf16[128,128], index: 2, kind: input, shape index: {}]
  %s3 = inlined_call_operand.vmem [shape: f32[1,128], index: 3, kind: input, shape index: {}]
  %s4 = inlined_call_operand.vmem [shape: f32[1,128], index: 4, kind: input, shape index: {}]
  %s5 = inlined_call_operand.<no memory space> [shape: f32[1,1], index: 5, kind: input, shape index: {}]
  %s6 = inlined_call_operand.vmem [shape: f32[1,128], index: 6, kind: input, shape index: {}]
  %s7 = inlined_call_operand.vmem [shape: f32[1,128], index: 7, kind: input, shape index: {}]
  %s8 = inlined_call_operand.vmem [shape: f32[1,128], index: 8, kind: input, shape index: {}]
  %s9 = inlined_call_operand.vmem [shape: f32[1,128], index: 9, kind: input, shape index: {}]
  %s10 = inlined_call_operand.hbm [shape: bf16[128,128], index: 10, kind: input, shape index: {}]
  %s11 = inlined_call_operand.vmem [shape: f32[1,128], index: 11, kind: input, shape index: {}]
  %s12 = inlined_call_operand.vmem [shape: f32[1,128], index: 12, kind: input, shape index: {}]
  %s13 = inlined_call_operand.vmem [shape: f32[1,128], index: 13, kind: input, shape index: {}]
  %s14 = inlined_call_operand.hbm [shape: bf16[128,128], index: 14, kind: input, shape index: {}]
  %s15 = inlined_call_operand.vmem [shape: f32[1,128], index: 15, kind: input, shape index: {}]
  %s16 = inlined_call_operand.hbm [shape: bf16[128,128], index: 16, kind: input, shape index: {}]
  %s17 = inlined_call_operand.vmem [shape: f32[1,128], index: 17, kind: input, shape index: {}]
  %s18 = inlined_call_operand.hbm [shape: f32[8,128], index: 18, kind: output, shape index: {0}]
  %s19 = inlined_call_operand.hbm [shape: f32[8,128], index: 19, kind: output, shape index: {1}]
  %20 = xla_tuple %s18, %s19
  %s21 = sld [smem:[#allocation0]]
  $region114: #{tpu_custom_call.1} parent=0
    _
  %s23 = ssub.s32 1, %s21
  %s24 = scalar_select 0, %s23, %s21
  %v25 = vstv %s5
  %26 = vst [vmem:[#allocation2] sm:$0x1] %v25
  $region1: #{tpu_custom_call.1} parent=0
    #allocation3 [shape = 'u8[16384]{0}', space=vmem, size = 0x4000, scoped, tag = 'input window, operand 0, single buffered']
    #allocation4 [shape = 's32[1]{0}', space=sflag, size = 0x4, scoped, tag = 'scoped memory for tpu_custom_call.1']
    #allocation5 [shape = 's32[1]{0}', space=sflag, size = 0x4, scoped, tag = 'scoped memory for tpu_custom_call.1']
    #allocation6 [shape = 'u8[4096]{0}', space=vmem, size = 0x1000, scoped, tag = 'input window, operand 1, single buffered']
    #allocation7 [shape = 's32[1]{0}', space=sflag, size = 0x4, scoped, tag = 'scoped memory for tpu_custom_call.1']
    #allocation8 [shape = 'u8[32768]{0}', space=vmem, size = 0x8000, scoped, tag = 'input window, operand 2, single buffered']
    #allocation9 [shape = 'u8[32768]{0}', space=vmem, size = 0x8000, scoped, tag = 'input window, operand 10, single buffered']
    #allocation10 [shape = 's32[1]{0}', space=sflag, size = 0x4, scoped, tag = 'scoped memory for tpu_custom_call.1']
    #allocation11 [shape = 'u8[32768]{0}', space=vmem, size = 0x8000, scoped, tag = 'input window, operand 14, single buffered']
    #allocation12 [shape = 'u8[32768]{0}', space=vmem, size = 0x8000, scoped, tag = 'input window, operand 16, single buffered']
    #allocation13 [shape = 's32[1]{0}', space=sflag, size = 0x4, scoped, tag = 'scoped memory for tpu_custom_call.1']
    #allocation14 [shape = 'u8[4096]{0}', space=vmem, size = 0x1000, scoped, tag = 'output window, operand 0, single buffered']
    #allocation15 [shape = 'u8[4096]{0}', space=vmem, size = 0x1000, scoped, tag = 'output window, operand 1, single buffered']
    #allocation16 [shape = 's32[1]{0}', space=sflag, size = 0x4, scoped, tag = 'scoped memory for tpu_custom_call.1']
    %27 = vsyncpa [#allocation4], 0
    %28 = vsyncpa [#allocation7], 0
    %29 = vsyncpa [#allocation10], 0
    %30 = vsyncpa [#allocation13], 0
    %31 = vsyncpa [#allocation5], 0
    %32 = vsyncpa [#allocation16], 0
    // Predicated region
    $region2: #{tpu_custom_call.1} parent=1 // pred_check
      _
    $region3: #{tpu_custom_call.1} parent=1 // pred_check_branch
      %34 = sbr.rel (0) target = $region5
    $region4: #{tpu_custom_call.1} parent=1 // pred_region
      %36 = vsyncadd [#allocation4], 0
      %s37 = sshll.u32 %s0, 4
      %s38 = int_to_ptr.hbm [resolvable:$true] %s37
      %s39 = sshll.u32 [#allocation3], 4
      %s40 = int_to_ptr.vmem [resolvable:$true] %s39
      %45 = dma.hbm_to_vmem [thread:$0]  %s38, 512, %s40, [#allocation4], 64, 64, 4
    $region5: #{tpu_custom_call.1} parent=1 // pred_fallthru
      _
    // Predicated region
    $region6: #{tpu_custom_call.1} parent=1 // pred_check
      _
    $region7: #{tpu_custom_call.1} parent=1 // pred_check_branch
      %47 = sbr.rel (0) target = $region9
    $region8: #{tpu_custom_call.1} parent=1 // pred_region
      %49 = vsyncadd [#allocation7], 0
      %s51 = sshll.u32 %s1, 4
      %s52 = int_to_ptr.hbm [resolvable:$true] %s51
      %s53 = sshll.u32 [#allocation6], 4
      %s54 = int_to_ptr.vmem [resolvable:$true] %s53
      %56 = dma.hbm_to_vmem [thread:$0]  %s52, 128, %s54, [#allocation7]
    $region9: #{tpu_custom_call.1} parent=1 // pred_fallthru
      _
    // Predicated region
    $region10: #{tpu_custom_call.1} parent=1 // pred_check
      _
    $region11: #{tpu_custom_call.1} parent=1 // pred_check_branch
      %58 = sbr.rel (0) target = $region13
    $region12: #{tpu_custom_call.1} parent=1 // pred_region
      %60 = vsyncadd [#allocation7], 0
      %s61 = sshll.u32 %s2, 4
      %s62 = int_to_ptr.hbm [resolvable:$true] %s61
      %s63 = sshll.u32 [#allocation8], 4
      %s64 = int_to_ptr.vmem [resolvable:$true] %s63
      %69 = dma.hbm_to_vmem [thread:$0]  %s62, 1024, %s64, [#allocation7], 64, 64, 4
    $region13: #{tpu_custom_call.1} parent=1 // pred_fallthru
      _
    // Predicated region
    $region14: #{tpu_custom_call.1} parent=1 // pred_check
      _
    $region15: #{tpu_custom_call.1} parent=1 // pred_check_branch
      %71 = sbr.rel (0) target = $region17
    $region16: #{tpu_custom_call.1} parent=1 // pred_region
      _
    $region17: #{tpu_custom_call.1} parent=1 // pred_fallthru
      _
    // Predicated region
    $region18: #{tpu_custom_call.1} parent=1 // pred_check
      _
    $region19: #{tpu_custom_call.1} parent=1 // pred_check_branch
      %73 = sbr.rel (0) target = $region21
    $region20: #{tpu_custom_call.1} parent=1 // pred_region
      _
    $region21: #{tpu_custom_call.1} parent=1 // pred_fallthru
      _
    // Predicated region
    $region22: #{tpu_custom_call.1} parent=1 // pred_check
      _
    $region23: #{tpu_custom_call.1} parent=1 // pred_check_branch
      %75 = sbr.rel (0) target = $region25
    $region24: #{tpu_custom_call.1} parent=1 // pred_region
      _
    $region25: #{tpu_custom_call.1} parent=1 // pred_fallthru
      _
    // Predicated region
    $region26: #{tpu_custom_call.1} parent=1 // pred_check
      _
    $region27: #{tpu_custom_call.1} parent=1 // pred_check_branch
      %77 = sbr.rel (0) target = $region29
    $region28: #{tpu_custom_call.1} parent=1 // pred_region
      _
    $region29: #{tpu_custom_call.1} parent=1 // pred_fallthru
      _
    // Predicated region
    $region30: #{tpu_custom_call.1} parent=1 // pred_check
      _
    $region31: #{tpu_custom_call.1} parent=1 // pred_check_branch
      %79 = sbr.rel (0) target = $region33
    $region32: #{tpu_custom_call.1} parent=1 // pred_region
      _
    $region33: #{tpu_custom_call.1} parent=1 // pred_fallthru
      _
    // Predicated region
    $region34: #{tpu_custom_call.1} parent=1 // pred_check
      _
    $region35: #{tpu_custom_call.1} parent=1 // pred_check_branch
      %81 = sbr.rel (0) target = $region37
    $region36: #{tpu_custom_call.1} parent=1 // pred_region
      _
    $region37: #{tpu_custom_call.1} parent=1 // pred_fallthru
      _
    // Predicated region
    $region38: #{tpu_custom_call.1} parent=1 // pred_check
      _
    $region39: #{tpu_custom_call.1} parent=1 // pred_check_branch
      %83 = sbr.rel (0) target = $region41
    $region40: #{tpu_custom_call.1} parent=1 // pred_region
      _
    $region41: #{tpu_custom_call.1} parent=1 // pred_fallthru
      _
    // Predicated region
    $region42: #{tpu_custom_call.1} parent=1 // pred_check
      _
    $region43: #{tpu_custom_call.1} parent=1 // pred_check_branch
      %85 = sbr.rel (0) target = $region45
    $region44: #{tpu_custom_call.1} parent=1 // pred_region
      %87 = vsyncadd [#allocation10], 0
      %s88 = sshll.u32 %s10, 4
      %s89 = int_to_ptr.hbm [resolvable:$true] %s88
      %s90 = sshll.u32 [#allocation9], 4
      %s91 = int_to_ptr.vmem [resolvable:$true] %s90
      %96 = dma.hbm_to_vmem [thread:$0]  %s89, 1024, %s91, [#allocation10], 64, 64, 4
    $region45: #{tpu_custom_call.1} parent=1 // pred_fallthru
      _
    // Predicated region
    $region46: #{tpu_custom_call.1} parent=1 // pred_check
      _
    $region47: #{tpu_custom_call.1} parent=1 // pred_check_branch
      %98 = sbr.rel (0) target = $region49
    $region48: #{tpu_custom_call.1} parent=1 // pred_region
      _
    $region49: #{tpu_custom_call.1} parent=1 // pred_fallthru
      _
    // Predicated region
    $region50: #{tpu_custom_call.1} parent=1 // pred_check
      _
    $region51: #{tpu_custom_call.1} parent=1 // pred_check_branch
      %100 = sbr.rel (0) target = $region53
    $region52: #{tpu_custom_call.1} parent=1 // pred_region
      _
    $region53: #{tpu_custom_call.1} parent=1 // pred_fallthru
      _
    // Predicated region
    $region54: #{tpu_custom_call.1} parent=1 // pred_check
      _
    $region55: #{tpu_custom_call.1} parent=1 // pred_check_branch
      %102 = sbr.rel (0) target = $region57
    $region56: #{tpu_custom_call.1} parent=1 // pred_region
      _
    $region57: #{tpu_custom_call.1} parent=1 // pred_fallthru
      _
    // Predicated region
    $region58: #{tpu_custom_call.1} parent=1 // pred_check
      _
    $region59: #{tpu_custom_call.1} parent=1 // pred_check_branch
      %104 = sbr.rel (0) target = $region61
    $region60: #{tpu_custom_call.1} parent=1 // pred_region
      %106 = vsyncadd [#allocation10], 0
      %s107 = sshll.u32 %s14, 4
      %s108 = int_to_ptr.hbm [resolvable:$true] %s107
      %s109 = sshll.u32 [#allocation11], 4
      %s110 = int_to_ptr.vmem [resolvable:$true] %s109
      %115 = dma.hbm_to_vmem [thread:$0]  %s108, 1024, %s110, [#allocation10], 64, 64, 4
    $region61: #{tpu_custom_call.1} parent=1 // pred_fallthru
      _
    // Predicated region
    $region62: #{tpu_custom_call.1} parent=1 // pred_check
      _
    $region63: #{tpu_custom_call.1} parent=1 // pred_check_branch
      %117 = sbr.rel (0) target = $region65
    $region64: #{tpu_custom_call.1} parent=1 // pred_region
      _
    $region65: #{tpu_custom_call.1} parent=1 // pred_fallthru
      _
    // Predicated region
    $region66: #{tpu_custom_call.1} parent=1 // pred_check
      _
    $region67: #{tpu_custom_call.1} parent=1 // pred_check_branch
      %119 = sbr.rel (0) target = $region69
    $region68: #{tpu_custom_call.1} parent=1 // pred_region
      %121 = vsyncadd [#allocation13], 0
      %s122 = sshll.u32 %s16, 4
      %s123 = int_to_ptr.hbm [resolvable:$true] %s122
      %s124 = sshll.u32 [#allocation12], 4
      %s125 = int_to_ptr.vmem [resolvable:$true] %s124
      %130 = dma.hbm_to_vmem [thread:$0]  %s123, 1024, %s125, [#allocation13], 64, 64, 4
    $region69: #{tpu_custom_call.1} parent=1 // pred_fallthru
      _
    // Predicated region
    $region70: #{tpu_custom_call.1} parent=1 // pred_check
      _
    $region71: #{tpu_custom_call.1} parent=1 // pred_check_branch
      %132 = sbr.rel (0) target = $region73
    $region72: #{tpu_custom_call.1} parent=1 // pred_region
      _
    $region73: #{tpu_custom_call.1} parent=1 // pred_fallthru
      _
    // Predicated region
    $region74: #{tpu_custom_call.1} parent=1 // pred_check
      _
    $region75: #{tpu_custom_call.1} parent=1 // pred_check_branch
      %134 = sbr.rel (0) target = $region77
    $region76: #{tpu_custom_call.1} parent=1 // pred_region
      %136 = dma.done [#allocation4], 512
    $region77: #{tpu_custom_call.1} parent=1 // pred_fallthru
      _
    // Predicated region
    $region78: #{tpu_custom_call.1} parent=1 // pred_check
      _
    $region79: #{tpu_custom_call.1} parent=1 // pred_check_branch
      %138 = sbr.rel (0) target = $region81
    $region80: #{tpu_custom_call.1} parent=1 // pred_region
      %140 = dma.done [#allocation7], 128
    $region81: #{tpu_custom_call.1} parent=1 // pred_fallthru
      _
    // Predicated region
    $region82: #{tpu_custom_call.1} parent=1 // pred_check
      _
    $region83: #{tpu_custom_call.1} parent=1 // pred_check_branch
      %142 = sbr.rel (0) target = $region85
    $region84: #{tpu_custom_call.1} parent=1 // pred_region
      %144 = dma.done [#allocation7], 1024
    $region85: #{tpu_custom_call.1} parent=1 // pred_fallthru
      _
    // Predicated region
    $region86: #{tpu_custom_call.1} parent=1 // pred_check
      _
    $region87: #{tpu_custom_call.1} parent=1 // pred_check_branch
      %146 = sbr.rel (0) target = $region89
    $region88: #{tpu_custom_call.1} parent=1 // pred_region
      %148 = dma.done [#allocation10], 1024
    $region89: #{tpu_custom_call.1} parent=1 // pred_fallthru
      _
    // Predicated region
    $region90: #{tpu_custom_call.1} parent=1 // pred_check
      _
    $region91: #{tpu_custom_call.1} parent=1 // pred_check_branch
      %150 = sbr.rel (0) target = $region93
    $region92: #{tpu_custom_call.1} parent=1 // pred_region
      %152 = dma.done [#allocation10], 1024
    $region93: #{tpu_custom_call.1} parent=1 // pred_fallthru
      _
    // Predicated region
    $region94: #{tpu_custom_call.1} parent=1 // pred_check
      _
    $region95: #{tpu_custom_call.1} parent=1 // pred_check_branch
      %154 = sbr.rel (0) target = $region97
    $region96: #{tpu_custom_call.1} parent=1 // pred_region
      %156 = dma.done [#allocation13], 1024
    $region97: #{tpu_custom_call.1} parent=1 // pred_fallthru
      _
    %v157 = vld [vmem:[#allocation3] sm:$0xf]
    %v158 = vld [vmem:[#allocation3 + $0x4] sm:$0xf]
    %v159 = vld [vmem:[#allocation3 + $0x8] sm:$0xf]
    %v160 = vld [vmem:[#allocation3 + $0xc] sm:$0xf]
    %v161 = vld [vmem:[#allocation3 + $0x10] sm:$0xf]
    %v162 = vld [vmem:[#allocation3 + $0x14] sm:$0xf]
    %v163 = vld [vmem:[#allocation3 + $0x18] sm:$0xf]
    %v164 = vld [vmem:[#allocation3 + $0x1c] sm:$0xf]
    %v165 = vld [vmem:[#allocation8] sm:$0xf]
    %v166 = vld [vmem:[#allocation8 + $0x4] sm:$0xf]
    %v167 = vld [vmem:[#allocation8 + $0x8] sm:$0xf]
    %v168 = vld [vmem:[#allocation8 + $0xc] sm:$0xf]
    %v169 = vld [vmem:[#allocation8 + $0x10] sm:$0xf]
    %v170 = vld [vmem:[#allocation8 + $0x14] sm:$0xf]
    %v171 = vld [vmem:[#allocation8 + $0x18] sm:$0xf]
    %v172 = vld [vmem:[#allocation8 + $0x1c] sm:$0xf]
    %v173 = vld [vmem:[#allocation8 + $0x20] sm:$0xf]
    %v174 = vld [vmem:[#allocation8 + $0x24] sm:$0xf]
    %v175 = vld [vmem:[#allocation8 + $0x28] sm:$0xf]
    %v176 = vld [vmem:[#allocation8 + $0x2c] sm:$0xf]
    %v177 = vld [vmem:[#allocation8 + $0x30] sm:$0xf]
    %v178 = vld [vmem:[#allocation8 + $0x34] sm:$0xf]
    %v179 = vld [vmem:[#allocation8 + $0x38] sm:$0xf]
    %v180 = vld [vmem:[#allocation8 + $0x3c] sm:$0xf]
    %v181 = vld [vmem:[%s3] sm:$0x1]
    %v183 = vperm.slane %v181, 0
    %v193 = vunpack.c.l.b16 %v157
    %v194 = vunpack.c.l.b16 %v158
    %v195 = vunpack.c.l.b16 %v159
    %v196 = vunpack.c.l.b16 %v160
    %v197 = vunpack.c.l.b16 %v161
    %v198 = vunpack.c.l.b16 %v162
    %v199 = vunpack.c.l.b16 %v163
    %v200 = vunpack.c.l.b16 %v164
    %v201 = vpack.c.b16 %v194, %v193
    %v202 = vpack.c.b16 %v196, %v195
    %v203 = vpack.c.b16 %v198, %v197
    %v204 = vpack.c.b16 %v200, %v199
    %v225 = vunpack.c.l.b16 %v165
    %v226 = vunpack.c.l.b16 %v166
    %v227 = vunpack.c.l.b16 %v167
    %v228 = vunpack.c.l.b16 %v168
    %v229 = vunpack.c.l.b16 %v169
    %v230 = vunpack.c.l.b16 %v170
    %v231 = vunpack.c.l.b16 %v171
    %v232 = vunpack.c.l.b16 %v172
    %v233 = vunpack.c.l.b16 %v173
    %v234 = vunpack.c.l.b16 %v174
    %v235 = vunpack.c.l.b16 %v175
    %v236 = vunpack.c.l.b16 %v176
    %v237 = vunpack.c.l.b16 %v177
    %v238 = vunpack.c.l.b16 %v178
    %v239 = vunpack.c.l.b16 %v179
    %v240 = vunpack.c.l.b16 %v180
    %v241 = vpack.c.b16 %v226, %v225
    %v242 = vpack.c.b16 %v228, %v227
    %v243 = vpack.c.b16 %v230, %v229
    %v244 = vpack.c.b16 %v232, %v231
    %v245 = vpack.c.b16 %v234, %v233
    %v246 = vpack.c.b16 %v236, %v235
    %v247 = vpack.c.b16 %v238, %v237
    %v248 = vpack.c.b16 %v240, %v239
    %257 = vmatpush.bf16.msra.mxu0 %v248
    %258 = vmatpush.bf16.msra.mxu0 %v247
    %259 = vmatpush.bf16.msra.mxu0 %v246
    %260 = vmatpush.bf16.msra.mxu0 %v245
    %261 = vmatpush.bf16.msra.mxu0 %v244
    %262 = vmatpush.bf16.msra.mxu0 %v243
    %263 = vmatpush.bf16.msra.mxu0 %v242
    %264 = vmatpush.bf16.msra.mxu0 %v241
    %265 = vmatmul.bf16.gmra.mxu0 %v201
    %v266 = vpop.f32.mrf.mxu0
    %v267 = vadd.f32 %v183, %v266
    %v268 = vpop.f32.mrf.mxu0
    %v269 = vadd.f32 %v183, %v268
    %270 = vmatmul.bf16.gmra.mxu0 %v202
    %v271 = vpop.f32.mrf.mxu0
    %v272 = vadd.f32 %v183, %v271
    %v273 = vpop.f32.mrf.mxu0
    %v274 = vadd.f32 %v183, %v273
    %275 = vmatmul.bf16.gmra.mxu0 %v203
    %v276 = vpop.f32.mrf.mxu0
    %v277 = vadd.f32 %v183, %v276
    %v278 = vpop.f32.mrf.mxu0
    %v279 = vadd.f32 %v183, %v278
    %280 = vmatmul.bf16.gmra.mxu0 %v204
    %v281 = vpop.f32.mrf.mxu0
    %v282 = vadd.f32 %v183, %v281
    %v283 = vpop.f32.mrf.mxu0
    %v284 = vadd.f32 %v183, %v283
    %285 = vdwg.mxu0
    %v286 = vld [vmem:[%s4] sm:$0x1]
    %v288 = vperm.slane %v286, 0
    %v290 = vmul.f32 %v267, %v288
    %v291 = vmul.f32 %v269, %v288
    %v292 = vmul.f32 %v272, %v288
    %v293 = vmul.f32 %v274, %v288
    %v294 = vmul.f32 %v277, %v288
    %v295 = vmul.f32 %v279, %v288
    %v296 = vmul.f32 %v282, %v288
    %v297 = vmul.f32 %v284, %v288
    %298 = vadd.xlane.f32.xlu0 %v290
    %v299 = vpop.xlane.xlu0 %298
    %300 = vadd.xlane.f32.xlu0 %v291
    %v301 = vpop.xlane.xlu0 %300
    %302 = vadd.xlane.f32.xlu0 %v292
    %v303 = vpop.xlane.xlu0 %302
    %304 = vadd.xlane.f32.xlu0 %v293
    %v305 = vpop.xlane.xlu0 %304
    %306 = vadd.xlane.f32.xlu0 %v294
    %v307 = vpop.xlane.xlu0 %306
    %308 = vadd.xlane.f32.xlu0 %v295
    %v309 = vpop.xlane.xlu0 %308
    %310 = vadd.xlane.f32.xlu0 %v296
    %v311 = vpop.xlane.xlu0 %310
    %312 = vadd.xlane.f32.xlu0 %v297
    %v313 = vpop.xlane.xlu0 %312
    %v314 = vld [vmem:[#allocation2] sm:$0x1]
    %v316 = vperm.slane %v314, 0
    %317 = vset.pattern.permute.xlu0 0
    %318 = vperm.xlu0 %317, %v316
    %v319 = vpop.permute.xlu0 %318
    %v321 = vadd.f32 %v299, %v319
    %v322 = vadd.f32 %v301, %v319
    %v323 = vadd.f32 %v303, %v319
    %v324 = vadd.f32 %v305, %v319
    %v325 = vadd.f32 %v307, %v319
    %v326 = vadd.f32 %v309, %v319
    %v327 = vadd.f32 %v311, %v319
    %v328 = vadd.f32 %v313, %v319
    %v329 = vld [vmem:[#allocation6] sm:$0xff]
    %v331 = vperm.slane %v329, 0
    %v332 = vlaneseq
    %v333 = vshrl.u32 %v332, 7
    %335 = vset.pattern.permute.xlu0 %v333
    %336 = vperm.xlu0 %335, %v331
    %v337 = vpop.permute.xlu0 %336
    %v338 = vperm.slane %v329, 1
    %v339 = vlaneseq
    %v340 = vshrl.u32 %v339, 7
    %342 = vset.pattern.permute.xlu0 %v340
    %343 = vperm.xlu0 %342, %v338
    %v344 = vpop.permute.xlu0 %343
    %v345 = vperm.slane %v329, 2
    %v346 = vlaneseq
    %v347 = vshrl.u32 %v346, 7
    %349 = vset.pattern.permute.xlu0 %v347
    %350 = vperm.xlu0 %349, %v345
    %v351 = vpop.permute.xlu0 %350
    %v352 = vperm.slane %v329, 3
    %v353 = vlaneseq
    %v354 = vshrl.u32 %v353, 7
    %356 = vset.pattern.permute.xlu0 %v354
    %357 = vperm.xlu0 %356, %v352
    %v358 = vpop.permute.xlu0 %357
    %v359 = vperm.slane %v329, 4
    %v360 = vlaneseq
    %v361 = vshrl.u32 %v360, 7
    %363 = vset.pattern.permute.xlu0 %v361
    %364 = vperm.xlu0 %363, %v359
    %v365 = vpop.permute.xlu0 %364
    %v366 = vperm.slane %v329, 5
    %v367 = vlaneseq
    %v368 = vshrl.u32 %v367, 7
    %370 = vset.pattern.permute.xlu0 %v368
    %371 = vperm.xlu0 %370, %v366
    %v372 = vpop.permute.xlu0 %371
    %v373 = vperm.slane %v329, 6
    %v374 = vlaneseq
    %v375 = vshrl.u32 %v374, 7
    %377 = vset.pattern.permute.xlu0 %v375
    %378 = vperm.xlu0 %377, %v373
    %v379 = vpop.permute.xlu0 %378
    %v380 = vperm.slane %v329, 7
    %v381 = vlaneseq
    %v382 = vshrl.u32 %v381, 7
    %384 = vset.pattern.permute.xlu0 %v382
    %385 = vperm.xlu0 %384, %v380
    %v386 = vpop.permute.xlu0 %385
    %v395 = vadd.f32 %v321, %v337
    %v396 = vadd.f32 %v322, %v344
    %v397 = vadd.f32 %v323, %v351
    %v398 = vadd.f32 %v324, %v358
    %v399 = vadd.f32 %v325, %v365
    %v400 = vadd.f32 %v326, %v372
    %v401 = vadd.f32 %v327, %v379
    %v402 = vadd.f32 %v328, %v386
    %411 = vset.pattern.permute.xlu0 0
    %412 = vperm.xlu0 %411, %v395
    %v413 = vpop.permute.xlu0 %412
    %414 = vset.pattern.permute.xlu0 0
    %415 = vperm.xlu0 %414, %v396
    %v416 = vpop.permute.xlu0 %415
    %417 = vset.pattern.permute.xlu0 0
    %418 = vperm.xlu0 %417, %v397
    %v419 = vpop.permute.xlu0 %418
    %420 = vset.pattern.permute.xlu0 0
    %421 = vperm.xlu0 %420, %v398
    %v422 = vpop.permute.xlu0 %421
    %423 = vset.pattern.permute.xlu0 0
    %424 = vperm.xlu0 %423, %v399
    %v425 = vpop.permute.xlu0 %424
    %426 = vset.pattern.permute.xlu0 0
    %427 = vperm.xlu0 %426, %v400
    %v428 = vpop.permute.xlu0 %427
    %429 = vset.pattern.permute.xlu0 0
    %430 = vperm.xlu0 %429, %v401
    %v431 = vpop.permute.xlu0 %430
    %432 = vset.pattern.permute.xlu0 0
    %433 = vperm.xlu0 %432, %v402
    %v434 = vpop.permute.xlu0 %433
    %v435 = vlaneseq
    %v436 = vand.u32 %v435, 127
    %v437 = vperm.slane %v413, %v436
    %v438 = vperm.slane %v416, %v436
    %v439 = vperm.slane %v419, %v436
    %v440 = vperm.slane %v422, %v436
    %v441 = vperm.slane %v425, %v436
    %v442 = vperm.slane %v428, %v436
    %v443 = vperm.slane %v431, %v436
    %v444 = vperm.slane %v434, %v436
    %vm445 = vcmask 1041409
    %v446 = vsel %vm445, %v438, %v437
    %vm447 = vcmask 1042434
    %v448 = vsel %vm447, %v439, %v446
    %vm449 = vcmask 1043459
    %v450 = vsel %vm449, %v440, %v448
    %vm451 = vcmask 1044484
    %v452 = vsel %vm451, %v441, %v450
    %vm453 = vcmask 1045509
    %v454 = vsel %vm453, %v442, %v452
    %vm455 = vcmask 1046534
    %v456 = vsel %vm455, %v443, %v454
    %vm457 = vcmask 1047559
    %v458 = vsel %vm457, %v444, %v456
    %vm460 = vcmask 64512
    %v461 = vsel %vm460, %v458, -inf
    %462 = vmax.xlane.f32.xlu0 %v461
    %v463 = vpop.xlane.xlu0 %462
    %v465 = vperm.slane %v463, 0
    %v466 = vperm.slane %v463, 1
    %v467 = vperm.slane %v463, 2
    %v468 = vperm.slane %v463, 3
    %v469 = vperm.slane %v463, 4
    %v470 = vperm.slane %v463, 5
    %v471 = vperm.slane %v463, 6
    %v472 = vperm.slane %v463, 7
    %v481 = vsub.f32 %v395, %v465
    %v482 = vsub.f32 %v396, %v466
    %v483 = vsub.f32 %v397, %v467
    %v484 = vsub.f32 %v398, %v468
    %v485 = vsub.f32 %v399, %v469
    %v486 = vsub.f32 %v400, %v470
    %v487 = vsub.f32 %v401, %v471
    %v488 = vsub.f32 %v402, %v472
    %v489 = vmul.f32 %v481, 1.442695
    %v490 = vpow.pop %v489
    %v491 = vmul.f32 %v482, 1.442695
    %v492 = vpow.pop %v491
    %v493 = vmul.f32 %v483, 1.442695
    %v494 = vpow.pop %v493
    %v495 = vmul.f32 %v484, 1.442695
    %v496 = vpow.pop %v495
    %v497 = vmul.f32 %v485, 1.442695
    %v498 = vpow.pop %v497
    %v499 = vmul.f32 %v486, 1.442695
    %v500 = vpow.pop %v499
    %v501 = vmul.f32 %v487, 1.442695
    %v502 = vpow.pop %v501
    %v503 = vmul.f32 %v488, 1.442695
    %v504 = vpow.pop %v503
    %513 = vset.pattern.permute.xlu0 0
    %514 = vperm.xlu0 %513, %v490
    %v515 = vpop.permute.xlu0 %514
    %516 = vset.pattern.permute.xlu0 0
    %517 = vperm.xlu0 %516, %v492
    %v518 = vpop.permute.xlu0 %517
    %519 = vset.pattern.permute.xlu0 0
    %520 = vperm.xlu0 %519, %v494
    %v521 = vpop.permute.xlu0 %520
    %522 = vset.pattern.permute.xlu0 0
    %523 = vperm.xlu0 %522, %v496
    %v524 = vpop.permute.xlu0 %523
    %525 = vset.pattern.permute.xlu0 0
    %526 = vperm.xlu0 %525, %v498
    %v527 = vpop.permute.xlu0 %526
    %528 = vset.pattern.permute.xlu0 0
    %529 = vperm.xlu0 %528, %v500
    %v530 = vpop.permute.xlu0 %529
    %531 = vset.pattern.permute.xlu0 0
    %532 = vperm.xlu0 %531, %v502
    %v533 = vpop.permute.xlu0 %532
    %534 = vset.pattern.permute.xlu0 0
    %535 = vperm.xlu0 %534, %v504
    %v536 = vpop.permute.xlu0 %535
    %v537 = vperm.slane %v515, %v436
    %v538 = vperm.slane %v518, %v436
    %v539 = vperm.slane %v521, %v436
    %v540 = vperm.slane %v524, %v436
    %v541 = vperm.slane %v527, %v436
    %v542 = vperm.slane %v530, %v436
    %v543 = vperm.slane %v533, %v436
    %v544 = vperm.slane %v536, %v436
    %v545 = vsel %vm445, %v538, %v537
    %v546 = vsel %vm447, %v539, %v545
    %v547 = vsel %vm449, %v540, %v546
    %v548 = vsel %vm451, %v541, %v547
    %v549 = vsel %vm453, %v542, %v548
    %v550 = vsel %vm455, %v543, %v549
    %v551 = vsel %vm457, %v544, %v550
    %v553 = vsel %vm460, %v551, 0.0
    %554 = vadd.xlane.f32.xlu0 %v553
    %v555 = vpop.xlane.xlu0 %554
    %v556 = vrcp.pop %v555
    %v558 = vperm.slane %v556, 0
    %v559 = vperm.slane %v556, 1
    %v560 = vperm.slane %v556, 2
    %v561 = vperm.slane %v556, 3
    %v562 = vperm.slane %v556, 4
    %v563 = vperm.slane %v556, 5
    %v564 = vperm.slane %v556, 6
    %v565 = vperm.slane %v556, 7
    %v574 = vmul.f32 %v490, %v558
    %v575 = vmul.f32 %v492, %v559
    %v576 = vmul.f32 %v494, %v560
    %v577 = vmul.f32 %v496, %v561
    %v578 = vmul.f32 %v498, %v562
    %v579 = vmul.f32 %v500, %v563
    %v580 = vmul.f32 %v502, %v564
    %v581 = vmul.f32 %v504, %v565
    %583 = vset.pattern.permute.xlu0 0
    %584 = vperm.xlu0 %583, %v574
    %v585 = vpop.permute.xlu0 %584
    %588 = vset.pattern.permute.xlu0 0
    %589 = vperm.xlu0 %588, %v575
    %v590 = vpop.permute.xlu0 %589
    %593 = vset.pattern.permute.xlu0 0
    %594 = vperm.xlu0 %593, %v576
    %v595 = vpop.permute.xlu0 %594
    %598 = vset.pattern.permute.xlu0 0
    %599 = vperm.xlu0 %598, %v577
    %v600 = vpop.permute.xlu0 %599
    %603 = vset.pattern.permute.xlu0 0
    %604 = vperm.xlu0 %603, %v578
    %v605 = vpop.permute.xlu0 %604
    %608 = vset.pattern.permute.xlu0 0
    %609 = vperm.xlu0 %608, %v579
    %v610 = vpop.permute.xlu0 %609
    %613 = vset.pattern.permute.xlu0 0
    %614 = vperm.xlu0 %613, %v580
    %v615 = vpop.permute.xlu0 %614
    %618 = vset.pattern.permute.xlu0 0
    %619 = vperm.xlu0 %618, %v581
    %v620 = vpop.permute.xlu0 %619
    %v622 = vmul.f32 %v585, %v267
    %v623 = vmul.f32 %v590, %v269
    %v624 = vmul.f32 %v595, %v272
    %v625 = vmul.f32 %v600, %v274
    %v626 = vmul.f32 %v605, %v277
    %v627 = vmul.f32 %v610, %v279
    %v628 = vmul.f32 %v615, %v282
    %v629 = vmul.f32 %v620, %v284
    %v630 = vrot.slane %v622, 4
    %v631 = vadd.f32 %v622, %v630
    %v632 = vrot.slane %v631, 2
    %v633 = vadd.f32 %v631, %v632
    %v634 = vrot.slane %v633, 1
    %v635 = vadd.f32 %v633, %v634
    %v636 = vrot.slane %v623, 4
    %v637 = vadd.f32 %v623, %v636
    %v638 = vrot.slane %v637, 2
    %v639 = vadd.f32 %v637, %v638
    %v640 = vrot.slane %v639, 1
    %v641 = vadd.f32 %v639, %v640
    %v642 = vrot.slane %v624, 4
    %v643 = vadd.f32 %v624, %v642
    %v644 = vrot.slane %v643, 2
    %v645 = vadd.f32 %v643, %v644
    %v646 = vrot.slane %v645, 1
    %v647 = vadd.f32 %v645, %v646
    %v648 = vrot.slane %v625, 4
    %v649 = vadd.f32 %v625, %v648
    %v650 = vrot.slane %v649, 2
    %v651 = vadd.f32 %v649, %v650
    %v652 = vrot.slane %v651, 1
    %v653 = vadd.f32 %v651, %v652
    %v654 = vrot.slane %v626, 4
    %v655 = vadd.f32 %v626, %v654
    %v656 = vrot.slane %v655, 2
    %v657 = vadd.f32 %v655, %v656
    %v658 = vrot.slane %v657, 1
    %v659 = vadd.f32 %v657, %v658
    %v660 = vrot.slane %v627, 4
    %v661 = vadd.f32 %v627, %v660
    %v662 = vrot.slane %v661, 2
    %v663 = vadd.f32 %v661, %v662
    %v664 = vrot.slane %v663, 1
    %v665 = vadd.f32 %v663, %v664
    %v666 = vrot.slane %v628, 4
    %v667 = vadd.f32 %v628, %v666
    %v668 = vrot.slane %v667, 2
    %v669 = vadd.f32 %v667, %v668
    %v670 = vrot.slane %v669, 1
    %v671 = vadd.f32 %v669, %v670
    %v672 = vrot.slane %v629, 4
    %v673 = vadd.f32 %v629, %v672
    %v674 = vrot.slane %v673, 2
    %v675 = vadd.f32 %v673, %v674
    %v676 = vrot.slane %v675, 1
    %v677 = vadd.f32 %v675, %v676
    %v678 = vld [vmem:[%s6] sm:$0x1]
    %v679 = vld [vmem:[%s7] sm:$0x1]
    %v688 = vsel %vm445, %v641, %v635
    %v689 = vsel %vm447, %v647, %v688
    %v690 = vsel %vm449, %v653, %v689
    %v691 = vsel %vm451, %v659, %v690
    %v692 = vsel %vm453, %v665, %v691
    %v693 = vsel %vm455, %v671, %v692
    %v694 = vsel %vm457, %v677, %v693
    %696 = vadd.xlane.f32.xlu0 %v694
    %v697 = vpop.xlane.xlu0 %696
    %v698 = vrcp.pop 128.0
    %v699 = vmul.f32 128.0, %v698
    %v700 = vsub.f32 1.0, %v699
    %v701 = vmul.f32 %v698, %v700
    %v702 = vadd.f32 %v698, %v701
    %vm703 = vweird.f32 %v698
    %v704 = vsel %vm703, %v698, %v702
    %v705 = vmul.f32 %v697, %v704
    %v707 = vrot.slane %v705, 1
    %v708 = vrot.slane %v705, 2
    %v709 = vrot.slane %v705, 3
    %v710 = vrot.slane %v705, 4
    %v711 = vrot.slane %v705, 5
    %v712 = vrot.slane %v705, 6
    %v713 = vrot.slane %v705, 7
    %v722 = vsub.f32 %v635, %v705
    %v723 = vsub.f32 %v641, %v707
    %v724 = vsub.f32 %v647, %v708
    %v725 = vsub.f32 %v653, %v709
    %v726 = vsub.f32 %v659, %v710
    %v727 = vsub.f32 %v665, %v711
    %v728 = vsub.f32 %v671, %v712
    %v729 = vsub.f32 %v677, %v713
    %v730 = vmul.f32 %v722, %v722
    %v731 = vmul.f32 %v723, %v723
    %v732 = vmul.f32 %v724, %v724
    %v733 = vmul.f32 %v725, %v725
    %v734 = vmul.f32 %v726, %v726
    %v735 = vmul.f32 %v727, %v727
    %v736 = vmul.f32 %v728, %v728
    %v737 = vmul.f32 %v729, %v729
    %v746 = vrot.slane %v731, 7
    %v747 = vsel %vm445, %v746, %v730
    %v748 = vrot.slane %v732, 6
    %v749 = vsel %vm447, %v748, %v747
    %v750 = vrot.slane %v733, 5
    %v751 = vsel %vm449, %v750, %v749
    %v752 = vrot.slane %v734, 4
    %v753 = vsel %vm451, %v752, %v751
    %v754 = vrot.slane %v735, 3
    %v755 = vsel %vm453, %v754, %v753
    %v756 = vrot.slane %v736, 2
    %v757 = vsel %vm455, %v756, %v755
    %v758 = vrot.slane %v737, 1
    %v759 = vsel %vm457, %v758, %v757
    %761 = vadd.xlane.f32.xlu0 %v759
    %v762 = vpop.xlane.xlu0 %761
    %v763 = vmul.f32 %v762, %v704
    %v764 = vadd.f32 %v763, 1e-05
    %v765 = vrsqrt.pop %v764
    %v766 = vmul.f32 %v765, %v764
    %v767 = vmul.f32 %v766, %v765
    %v768 = vmul.f32 0.5, %v767
    %v769 = vsub.f32 1.5, %v768
    %v770 = vmul.f32 %v765, %v769
    %vm771 = vweird.f32 %v764
    %vm772 = vweird.f32 %v765
    %vm773 = vmor %vm771, %vm772
    %v774 = vsel %vm773, %v765, %v770
    %v776 = vrot.slane %v774, 1
    %v777 = vrot.slane %v774, 2
    %v778 = vrot.slane %v774, 3
    %v779 = vrot.slane %v774, 4
    %v780 = vrot.slane %v774, 5
    %v781 = vrot.slane %v774, 6
    %v782 = vrot.slane %v774, 7
    %v791 = vmul.f32 %v722, %v774
    %v792 = vmul.f32 %v723, %v776
    %v793 = vmul.f32 %v724, %v777
    %v794 = vmul.f32 %v725, %v778
    %v795 = vmul.f32 %v726, %v779
    %v796 = vmul.f32 %v727, %v780
    %v797 = vmul.f32 %v728, %v781
    %v798 = vmul.f32 %v729, %v782
    %v800 = vperm.slane %v678, 0
    %v802 = vmul.f32 %v791, %v800
    %v803 = vmul.f32 %v792, %v800
    %v804 = vmul.f32 %v793, %v800
    %v805 = vmul.f32 %v794, %v800
    %v806 = vmul.f32 %v795, %v800
    %v807 = vmul.f32 %v796, %v800
    %v808 = vmul.f32 %v797, %v800
    %v809 = vmul.f32 %v798, %v800
    %v811 = vperm.slane %v679, 0
    %v813 = vadd.f32 %v802, %v811
    %v814 = vadd.f32 %v803, %v811
    %v815 = vadd.f32 %v804, %v811
    %v816 = vadd.f32 %v805, %v811
    %v817 = vadd.f32 %v806, %v811
    %v818 = vadd.f32 %v807, %v811
    %v819 = vadd.f32 %v808, %v811
    %v820 = vadd.f32 %v809, %v811
    %v821 = vld [vmem:[%s8] sm:$0x1]
    %v822 = vld [vmem:[%s9] sm:$0x1]
    %v831 = vrot.slane %v814, 7
    %v832 = vsel %vm445, %v831, %v813
    %v833 = vrot.slane %v815, 6
    %v834 = vsel %vm447, %v833, %v832
    %v835 = vrot.slane %v816, 5
    %v836 = vsel %vm449, %v835, %v834
    %v837 = vrot.slane %v817, 4
    %v838 = vsel %vm451, %v837, %v836
    %v839 = vrot.slane %v818, 3
    %v840 = vsel %vm453, %v839, %v838
    %v841 = vrot.slane %v819, 2
    %v842 = vsel %vm455, %v841, %v840
    %v843 = vrot.slane %v820, 1
    %v844 = vsel %vm457, %v843, %v842
    %846 = vadd.xlane.f32.xlu0 %v844
    %v847 = vpop.xlane.xlu0 %846
    %v848 = vmul.f32 %v847, %v704
    %v850 = vrot.slane %v848, 1
    %v851 = vrot.slane %v848, 2
    %v852 = vrot.slane %v848, 3
    %v853 = vrot.slane %v848, 4
    %v854 = vrot.slane %v848, 5
    %v855 = vrot.slane %v848, 6
    %v856 = vrot.slane %v848, 7
    %v865 = vsub.f32 %v813, %v848
    %v866 = vsub.f32 %v814, %v850
    %v867 = vsub.f32 %v815, %v851
    %v868 = vsub.f32 %v816, %v852
    %v869 = vsub.f32 %v817, %v853
    %v870 = vsub.f32 %v818, %v854
    %v871 = vsub.f32 %v819, %v855
    %v872 = vsub.f32 %v820, %v856
    %v873 = vmul.f32 %v865, %v865
    %v874 = vmul.f32 %v866, %v866
    %v875 = vmul.f32 %v867, %v867
    %v876 = vmul.f32 %v868, %v868
    %v877 = vmul.f32 %v869, %v869
    %v878 = vmul.f32 %v870, %v870
    %v879 = vmul.f32 %v871, %v871
    %v880 = vmul.f32 %v872, %v872
    %v889 = vrot.slane %v874, 7
    %v890 = vsel %vm445, %v889, %v873
    %v891 = vrot.slane %v875, 6
    %v892 = vsel %vm447, %v891, %v890
    %v893 = vrot.slane %v876, 5
    %v894 = vsel %vm449, %v893, %v892
    %v895 = vrot.slane %v877, 4
    %v896 = vsel %vm451, %v895, %v894
    %v897 = vrot.slane %v878, 3
    %v898 = vsel %vm453, %v897, %v896
    %v899 = vrot.slane %v879, 2
    %v900 = vsel %vm455, %v899, %v898
    %v901 = vrot.slane %v880, 1
    %v902 = vsel %vm457, %v901, %v900
    %904 = vadd.xlane.f32.xlu0 %v902
    %v905 = vpop.xlane.xlu0 %904
    %v906 = vmul.f32 %v905, %v704
    %v907 = vadd.f32 %v906, 1e-05
    %v908 = vrsqrt.pop %v907
    %v909 = vmul.f32 %v908, %v907
    %v910 = vmul.f32 %v909, %v908
    %v911 = vmul.f32 0.5, %v910
    %v912 = vsub.f32 1.5, %v911
    %v913 = vmul.f32 %v908, %v912
    %vm914 = vweird.f32 %v907
    %vm915 = vweird.f32 %v908
    %vm916 = vmor %vm914, %vm915
    %v917 = vsel %vm916, %v908, %v913
    %v919 = vrot.slane %v917, 1
    %v920 = vrot.slane %v917, 2
    %v921 = vrot.slane %v917, 3
    %v922 = vrot.slane %v917, 4
    %v923 = vrot.slane %v917, 5
    %v924 = vrot.slane %v917, 6
    %v925 = vrot.slane %v917, 7
    %v934 = vmul.f32 %v865, %v917
    %v935 = vmul.f32 %v866, %v919
    %v936 = vmul.f32 %v867, %v920
    %v937 = vmul.f32 %v868, %v921
    %v938 = vmul.f32 %v869, %v922
    %v939 = vmul.f32 %v870, %v923
    %v940 = vmul.f32 %v871, %v924
    %v941 = vmul.f32 %v872, %v925
    %v943 = vperm.slane %v821, 0
    %v945 = vmul.f32 %v934, %v943
    %v946 = vmul.f32 %v935, %v943
    %v947 = vmul.f32 %v936, %v943
    %v948 = vmul.f32 %v937, %v943
    %v949 = vmul.f32 %v938, %v943
    %v950 = vmul.f32 %v939, %v943
    %v951 = vmul.f32 %v940, %v943
    %v952 = vmul.f32 %v941, %v943
    %v954 = vperm.slane %v822, 0
    %v956 = vadd.f32 %v945, %v954
    %v957 = vadd.f32 %v946, %v954
    %v958 = vadd.f32 %v947, %v954
    %v959 = vadd.f32 %v948, %v954
    %v960 = vadd.f32 %v949, %v954
    %v961 = vadd.f32 %v950, %v954
    %v962 = vadd.f32 %v951, %v954
    %v963 = vadd.f32 %v952, %v954
    %v964 = vpack.c.bf16 %v956, %v956
    %v965 = vpack.c.bf16 %v957, %v957
    %v966 = vpack.c.bf16 %v958, %v958
    %v967 = vpack.c.bf16 %v959, %v959
    %v968 = vpack.c.bf16 %v960, %v960
    %v969 = vpack.c.bf16 %v961, %v961
    %v970 = vpack.c.bf16 %v962, %v962
    %v971 = vpack.c.bf16 %v963, %v963
    %v972 = vld [vmem:[#allocation9] sm:$0xf]
    %v973 = vld [vmem:[#allocation9 + $0x4] sm:$0xf]
    %v974 = vld [vmem:[#allocation9 + $0x8] sm:$0xf]
    %v975 = vld [vmem:[#allocation9 + $0xc] sm:$0xf]
    %v976 = vld [vmem:[#allocation9 + $0x10] sm:$0xf]
    %v977 = vld [vmem:[#allocation9 + $0x14] sm:$0xf]
    %v978 = vld [vmem:[#allocation9 + $0x18] sm:$0xf]
    %v979 = vld [vmem:[#allocation9 + $0x1c] sm:$0xf]
    %v980 = vld [vmem:[#allocation9 + $0x20] sm:$0xf]
    %v981 = vld [vmem:[#allocation9 + $0x24] sm:$0xf]
    %v982 = vld [vmem:[#allocation9 + $0x28] sm:$0xf]
    %v983 = vld [vmem:[#allocation9 + $0x2c] sm:$0xf]
    %v984 = vld [vmem:[#allocation9 + $0x30] sm:$0xf]
    %v985 = vld [vmem:[#allocation9 + $0x34] sm:$0xf]
    %v986 = vld [vmem:[#allocation9 + $0x38] sm:$0xf]
    %v987 = vld [vmem:[#allocation9 + $0x3c] sm:$0xf]
    %v988 = vld [vmem:[%s11] sm:$0x1]
    %v990 = vperm.slane %v988, 0
    %v1000 = vunpack.c.l.b16 %v964
    %v1001 = vunpack.c.l.b16 %v965
    %v1002 = vunpack.c.l.b16 %v966
    %v1003 = vunpack.c.l.b16 %v967
    %v1004 = vunpack.c.l.b16 %v968
    %v1005 = vunpack.c.l.b16 %v969
    %v1006 = vunpack.c.l.b16 %v970
    %v1007 = vunpack.c.l.b16 %v971
    %v1008 = vrot.slane %v1001, 7
    %v1009 = vsel %vm445, %v1008, %v1000
    %v1010 = vrot.slane %v1002, 6
    %v1011 = vsel %vm447, %v1010, %v1009
    %v1012 = vrot.slane %v1003, 5
    %v1013 = vsel %vm449, %v1012, %v1011
    %v1014 = vrot.slane %v1004, 4
    %v1015 = vsel %vm451, %v1014, %v1013
    %v1016 = vrot.slane %v1005, 3
    %v1017 = vsel %vm453, %v1016, %v1015
    %v1018 = vrot.slane %v1006, 2
    %v1019 = vsel %vm455, %v1018, %v1017
    %v1020 = vrot.slane %v1007, 1
    %v1021 = vsel %vm457, %v1020, %v1019
    %v1022 = vpack.c.b16 %v1021, %v1021
    %v1040 = vunpack.c.l.b16 %v972
    %v1041 = vunpack.c.l.b16 %v973
    %v1042 = vunpack.c.l.b16 %v974
    %v1043 = vunpack.c.l.b16 %v975
    %v1044 = vunpack.c.l.b16 %v976
    %v1045 = vunpack.c.l.b16 %v977
    %v1046 = vunpack.c.l.b16 %v978
    %v1047 = vunpack.c.l.b16 %v979
    %v1048 = vunpack.c.l.b16 %v980
    %v1049 = vunpack.c.l.b16 %v981
    %v1050 = vunpack.c.l.b16 %v982
    %v1051 = vunpack.c.l.b16 %v983
    %v1052 = vunpack.c.l.b16 %v984
    %v1053 = vunpack.c.l.b16 %v985
    %v1054 = vunpack.c.l.b16 %v986
    %v1055 = vunpack.c.l.b16 %v987
    %v1056 = vpack.c.b16 %v1041, %v1040
    %v1057 = vpack.c.b16 %v1043, %v1042
    %v1058 = vpack.c.b16 %v1045, %v1044
    %v1059 = vpack.c.b16 %v1047, %v1046
    %v1060 = vpack.c.b16 %v1049, %v1048
    %v1061 = vpack.c.b16 %v1051, %v1050
    %v1062 = vpack.c.b16 %v1053, %v1052
    %v1063 = vpack.c.b16 %v1055, %v1054
    %1072 = vmatpush.bf16.msra.mxu0 %v1063
    %1073 = vmatpush.bf16.msra.mxu0 %v1062
    %1074 = vmatpush.bf16.msra.mxu0 %v1061
    %1075 = vmatpush.bf16.msra.mxu0 %v1060
    %1076 = vmatpush.bf16.msra.mxu0 %v1059
    %1077 = vmatpush.bf16.msra.mxu0 %v1058
    %1078 = vmatpush.bf16.msra.mxu0 %v1057
    %1079 = vmatpush.bf16.msra.mxu0 %v1056
    %1080 = vmatmul.bf16.gmra.mxu0 %v1022
    %v1081 = vpop.f32.mrf.mxu0
    %v1082 = vadd.f32 %v990, %v1081
    %v1083 = vpop.f32.mrf.mxu0
    %1084 = vdwg.mxu0
    %v1085 = vmax.f32 %v1082, 0.0
    %v1086 = vld [vmem:[%s12] sm:$0x1]
    %v1087 = vld [vmem:[%s13] sm:$0x1]
    %1088 = vadd.xlane.f32.xlu0 %v1085
    %v1089 = vpop.xlane.xlu0 %1088
    %v1090 = vmul.f32 %v1089, %v704
    %v1091 = vsub.f32 %v1085, %v1090
    %v1092 = vmul.f32 %v1091, %v1091
    %1093 = vadd.xlane.f32.xlu0 %v1092
    %v1094 = vpop.xlane.xlu0 %1093
    %v1095 = vmul.f32 %v1094, %v704
    %v1096 = vadd.f32 %v1095, 1e-05
    %v1097 = vrsqrt.pop %v1096
    %v1098 = vmul.f32 %v1097, %v1096
    %v1099 = vmul.f32 %v1098, %v1097
    %v1100 = vmul.f32 0.5, %v1099
    %v1101 = vsub.f32 1.5, %v1100
    %v1102 = vmul.f32 %v1097, %v1101
    %vm1103 = vweird.f32 %v1096
    %vm1104 = vweird.f32 %v1097
    %vm1105 = vmor %vm1103, %vm1104
    %v1106 = vsel %vm1105, %v1097, %v1102
    %v1107 = vmul.f32 %v1091, %v1106
    %v1109 = vperm.slane %v1086, 0
    %v1111 = vmul.f32 %v1107, %v1109
    %v1113 = vperm.slane %v1087, 0
    %v1115 = vadd.f32 %v1111, %v1113
    %v1116 = vpack.c.bf16 %v1115, %v1115
    %v1117 = vld [vmem:[#allocation11] sm:$0xf]
    %v1118 = vld [vmem:[#allocation11 + $0x4] sm:$0xf]
    %v1119 = vld [vmem:[#allocation11 + $0x8] sm:$0xf]
    %v1120 = vld [vmem:[#allocation11 + $0xc] sm:$0xf]
    %v1121 = vld [vmem:[#allocation11 + $0x10] sm:$0xf]
    %v1122 = vld [vmem:[#allocation11 + $0x14] sm:$0xf]
    %v1123 = vld [vmem:[#allocation11 + $0x18] sm:$0xf]
    %v1124 = vld [vmem:[#allocation11 + $0x1c] sm:$0xf]
    %v1125 = vld [vmem:[#allocation11 + $0x20] sm:$0xf]
    %v1126 = vld [vmem:[#allocation11 + $0x24] sm:$0xf]
    %v1127 = vld [vmem:[#allocation11 + $0x28] sm:$0xf]
    %v1128 = vld [vmem:[#allocation11 + $0x2c] sm:$0xf]
    %v1129 = vld [vmem:[#allocation11 + $0x30] sm:$0xf]
    %v1130 = vld [vmem:[#allocation11 + $0x34] sm:$0xf]
    %v1131 = vld [vmem:[#allocation11 + $0x38] sm:$0xf]
    %v1132 = vld [vmem:[#allocation11 + $0x3c] sm:$0xf]
    %v1133 = vld [vmem:[%s15] sm:$0x1]
    %v1135 = vperm.slane %v1133, 0
    %v1153 = vunpack.c.l.b16 %v1117
    %v1154 = vunpack.c.l.b16 %v1118
    %v1155 = vunpack.c.l.b16 %v1119
    %v1156 = vunpack.c.l.b16 %v1120
    %v1157 = vunpack.c.l.b16 %v1121
    %v1158 = vunpack.c.l.b16 %v1122
    %v1159 = vunpack.c.l.b16 %v1123
    %v1160 = vunpack.c.l.b16 %v1124
    %v1161 = vunpack.c.l.b16 %v1125
    %v1162 = vunpack.c.l.b16 %v1126
    %v1163 = vunpack.c.l.b16 %v1127
    %v1164 = vunpack.c.l.b16 %v1128
    %v1165 = vunpack.c.l.b16 %v1129
    %v1166 = vunpack.c.l.b16 %v1130
    %v1167 = vunpack.c.l.b16 %v1131
    %v1168 = vunpack.c.l.b16 %v1132
    %v1169 = vpack.c.b16 %v1154, %v1153
    %v1170 = vpack.c.b16 %v1156, %v1155
    %v1171 = vpack.c.b16 %v1158, %v1157
    %v1172 = vpack.c.b16 %v1160, %v1159
    %v1173 = vpack.c.b16 %v1162, %v1161
    %v1174 = vpack.c.b16 %v1164, %v1163
    %v1175 = vpack.c.b16 %v1166, %v1165
    %v1176 = vpack.c.b16 %v1168, %v1167
    %1185 = vmatpush.bf16.msra.mxu0 %v1176
    %1186 = vmatpush.bf16.msra.mxu0 %v1175
    %1187 = vmatpush.bf16.msra.mxu0 %v1174
    %1188 = vmatpush.bf16.msra.mxu0 %v1173
    %1189 = vmatpush.bf16.msra.mxu0 %v1172
    %1190 = vmatpush.bf16.msra.mxu0 %v1171
    %1191 = vmatpush.bf16.msra.mxu0 %v1170
    %1192 = vmatpush.bf16.msra.mxu0 %v1169
    %1193 = vmatmul.bf16.gmra.mxu0 %v1116
    %v1194 = vpop.f32.mrf.mxu0
    %v1195 = vadd.f32 %v1135, %v1194
    %v1196 = vpop.f32.mrf.mxu0
    %1197 = vdwg.mxu0
    %v1198 = vmax.f32 %v1195, 0.0
    %v1199 = vpack.c.bf16 %v1198, %v1198
    %v1200 = vld [vmem:[#allocation12] sm:$0xf]
    %v1201 = vld [vmem:[#allocation12 + $0x4] sm:$0xf]
    %v1202 = vld [vmem:[#allocation12 + $0x8] sm:$0xf]
    %v1203 = vld [vmem:[#allocation12 + $0xc] sm:$0xf]
    %v1204 = vld [vmem:[#allocation12 + $0x10] sm:$0xf]
    %v1205 = vld [vmem:[#allocation12 + $0x14] sm:$0xf]
    %v1206 = vld [vmem:[#allocation12 + $0x18] sm:$0xf]
    %v1207 = vld [vmem:[#allocation12 + $0x1c] sm:$0xf]
    %v1208 = vld [vmem:[#allocation12 + $0x20] sm:$0xf]
    %v1209 = vld [vmem:[#allocation12 + $0x24] sm:$0xf]
    %v1210 = vld [vmem:[#allocation12 + $0x28] sm:$0xf]
    %v1211 = vld [vmem:[#allocation12 + $0x2c] sm:$0xf]
    %v1212 = vld [vmem:[#allocation12 + $0x30] sm:$0xf]
    %v1213 = vld [vmem:[#allocation12 + $0x34] sm:$0xf]
    %v1214 = vld [vmem:[#allocation12 + $0x38] sm:$0xf]
    %v1215 = vld [vmem:[#allocation12 + $0x3c] sm:$0xf]
    %v1216 = vld [vmem:[%s17] sm:$0x1]
    %v1218 = vperm.slane %v1216, 0
    %v1236 = vunpack.c.l.b16 %v1200
    %v1237 = vunpack.c.l.b16 %v1201
    %v1238 = vunpack.c.l.b16 %v1202
    %v1239 = vunpack.c.l.b16 %v1203
    %v1240 = vunpack.c.l.b16 %v1204
    %v1241 = vunpack.c.l.b16 %v1205
    %v1242 = vunpack.c.l.b16 %v1206
    %v1243 = vunpack.c.l.b16 %v1207
    %v1244 = vunpack.c.l.b16 %v1208
    %v1245 = vunpack.c.l.b16 %v1209
    %v1246 = vunpack.c.l.b16 %v1210
    %v1247 = vunpack.c.l.b16 %v1211
    %v1248 = vunpack.c.l.b16 %v1212
    %v1249 = vunpack.c.l.b16 %v1213
    %v1250 = vunpack.c.l.b16 %v1214
    %v1251 = vunpack.c.l.b16 %v1215
    %v1252 = vpack.c.b16 %v1237, %v1236
    %v1253 = vpack.c.b16 %v1239, %v1238
    %v1254 = vpack.c.b16 %v1241, %v1240
    %v1255 = vpack.c.b16 %v1243, %v1242
    %v1256 = vpack.c.b16 %v1245, %v1244
    %v1257 = vpack.c.b16 %v1247, %v1246
    %v1258 = vpack.c.b16 %v1249, %v1248
    %v1259 = vpack.c.b16 %v1251, %v1250
    %1268 = vmatpush.bf16.msra.mxu0 %v1259
    %1269 = vmatpush.bf16.msra.mxu0 %v1258
    %1270 = vmatpush.bf16.msra.mxu0 %v1257
    %1271 = vmatpush.bf16.msra.mxu0 %v1256
    %1272 = vmatpush.bf16.msra.mxu0 %v1255
    %1273 = vmatpush.bf16.msra.mxu0 %v1254
    %1274 = vmatpush.bf16.msra.mxu0 %v1253
    %1275 = vmatpush.bf16.msra.mxu0 %v1252
    %1276 = vmatmul.bf16.gmra.mxu0 %v1199
    %v1277 = vpop.f32.mrf.mxu0
    %v1278 = vadd.f32 %v1218, %v1277
    %v1279 = vpop.f32.mrf.mxu0
    %1280 = vdwg.mxu0
    %v1281 = vmul.f32 %v1195, %v1195
    %1282 = vadd.xlane.f32.xlu0 %v1281
    %v1283 = vpop.xlane.xlu0 %1282
    %v1284 = vmax.f32 %v1283, 1e-24
    %v1285 = vrsqrt.pop %v1284
    %v1286 = vmul.f32 %v1285, %v1284
    %v1287 = vmul.f32 %v1286, %v1285
    %v1288 = vmul.f32 0.5, %v1287
    %v1289 = vsub.f32 1.5, %v1288
    %v1290 = vmul.f32 %v1285, %v1289
    %vm1291 = vweird.f32 %v1284
    %vm1292 = vweird.f32 %v1285
    %vm1293 = vmor %vm1291, %vm1292
    %v1294 = vsel %vm1293, %v1285, %v1290
    %v1295 = vmul.f32 %v1195, %v1294
    %1296 = vst [vmem:[#allocation14] sm:$0xff] %v1295
    %1297 = vst [vmem:[#allocation15] sm:$0xff] %v1278
    // Predicated region
    $region98: #{tpu_custom_call.1} parent=1 // pred_check
      _
    $region99: #{tpu_custom_call.1} parent=1 // pred_check_branch
      %1299 = sbr.rel (0) target = $region101
    $region100: #{tpu_custom_call.1} parent=1 // pred_region
      %1301 = vsyncadd [#allocation5], 0
      %s1303 = sshll.u32 [#allocation14], 4
      %s1304 = int_to_ptr.vmem [resolvable:$true] %s1303
      %s1305 = sshll.u32 %s18, 4
      %s1306 = int_to_ptr.hbm [resolvable:$true] %s1305
      %1308 = dma.vmem_to_hbm [thread:$0]  %s1304, 128, %s1306, [#allocation5]
    $region101: #{tpu_custom_call.1} parent=1 // pred_fallthru
      _
    // Predicated region
    $region102: #{tpu_custom_call.1} parent=1 // pred_check
      _
    $region103: #{tpu_custom_call.1} parent=1 // pred_check_branch
      %1310 = sbr.rel (0) target = $region105
    $region104: #{tpu_custom_call.1} parent=1 // pred_region
      %1312 = vsyncadd [#allocation16], 0
      %s1314 = sshll.u32 [#allocation15], 4
      %s1315 = int_to_ptr.vmem [resolvable:$true] %s1314
      %s1316 = sshll.u32 %s19, 4
      %s1317 = int_to_ptr.hbm [resolvable:$true] %s1316
      %1319 = dma.vmem_to_hbm [thread:$0]  %s1315, 128, %s1317, [#allocation16]
    $region105: #{tpu_custom_call.1} parent=1 // pred_fallthru
      _
    // Predicated region
    $region106: #{tpu_custom_call.1} parent=1 // pred_check
      _
    $region107: #{tpu_custom_call.1} parent=1 // pred_check_branch
      %1321 = sbr.rel (0) target = $region109
    $region108: #{tpu_custom_call.1} parent=1 // pred_region
      %1323 = dma.done [#allocation5], 128
    $region109: #{tpu_custom_call.1} parent=1 // pred_fallthru
      _
    // Predicated region
    $region110: #{tpu_custom_call.1} parent=1 // pred_check
      _
    $region111: #{tpu_custom_call.1} parent=1 // pred_check_branch
      %1325 = sbr.rel (0) target = $region113
    $region112: #{tpu_custom_call.1} parent=1 // pred_region
      %1327 = dma.done [#allocation16], 128
    $region113: #{tpu_custom_call.1} parent=1 // pred_fallthru
      _
    %1328 = vsyncpa [#allocation4], 1
    %1329 = vsyncpa [#allocation7], 1
    %1330 = vsyncpa [#allocation10], 1
    %1331 = vsyncpa [#allocation13], 1
    %1332 = vsyncpa [#allocation5], 1
    %1333 = vsyncpa [#allocation16], 1

// kernel: tpu_custom_call.1
$region0: #{tpu_custom_call.1}
  #allocation0 [shape = 'u32[]', space=smem, size = 0x4, offset = 0x4, fixed_abs, tag = 'smem constant byte address 0x4 - core index']
  #allocation1 [shape = 'u32[72,128]{1,0:T(1,128)}', space=vmem, size = 0x9000, scoped, tag = 'internal scratch']
  #allocation2 [shape = 'f32[1,1]{1,0:T(1,128)S(1)}', space=vmem, size = 0x200, scoped, tag = 'scoped memory for tpu_custom_call.1']
  %s0 = inlined_call_operand.hbm [shape: bf16[64,128], index: 0, kind: input, shape index: {}]
  %s1 = inlined_call_operand.hbm [shape: f32[8,8], index: 1, kind: input, shape index: {}]
  %s2 = inlined_call_operand.hbm [shape: bf16[128,128], index: 2, kind: input, shape index: {}]
  %s3 = inlined_call_operand.vmem [shape: f32[1,128], index: 3, kind: input, shape index: {}]
  %s4 = inlined_call_operand.vmem [shape: f32[1,128], index: 4, kind: input, shape index: {}]
  %s5 = inlined_call_operand.<no memory space> [shape: f32[1,1], index: 5, kind: input, shape index: {}]
  %s6 = inlined_call_operand.vmem [shape: f32[1,128], index: 6, kind: input, shape index: {}]
  %s7 = inlined_call_operand.vmem [shape: f32[1,128], index: 7, kind: input, shape index: {}]
  %s8 = inlined_call_operand.vmem [shape: f32[1,128], index: 8, kind: input, shape index: {}]
  %s9 = inlined_call_operand.vmem [shape: f32[1,128], index: 9, kind: input, shape index: {}]
  %s10 = inlined_call_operand.hbm [shape: bf16[128,128], index: 10, kind: input, shape index: {}]
  %s11 = inlined_call_operand.vmem [shape: f32[1,128], index: 11, kind: input, shape index: {}]
  %s12 = inlined_call_operand.vmem [shape: f32[1,128], index: 12, kind: input, shape index: {}]
  %s13 = inlined_call_operand.vmem [shape: f32[1,128], index: 13, kind: input, shape index: {}]
  %s14 = inlined_call_operand.hbm [shape: bf16[128,128], index: 14, kind: input, shape index: {}]
  %s15 = inlined_call_operand.vmem [shape: f32[1,128], index: 15, kind: input, shape index: {}]
  %s16 = inlined_call_operand.hbm [shape: bf16[128,128], index: 16, kind: input, shape index: {}]
  %s17 = inlined_call_operand.vmem [shape: f32[1,128], index: 17, kind: input, shape index: {}]
  %s18 = inlined_call_operand.hbm [shape: f32[8,128], index: 18, kind: output, shape index: {0}]
  %s19 = inlined_call_operand.hbm [shape: f32[8,128], index: 19, kind: output, shape index: {1}]
  %20 = xla_tuple %s18, %s19
  %s21 = sld [smem:[#allocation0]]
  $region114: #{tpu_custom_call.1} parent=0
    _
  %s23 = ssub.s32 1, %s21
  %s24 = scalar_select 0, %s23, %s21
  %v25 = vstv %s5
  %26 = vst [vmem:[#allocation2] sm:$0x1] %v25
  $region1: #{tpu_custom_call.1} parent=0
    #allocation3 [shape = 'u8[16384]{0}', space=vmem, size = 0x4000, scoped, tag = 'input window, operand 0, single buffered']
    #allocation4 [shape = 's32[1]{0}', space=sflag, size = 0x4, scoped, tag = 'scoped memory for tpu_custom_call.1']
    #allocation5 [shape = 's32[1]{0}', space=sflag, size = 0x4, scoped, tag = 'scoped memory for tpu_custom_call.1']
    #allocation6 [shape = 'u8[4096]{0}', space=vmem, size = 0x1000, scoped, tag = 'input window, operand 1, single buffered']
    #allocation7 [shape = 's32[1]{0}', space=sflag, size = 0x4, scoped, tag = 'scoped memory for tpu_custom_call.1']
    #allocation8 [shape = 'u8[32768]{0}', space=vmem, size = 0x8000, scoped, tag = 'input window, operand 2, single buffered']
    #allocation9 [shape = 'u8[32768]{0}', space=vmem, size = 0x8000, scoped, tag = 'input window, operand 10, single buffered']
    #allocation10 [shape = 's32[1]{0}', space=sflag, size = 0x4, scoped, tag = 'scoped memory for tpu_custom_call.1']
    #allocation11 [shape = 'u8[32768]{0}', space=vmem, size = 0x8000, scoped, tag = 'input window, operand 14, single buffered']
    #allocation12 [shape = 'u8[32768]{0}', space=vmem, size = 0x8000, scoped, tag = 'input window, operand 16, single buffered']
    #allocation13 [shape = 's32[1]{0}', space=sflag, size = 0x4, scoped, tag = 'scoped memory for tpu_custom_call.1']
    #allocation14 [shape = 'u8[4096]{0}', space=vmem, size = 0x1000, scoped, tag = 'output window, operand 0, single buffered']
    #allocation15 [shape = 'u8[4096]{0}', space=vmem, size = 0x1000, scoped, tag = 'output window, operand 1, single buffered']
    #allocation16 [shape = 's32[1]{0}', space=sflag, size = 0x4, scoped, tag = 'scoped memory for tpu_custom_call.1']
    %27 = vsyncpa [#allocation4], 0
    %28 = vsyncpa [#allocation7], 0
    %29 = vsyncpa [#allocation10], 0
    %30 = vsyncpa [#allocation13], 0
    %31 = vsyncpa [#allocation5], 0
    %32 = vsyncpa [#allocation16], 0
    // Predicated region
    $region2: #{tpu_custom_call.1} parent=1 // pred_check
      _
    $region3: #{tpu_custom_call.1} parent=1 // pred_check_branch
      %34 = sbr.rel (0) target = $region5
    $region4: #{tpu_custom_call.1} parent=1 // pred_region
      %36 = vsyncadd [#allocation4], 0
      %s37 = sshll.u32 %s0, 4
      %s38 = int_to_ptr.hbm [resolvable:$true] %s37
      %s39 = sshll.u32 [#allocation3], 4
      %s40 = int_to_ptr.vmem [resolvable:$true] %s39
      %45 = dma.hbm_to_vmem [thread:$0]  %s38, 512, %s40, [#allocation4], 64, 64, 4
    $region5: #{tpu_custom_call.1} parent=1 // pred_fallthru
      _
    // Predicated region
    $region6: #{tpu_custom_call.1} parent=1 // pred_check
      _
    $region7: #{tpu_custom_call.1} parent=1 // pred_check_branch
      %47 = sbr.rel (0) target = $region9
    $region8: #{tpu_custom_call.1} parent=1 // pred_region
      %49 = vsyncadd [#allocation7], 0
      %s51 = sshll.u32 %s1, 4
      %s52 = int_to_ptr.hbm [resolvable:$true] %s51
      %s53 = sshll.u32 [#allocation6], 4
      %s54 = int_to_ptr.vmem [resolvable:$true] %s53
      %56 = dma.hbm_to_vmem [thread:$0]  %s52, 128, %s54, [#allocation7]
    $region9: #{tpu_custom_call.1} parent=1 // pred_fallthru
      _
    // Predicated region
    $region10: #{tpu_custom_call.1} parent=1 // pred_check
      _
    $region11: #{tpu_custom_call.1} parent=1 // pred_check_branch
      %58 = sbr.rel (0) target = $region13
    $region12: #{tpu_custom_call.1} parent=1 // pred_region
      %60 = vsyncadd [#allocation7], 0
      %s61 = sshll.u32 %s2, 4
      %s62 = int_to_ptr.hbm [resolvable:$true] %s61
      %s63 = sshll.u32 [#allocation8], 4
      %s64 = int_to_ptr.vmem [resolvable:$true] %s63
      %69 = dma.hbm_to_vmem [thread:$0]  %s62, 1024, %s64, [#allocation7], 64, 64, 4
    $region13: #{tpu_custom_call.1} parent=1 // pred_fallthru
      _
    // Predicated region
    $region14: #{tpu_custom_call.1} parent=1 // pred_check
      _
    $region15: #{tpu_custom_call.1} parent=1 // pred_check_branch
      %71 = sbr.rel (0) target = $region17
    $region16: #{tpu_custom_call.1} parent=1 // pred_region
      _
    $region17: #{tpu_custom_call.1} parent=1 // pred_fallthru
      _
    // Predicated region
    $region18: #{tpu_custom_call.1} parent=1 // pred_check
      _
    $region19: #{tpu_custom_call.1} parent=1 // pred_check_branch
      %73 = sbr.rel (0) target = $region21
    $region20: #{tpu_custom_call.1} parent=1 // pred_region
      _
    $region21: #{tpu_custom_call.1} parent=1 // pred_fallthru
      _
    // Predicated region
    $region22: #{tpu_custom_call.1} parent=1 // pred_check
      _
    $region23: #{tpu_custom_call.1} parent=1 // pred_check_branch
      %75 = sbr.rel (0) target = $region25
    $region24: #{tpu_custom_call.1} parent=1 // pred_region
      _
    $region25: #{tpu_custom_call.1} parent=1 // pred_fallthru
      _
    // Predicated region
    $region26: #{tpu_custom_call.1} parent=1 // pred_check
      _
    $region27: #{tpu_custom_call.1} parent=1 // pred_check_branch
      %77 = sbr.rel (0) target = $region29
    $region28: #{tpu_custom_call.1} parent=1 // pred_region
      _
    $region29: #{tpu_custom_call.1} parent=1 // pred_fallthru
      _
    // Predicated region
    $region30: #{tpu_custom_call.1} parent=1 // pred_check
      _
    $region31: #{tpu_custom_call.1} parent=1 // pred_check_branch
      %79 = sbr.rel (0) target = $region33
    $region32: #{tpu_custom_call.1} parent=1 // pred_region
      _
    $region33: #{tpu_custom_call.1} parent=1 // pred_fallthru
      _
    // Predicated region
    $region34: #{tpu_custom_call.1} parent=1 // pred_check
      _
    $region35: #{tpu_custom_call.1} parent=1 // pred_check_branch
      %81 = sbr.rel (0) target = $region37
    $region36: #{tpu_custom_call.1} parent=1 // pred_region
      _
    $region37: #{tpu_custom_call.1} parent=1 // pred_fallthru
      _
    // Predicated region
    $region38: #{tpu_custom_call.1} parent=1 // pred_check
      _
    $region39: #{tpu_custom_call.1} parent=1 // pred_check_branch
      %83 = sbr.rel (0) target = $region41
    $region40: #{tpu_custom_call.1} parent=1 // pred_region
      _
    $region41: #{tpu_custom_call.1} parent=1 // pred_fallthru
      _
    // Predicated region
    $region42: #{tpu_custom_call.1} parent=1 // pred_check
      _
    $region43: #{tpu_custom_call.1} parent=1 // pred_check_branch
      %85 = sbr.rel (0) target = $region45
    $region44: #{tpu_custom_call.1} parent=1 // pred_region
      %87 = vsyncadd [#allocation10], 0
      %s88 = sshll.u32 %s10, 4
      %s89 = int_to_ptr.hbm [resolvable:$true] %s88
      %s90 = sshll.u32 [#allocation9], 4
      %s91 = int_to_ptr.vmem [resolvable:$true] %s90
      %96 = dma.hbm_to_vmem [thread:$0]  %s89, 1024, %s91, [#allocation10], 64, 64, 4
    $region45: #{tpu_custom_call.1} parent=1 // pred_fallthru
      _
    // Predicated region
    $region46: #{tpu_custom_call.1} parent=1 // pred_check
      _
    $region47: #{tpu_custom_call.1} parent=1 // pred_check_branch
      %98 = sbr.rel (0) target = $region49
    $region48: #{tpu_custom_call.1} parent=1 // pred_region
      _
    $region49: #{tpu_custom_call.1} parent=1 // pred_fallthru
      _
    // Predicated region
    $region50: #{tpu_custom_call.1} parent=1 // pred_check
      _
    $region51: #{tpu_custom_call.1} parent=1 // pred_check_branch
      %100 = sbr.rel (0) target = $region53
    $region52: #{tpu_custom_call.1} parent=1 // pred_region
      _
    $region53: #{tpu_custom_call.1} parent=1 // pred_fallthru
      _
    // Predicated region
    $region54: #{tpu_custom_call.1} parent=1 // pred_check
      _
    $region55: #{tpu_custom_call.1} parent=1 // pred_check_branch
      %102 = sbr.rel (0) target = $region57
    $region56: #{tpu_custom_call.1} parent=1 // pred_region
      _
    $region57: #{tpu_custom_call.1} parent=1 // pred_fallthru
      _
    // Predicated region
    $region58: #{tpu_custom_call.1} parent=1 // pred_check
      _
    $region59: #{tpu_custom_call.1} parent=1 // pred_check_branch
      %104 = sbr.rel (0) target = $region61
    $region60: #{tpu_custom_call.1} parent=1 // pred_region
      %106 = vsyncadd [#allocation10], 0
      %s107 = sshll.u32 %s14, 4
      %s108 = int_to_ptr.hbm [resolvable:$true] %s107
      %s109 = sshll.u32 [#allocation11], 4
      %s110 = int_to_ptr.vmem [resolvable:$true] %s109
      %115 = dma.hbm_to_vmem [thread:$0]  %s108, 1024, %s110, [#allocation10], 64, 64, 4
    $region61: #{tpu_custom_call.1} parent=1 // pred_fallthru
      _
    // Predicated region
    $region62: #{tpu_custom_call.1} parent=1 // pred_check
      _
    $region63: #{tpu_custom_call.1} parent=1 // pred_check_branch
      %117 = sbr.rel (0) target = $region65
    $region64: #{tpu_custom_call.1} parent=1 // pred_region
      _
    $region65: #{tpu_custom_call.1} parent=1 // pred_fallthru
      _
    // Predicated region
    $region66: #{tpu_custom_call.1} parent=1 // pred_check
      _
    $region67: #{tpu_custom_call.1} parent=1 // pred_check_branch
      %119 = sbr.rel (0) target = $region69
    $region68: #{tpu_custom_call.1} parent=1 // pred_region
      %121 = vsyncadd [#allocation13], 0
      %s122 = sshll.u32 %s16, 4
      %s123 = int_to_ptr.hbm [resolvable:$true] %s122
      %s124 = sshll.u32 [#allocation12], 4
      %s125 = int_to_ptr.vmem [resolvable:$true] %s124
      %130 = dma.hbm_to_vmem [thread:$0]  %s123, 1024, %s125, [#allocation13], 64, 64, 4
    $region69: #{tpu_custom_call.1} parent=1 // pred_fallthru
      _
    // Predicated region
    $region70: #{tpu_custom_call.1} parent=1 // pred_check
      _
    $region71: #{tpu_custom_call.1} parent=1 // pred_check_branch
      %132 = sbr.rel (0) target = $region73
    $region72: #{tpu_custom_call.1} parent=1 // pred_region
      _
    $region73: #{tpu_custom_call.1} parent=1 // pred_fallthru
      _
    // Predicated region
    $region74: #{tpu_custom_call.1} parent=1 // pred_check
      _
    $region75: #{tpu_custom_call.1} parent=1 // pred_check_branch
      %134 = sbr.rel (0) target = $region77
    $region76: #{tpu_custom_call.1} parent=1 // pred_region
      %136 = dma.done [#allocation4], 512
    $region77: #{tpu_custom_call.1} parent=1 // pred_fallthru
      _
    // Predicated region
    $region78: #{tpu_custom_call.1} parent=1 // pred_check
      _
    $region79: #{tpu_custom_call.1} parent=1 // pred_check_branch
      %138 = sbr.rel (0) target = $region81
    $region80: #{tpu_custom_call.1} parent=1 // pred_region
      %140 = dma.done [#allocation7], 128
    $region81: #{tpu_custom_call.1} parent=1 // pred_fallthru
      _
    // Predicated region
    $region82: #{tpu_custom_call.1} parent=1 // pred_check
      _
    $region83: #{tpu_custom_call.1} parent=1 // pred_check_branch
      %142 = sbr.rel (0) target = $region85
    $region84: #{tpu_custom_call.1} parent=1 // pred_region
      %144 = dma.done [#allocation7], 1024
    $region85: #{tpu_custom_call.1} parent=1 // pred_fallthru
      _
    // Predicated region
    $region86: #{tpu_custom_call.1} parent=1 // pred_check
      _
    $region87: #{tpu_custom_call.1} parent=1 // pred_check_branch
      %146 = sbr.rel (0) target = $region89
    $region88: #{tpu_custom_call.1} parent=1 // pred_region
      %148 = dma.done [#allocation10], 1024
    $region89: #{tpu_custom_call.1} parent=1 // pred_fallthru
      _
    // Predicated region
    $region90: #{tpu_custom_call.1} parent=1 // pred_check
      _
    $region91: #{tpu_custom_call.1} parent=1 // pred_check_branch
      %150 = sbr.rel (0) target = $region93
    $region92: #{tpu_custom_call.1} parent=1 // pred_region
      %152 = dma.done [#allocation10], 1024
    $region93: #{tpu_custom_call.1} parent=1 // pred_fallthru
      _
    // Predicated region
    $region94: #{tpu_custom_call.1} parent=1 // pred_check
      _
    $region95: #{tpu_custom_call.1} parent=1 // pred_check_branch
      %154 = sbr.rel (0) target = $region97
    $region96: #{tpu_custom_call.1} parent=1 // pred_region
      %156 = dma.done [#allocation13], 1024
    $region97: #{tpu_custom_call.1} parent=1 // pred_fallthru
      _
    %v157 = vld [vmem:[#allocation3] sm:$0xf]
    %v158 = vld [vmem:[#allocation3 + $0x4] sm:$0xf]
    %v159 = vld [vmem:[#allocation3 + $0x8] sm:$0xf]
    %v160 = vld [vmem:[#allocation3 + $0xc] sm:$0xf]
    %v161 = vld [vmem:[#allocation3 + $0x10] sm:$0xf]
    %v162 = vld [vmem:[#allocation3 + $0x14] sm:$0xf]
    %v163 = vld [vmem:[#allocation3 + $0x18] sm:$0xf]
    %v164 = vld [vmem:[#allocation3 + $0x1c] sm:$0xf]
    %v165 = vld [vmem:[#allocation8] sm:$0xf]
    %v166 = vld [vmem:[#allocation8 + $0x4] sm:$0xf]
    %v167 = vld [vmem:[#allocation8 + $0x8] sm:$0xf]
    %v168 = vld [vmem:[#allocation8 + $0xc] sm:$0xf]
    %v169 = vld [vmem:[#allocation8 + $0x10] sm:$0xf]
    %v170 = vld [vmem:[#allocation8 + $0x14] sm:$0xf]
    %v171 = vld [vmem:[#allocation8 + $0x18] sm:$0xf]
    %v172 = vld [vmem:[#allocation8 + $0x1c] sm:$0xf]
    %v173 = vld [vmem:[#allocation8 + $0x20] sm:$0xf]
    %v174 = vld [vmem:[#allocation8 + $0x24] sm:$0xf]
    %v175 = vld [vmem:[#allocation8 + $0x28] sm:$0xf]
    %v176 = vld [vmem:[#allocation8 + $0x2c] sm:$0xf]
    %v177 = vld [vmem:[#allocation8 + $0x30] sm:$0xf]
    %v178 = vld [vmem:[#allocation8 + $0x34] sm:$0xf]
    %v179 = vld [vmem:[#allocation8 + $0x38] sm:$0xf]
    %v180 = vld [vmem:[#allocation8 + $0x3c] sm:$0xf]
    %v181 = vld [vmem:[%s3] sm:$0x1]
    %v183 = vperm.slane %v181, 0
    %v193 = vunpack.c.l.b16 %v157
    %v194 = vunpack.c.l.b16 %v158
    %v195 = vunpack.c.l.b16 %v159
    %v196 = vunpack.c.l.b16 %v160
    %v197 = vunpack.c.l.b16 %v161
    %v198 = vunpack.c.l.b16 %v162
    %v199 = vunpack.c.l.b16 %v163
    %v200 = vunpack.c.l.b16 %v164
    %v201 = vpack.c.b16 %v194, %v193
    %v202 = vpack.c.b16 %v196, %v195
    %v203 = vpack.c.b16 %v198, %v197
    %v204 = vpack.c.b16 %v200, %v199
    %v225 = vunpack.c.l.b16 %v165
    %v226 = vunpack.c.l.b16 %v166
    %v227 = vunpack.c.l.b16 %v167
    %v228 = vunpack.c.l.b16 %v168
    %v229 = vunpack.c.l.b16 %v169
    %v230 = vunpack.c.l.b16 %v170
    %v231 = vunpack.c.l.b16 %v171
    %v232 = vunpack.c.l.b16 %v172
    %v233 = vunpack.c.l.b16 %v173
    %v234 = vunpack.c.l.b16 %v174
    %v235 = vunpack.c.l.b16 %v175
    %v236 = vunpack.c.l.b16 %v176
    %v237 = vunpack.c.l.b16 %v177
    %v238 = vunpack.c.l.b16 %v178
    %v239 = vunpack.c.l.b16 %v179
    %v240 = vunpack.c.l.b16 %v180
    %v241 = vpack.c.b16 %v226, %v225
    %v242 = vpack.c.b16 %v228, %v227
    %v243 = vpack.c.b16 %v230, %v229
    %v244 = vpack.c.b16 %v232, %v231
    %v245 = vpack.c.b16 %v234, %v233
    %v246 = vpack.c.b16 %v236, %v235
    %v247 = vpack.c.b16 %v238, %v237
    %v248 = vpack.c.b16 %v240, %v239
    %257 = vmatpush.bf16.msra.mxu0 %v248
    %258 = vmatpush.bf16.msra.mxu0 %v247
    %259 = vmatpush.bf16.msra.mxu0 %v246
    %260 = vmatpush.bf16.msra.mxu0 %v245
    %261 = vmatpush.bf16.msra.mxu0 %v244
    %262 = vmatpush.bf16.msra.mxu0 %v243
    %263 = vmatpush.bf16.msra.mxu0 %v242
    %264 = vmatpush.bf16.msra.mxu0 %v241
    %265 = vmatmul.bf16.gmra.mxu0 %v201
    %v266 = vpop.f32.mrf.mxu0
    %v267 = vadd.f32 %v183, %v266
    %v268 = vpop.f32.mrf.mxu0
    %v269 = vadd.f32 %v183, %v268
    %270 = vmatmul.bf16.gmra.mxu0 %v202
    %v271 = vpop.f32.mrf.mxu0
    %v272 = vadd.f32 %v183, %v271
    %v273 = vpop.f32.mrf.mxu0
    %v274 = vadd.f32 %v183, %v273
    %275 = vmatmul.bf16.gmra.mxu0 %v203
    %v276 = vpop.f32.mrf.mxu0
    %v277 = vadd.f32 %v183, %v276
    %v278 = vpop.f32.mrf.mxu0
    %v279 = vadd.f32 %v183, %v278
    %280 = vmatmul.bf16.gmra.mxu0 %v204
    %v281 = vpop.f32.mrf.mxu0
    %v282 = vadd.f32 %v183, %v281
    %v283 = vpop.f32.mrf.mxu0
    %v284 = vadd.f32 %v183, %v283
    %285 = vdwg.mxu0
    %v286 = vld [vmem:[%s4] sm:$0x1]
    %v288 = vperm.slane %v286, 0
    %v290 = vmul.f32 %v267, %v288
    %v291 = vmul.f32 %v269, %v288
    %v292 = vmul.f32 %v272, %v288
    %v293 = vmul.f32 %v274, %v288
    %v294 = vmul.f32 %v277, %v288
    %v295 = vmul.f32 %v279, %v288
    %v296 = vmul.f32 %v282, %v288
    %v297 = vmul.f32 %v284, %v288
    %298 = vadd.xlane.f32.xlu0 %v290
    %v299 = vpop.xlane.xlu0 %298
    %300 = vadd.xlane.f32.xlu0 %v291
    %v301 = vpop.xlane.xlu0 %300
    %302 = vadd.xlane.f32.xlu0 %v292
    %v303 = vpop.xlane.xlu0 %302
    %304 = vadd.xlane.f32.xlu0 %v293
    %v305 = vpop.xlane.xlu0 %304
    %306 = vadd.xlane.f32.xlu0 %v294
    %v307 = vpop.xlane.xlu0 %306
    %308 = vadd.xlane.f32.xlu0 %v295
    %v309 = vpop.xlane.xlu0 %308
    %310 = vadd.xlane.f32.xlu0 %v296
    %v311 = vpop.xlane.xlu0 %310
    %312 = vadd.xlane.f32.xlu0 %v297
    %v313 = vpop.xlane.xlu0 %312
    %v314 = vld [vmem:[#allocation2] sm:$0x1]
    %v316 = vperm.slane %v314, 0
    %317 = vset.pattern.permute.xlu0 0
    %318 = vperm.xlu0 %317, %v316
    %v319 = vpop.permute.xlu0 %318
    %v321 = vadd.f32 %v299, %v319
    %v322 = vadd.f32 %v301, %v319
    %v323 = vadd.f32 %v303, %v319
    %v324 = vadd.f32 %v305, %v319
    %v325 = vadd.f32 %v307, %v319
    %v326 = vadd.f32 %v309, %v319
    %v327 = vadd.f32 %v311, %v319
    %v328 = vadd.f32 %v313, %v319
    %v329 = vld [vmem:[#allocation6] sm:$0xff]
    %v331 = vperm.slane %v329, 0
    %v332 = vlaneseq
    %v333 = vshrl.u32 %v332, 7
    %335 = vset.pattern.permute.xlu0 %v333
    %336 = vperm.xlu0 %335, %v331
    %v337 = vpop.permute.xlu0 %336
    %v338 = vperm.slane %v329, 1
    %v339 = vlaneseq
    %v340 = vshrl.u32 %v339, 7
    %342 = vset.pattern.permute.xlu0 %v340
    %343 = vperm.xlu0 %342, %v338
    %v344 = vpop.permute.xlu0 %343
    %v345 = vperm.slane %v329, 2
    %v346 = vlaneseq
    %v347 = vshrl.u32 %v346, 7
    %349 = vset.pattern.permute.xlu0 %v347
    %350 = vperm.xlu0 %349, %v345
    %v351 = vpop.permute.xlu0 %350
    %v352 = vperm.slane %v329, 3
    %v353 = vlaneseq
    %v354 = vshrl.u32 %v353, 7
    %356 = vset.pattern.permute.xlu0 %v354
    %357 = vperm.xlu0 %356, %v352
    %v358 = vpop.permute.xlu0 %357
    %v359 = vperm.slane %v329, 4
    %v360 = vlaneseq
    %v361 = vshrl.u32 %v360, 7
    %363 = vset.pattern.permute.xlu0 %v361
    %364 = vperm.xlu0 %363, %v359
    %v365 = vpop.permute.xlu0 %364
    %v366 = vperm.slane %v329, 5
    %v367 = vlaneseq
    %v368 = vshrl.u32 %v367, 7
    %370 = vset.pattern.permute.xlu0 %v368
    %371 = vperm.xlu0 %370, %v366
    %v372 = vpop.permute.xlu0 %371
    %v373 = vperm.slane %v329, 6
    %v374 = vlaneseq
    %v375 = vshrl.u32 %v374, 7
    %377 = vset.pattern.permute.xlu0 %v375
    %378 = vperm.xlu0 %377, %v373
    %v379 = vpop.permute.xlu0 %378
    %v380 = vperm.slane %v329, 7
    %v381 = vlaneseq
    %v382 = vshrl.u32 %v381, 7
    %384 = vset.pattern.permute.xlu0 %v382
    %385 = vperm.xlu0 %384, %v380
    %v386 = vpop.permute.xlu0 %385
    %v395 = vadd.f32 %v321, %v337
    %v396 = vadd.f32 %v322, %v344
    %v397 = vadd.f32 %v323, %v351
    %v398 = vadd.f32 %v324, %v358
    %v399 = vadd.f32 %v325, %v365
    %v400 = vadd.f32 %v326, %v372
    %v401 = vadd.f32 %v327, %v379
    %v402 = vadd.f32 %v328, %v386
    %411 = vset.pattern.permute.xlu0 0
    %412 = vperm.xlu0 %411, %v395
    %v413 = vpop.permute.xlu0 %412
    %414 = vset.pattern.permute.xlu0 0
    %415 = vperm.xlu0 %414, %v396
    %v416 = vpop.permute.xlu0 %415
    %417 = vset.pattern.permute.xlu0 0
    %418 = vperm.xlu0 %417, %v397
    %v419 = vpop.permute.xlu0 %418
    %420 = vset.pattern.permute.xlu0 0
    %421 = vperm.xlu0 %420, %v398
    %v422 = vpop.permute.xlu0 %421
    %423 = vset.pattern.permute.xlu0 0
    %424 = vperm.xlu0 %423, %v399
    %v425 = vpop.permute.xlu0 %424
    %426 = vset.pattern.permute.xlu0 0
    %427 = vperm.xlu0 %426, %v400
    %v428 = vpop.permute.xlu0 %427
    %429 = vset.pattern.permute.xlu0 0
    %430 = vperm.xlu0 %429, %v401
    %v431 = vpop.permute.xlu0 %430
    %432 = vset.pattern.permute.xlu0 0
    %433 = vperm.xlu0 %432, %v402
    %v434 = vpop.permute.xlu0 %433
    %v435 = vlaneseq
    %v436 = vand.u32 %v435, 127
    %v437 = vperm.slane %v413, %v436
    %v438 = vperm.slane %v416, %v436
    %v439 = vperm.slane %v419, %v436
    %v440 = vperm.slane %v422, %v436
    %v441 = vperm.slane %v425, %v436
    %v442 = vperm.slane %v428, %v436
    %v443 = vperm.slane %v431, %v436
    %v444 = vperm.slane %v434, %v436
    %vm445 = vcmask 1041409
    %v446 = vsel %vm445, %v438, %v437
    %vm447 = vcmask 1042434
    %v448 = vsel %vm447, %v439, %v446
    %vm449 = vcmask 1043459
    %v450 = vsel %vm449, %v440, %v448
    %vm451 = vcmask 1044484
    %v452 = vsel %vm451, %v441, %v450
    %vm453 = vcmask 1045509
    %v454 = vsel %vm453, %v442, %v452
    %vm455 = vcmask 1046534
    %v456 = vsel %vm455, %v443, %v454
    %vm457 = vcmask 1047559
    %v458 = vsel %vm457, %v444, %v456
    %vm460 = vcmask 64512
    %v461 = vsel %vm460, %v458, -inf
    %462 = vmax.xlane.f32.xlu0 %v461
    %v463 = vpop.xlane.xlu0 %462
    %v465 = vperm.slane %v463, 0
    %v466 = vperm.slane %v463, 1
    %v467 = vperm.slane %v463, 2
    %v468 = vperm.slane %v463, 3
    %v469 = vperm.slane %v463, 4
    %v470 = vperm.slane %v463, 5
    %v471 = vperm.slane %v463, 6
    %v472 = vperm.slane %v463, 7
    %v481 = vsub.f32 %v395, %v465
    %v482 = vsub.f32 %v396, %v466
    %v483 = vsub.f32 %v397, %v467
    %v484 = vsub.f32 %v398, %v468
    %v485 = vsub.f32 %v399, %v469
    %v486 = vsub.f32 %v400, %v470
    %v487 = vsub.f32 %v401, %v471
    %v488 = vsub.f32 %v402, %v472
    %v489 = vmul.f32 %v481, 1.442695
    %v490 = vpow.pop %v489
    %v491 = vmul.f32 %v482, 1.442695
    %v492 = vpow.pop %v491
    %v493 = vmul.f32 %v483, 1.442695
    %v494 = vpow.pop %v493
    %v495 = vmul.f32 %v484, 1.442695
    %v496 = vpow.pop %v495
    %v497 = vmul.f32 %v485, 1.442695
    %v498 = vpow.pop %v497
    %v499 = vmul.f32 %v486, 1.442695
    %v500 = vpow.pop %v499
    %v501 = vmul.f32 %v487, 1.442695
    %v502 = vpow.pop %v501
    %v503 = vmul.f32 %v488, 1.442695
    %v504 = vpow.pop %v503
    %513 = vset.pattern.permute.xlu0 0
    %514 = vperm.xlu0 %513, %v490
    %v515 = vpop.permute.xlu0 %514
    %516 = vset.pattern.permute.xlu0 0
    %517 = vperm.xlu0 %516, %v492
    %v518 = vpop.permute.xlu0 %517
    %519 = vset.pattern.permute.xlu0 0
    %520 = vperm.xlu0 %519, %v494
    %v521 = vpop.permute.xlu0 %520
    %522 = vset.pattern.permute.xlu0 0
    %523 = vperm.xlu0 %522, %v496
    %v524 = vpop.permute.xlu0 %523
    %525 = vset.pattern.permute.xlu0 0
    %526 = vperm.xlu0 %525, %v498
    %v527 = vpop.permute.xlu0 %526
    %528 = vset.pattern.permute.xlu0 0
    %529 = vperm.xlu0 %528, %v500
    %v530 = vpop.permute.xlu0 %529
    %531 = vset.pattern.permute.xlu0 0
    %532 = vperm.xlu0 %531, %v502
    %v533 = vpop.permute.xlu0 %532
    %534 = vset.pattern.permute.xlu0 0
    %535 = vperm.xlu0 %534, %v504
    %v536 = vpop.permute.xlu0 %535
    %v537 = vperm.slane %v515, %v436
    %v538 = vperm.slane %v518, %v436
    %v539 = vperm.slane %v521, %v436
    %v540 = vperm.slane %v524, %v436
    %v541 = vperm.slane %v527, %v436
    %v542 = vperm.slane %v530, %v436
    %v543 = vperm.slane %v533, %v436
    %v544 = vperm.slane %v536, %v436
    %v545 = vsel %vm445, %v538, %v537
    %v546 = vsel %vm447, %v539, %v545
    %v547 = vsel %vm449, %v540, %v546
    %v548 = vsel %vm451, %v541, %v547
    %v549 = vsel %vm453, %v542, %v548
    %v550 = vsel %vm455, %v543, %v549
    %v551 = vsel %vm457, %v544, %v550
    %v553 = vsel %vm460, %v551, 0.0
    %554 = vadd.xlane.f32.xlu0 %v553
    %v555 = vpop.xlane.xlu0 %554
    %v556 = vrcp.pop %v555
    %v558 = vperm.slane %v556, 0
    %v559 = vperm.slane %v556, 1
    %v560 = vperm.slane %v556, 2
    %v561 = vperm.slane %v556, 3
    %v562 = vperm.slane %v556, 4
    %v563 = vperm.slane %v556, 5
    %v564 = vperm.slane %v556, 6
    %v565 = vperm.slane %v556, 7
    %v574 = vmul.f32 %v490, %v558
    %v575 = vmul.f32 %v492, %v559
    %v576 = vmul.f32 %v494, %v560
    %v577 = vmul.f32 %v496, %v561
    %v578 = vmul.f32 %v498, %v562
    %v579 = vmul.f32 %v500, %v563
    %v580 = vmul.f32 %v502, %v564
    %v581 = vmul.f32 %v504, %v565
    %583 = vset.pattern.permute.xlu0 0
    %584 = vperm.xlu0 %583, %v574
    %v585 = vpop.permute.xlu0 %584
    %588 = vset.pattern.permute.xlu0 0
    %589 = vperm.xlu0 %588, %v575
    %v590 = vpop.permute.xlu0 %589
    %593 = vset.pattern.permute.xlu0 0
    %594 = vperm.xlu0 %593, %v576
    %v595 = vpop.permute.xlu0 %594
    %598 = vset.pattern.permute.xlu0 0
    %599 = vperm.xlu0 %598, %v577
    %v600 = vpop.permute.xlu0 %599
    %603 = vset.pattern.permute.xlu0 0
    %604 = vperm.xlu0 %603, %v578
    %v605 = vpop.permute.xlu0 %604
    %608 = vset.pattern.permute.xlu0 0
    %609 = vperm.xlu0 %608, %v579
    %v610 = vpop.permute.xlu0 %609
    %613 = vset.pattern.permute.xlu0 0
    %614 = vperm.xlu0 %613, %v580
    %v615 = vpop.permute.xlu0 %614
    %618 = vset.pattern.permute.xlu0 0
    %619 = vperm.xlu0 %618, %v581
    %v620 = vpop.permute.xlu0 %619
    %v622 = vmul.f32 %v585, %v267
    %v623 = vmul.f32 %v590, %v269
    %v624 = vmul.f32 %v595, %v272
    %v625 = vmul.f32 %v600, %v274
    %v626 = vmul.f32 %v605, %v277
    %v627 = vmul.f32 %v610, %v279
    %v628 = vmul.f32 %v615, %v282
    %v629 = vmul.f32 %v620, %v284
    %v630 = vrot.slane %v622, 4
    %v631 = vadd.f32 %v622, %v630
    %v632 = vrot.slane %v631, 2
    %v633 = vadd.f32 %v631, %v632
    %v634 = vrot.slane %v633, 1
    %v635 = vadd.f32 %v633, %v634
    %v636 = vrot.slane %v623, 4
    %v637 = vadd.f32 %v623, %v636
    %v638 = vrot.slane %v637, 2
    %v639 = vadd.f32 %v637, %v638
    %v640 = vrot.slane %v639, 1
    %v641 = vadd.f32 %v639, %v640
    %v642 = vrot.slane %v624, 4
    %v643 = vadd.f32 %v624, %v642
    %v644 = vrot.slane %v643, 2
    %v645 = vadd.f32 %v643, %v644
    %v646 = vrot.slane %v645, 1
    %v647 = vadd.f32 %v645, %v646
    %v648 = vrot.slane %v625, 4
    %v649 = vadd.f32 %v625, %v648
    %v650 = vrot.slane %v649, 2
    %v651 = vadd.f32 %v649, %v650
    %v652 = vrot.slane %v651, 1
    %v653 = vadd.f32 %v651, %v652
    %v654 = vrot.slane %v626, 4
    %v655 = vadd.f32 %v626, %v654
    %v656 = vrot.slane %v655, 2
    %v657 = vadd.f32 %v655, %v656
    %v658 = vrot.slane %v657, 1
    %v659 = vadd.f32 %v657, %v658
    %v660 = vrot.slane %v627, 4
    %v661 = vadd.f32 %v627, %v660
    %v662 = vrot.slane %v661, 2
    %v663 = vadd.f32 %v661, %v662
    %v664 = vrot.slane %v663, 1
    %v665 = vadd.f32 %v663, %v664
    %v666 = vrot.slane %v628, 4
    %v667 = vadd.f32 %v628, %v666
    %v668 = vrot.slane %v667, 2
    %v669 = vadd.f32 %v667, %v668
    %v670 = vrot.slane %v669, 1
    %v671 = vadd.f32 %v669, %v670
    %v672 = vrot.slane %v629, 4
    %v673 = vadd.f32 %v629, %v672
    %v674 = vrot.slane %v673, 2
    %v675 = vadd.f32 %v673, %v674
    %v676 = vrot.slane %v675, 1
    %v677 = vadd.f32 %v675, %v676
    %v678 = vld [vmem:[%s6] sm:$0x1]
    %v679 = vld [vmem:[%s7] sm:$0x1]
    %v688 = vsel %vm445, %v641, %v635
    %v689 = vsel %vm447, %v647, %v688
    %v690 = vsel %vm449, %v653, %v689
    %v691 = vsel %vm451, %v659, %v690
    %v692 = vsel %vm453, %v665, %v691
    %v693 = vsel %vm455, %v671, %v692
    %v694 = vsel %vm457, %v677, %v693
    %696 = vadd.xlane.f32.xlu0 %v694
    %v697 = vpop.xlane.xlu0 %696
    %v698 = vrcp.pop 128.0
    %v699 = vmul.f32 128.0, %v698
    %v700 = vsub.f32 1.0, %v699
    %v701 = vmul.f32 %v698, %v700
    %v702 = vadd.f32 %v698, %v701
    %vm703 = vweird.f32 %v698
    %v704 = vsel %vm703, %v698, %v702
    %v705 = vmul.f32 %v697, %v704
    %v707 = vrot.slane %v705, 1
    %v708 = vrot.slane %v705, 2
    %v709 = vrot.slane %v705, 3
    %v710 = vrot.slane %v705, 4
    %v711 = vrot.slane %v705, 5
    %v712 = vrot.slane %v705, 6
    %v713 = vrot.slane %v705, 7
    %v722 = vsub.f32 %v635, %v705
    %v723 = vsub.f32 %v641, %v707
    %v724 = vsub.f32 %v647, %v708
    %v725 = vsub.f32 %v653, %v709
    %v726 = vsub.f32 %v659, %v710
    %v727 = vsub.f32 %v665, %v711
    %v728 = vsub.f32 %v671, %v712
    %v729 = vsub.f32 %v677, %v713
    %v730 = vmul.f32 %v722, %v722
    %v731 = vmul.f32 %v723, %v723
    %v732 = vmul.f32 %v724, %v724
    %v733 = vmul.f32 %v725, %v725
    %v734 = vmul.f32 %v726, %v726
    %v735 = vmul.f32 %v727, %v727
    %v736 = vmul.f32 %v728, %v728
    %v737 = vmul.f32 %v729, %v729
    %v746 = vrot.slane %v731, 7
    %v747 = vsel %vm445, %v746, %v730
    %v748 = vrot.slane %v732, 6
    %v749 = vsel %vm447, %v748, %v747
    %v750 = vrot.slane %v733, 5
    %v751 = vsel %vm449, %v750, %v749
    %v752 = vrot.slane %v734, 4
    %v753 = vsel %vm451, %v752, %v751
    %v754 = vrot.slane %v735, 3
    %v755 = vsel %vm453, %v754, %v753
    %v756 = vrot.slane %v736, 2
    %v757 = vsel %vm455, %v756, %v755
    %v758 = vrot.slane %v737, 1
    %v759 = vsel %vm457, %v758, %v757
    %761 = vadd.xlane.f32.xlu0 %v759
    %v762 = vpop.xlane.xlu0 %761
    %v763 = vmul.f32 %v762, %v704
    %v764 = vadd.f32 %v763, 1e-05
    %v765 = vrsqrt.pop %v764
    %v766 = vmul.f32 %v765, %v764
    %v767 = vmul.f32 %v766, %v765
    %v768 = vmul.f32 0.5, %v767
    %v769 = vsub.f32 1.5, %v768
    %v770 = vmul.f32 %v765, %v769
    %vm771 = vweird.f32 %v764
    %vm772 = vweird.f32 %v765
    %vm773 = vmor %vm771, %vm772
    %v774 = vsel %vm773, %v765, %v770
    %v776 = vrot.slane %v774, 1
    %v777 = vrot.slane %v774, 2
    %v778 = vrot.slane %v774, 3
    %v779 = vrot.slane %v774, 4
    %v780 = vrot.slane %v774, 5
    %v781 = vrot.slane %v774, 6
    %v782 = vrot.slane %v774, 7
    %v791 = vmul.f32 %v722, %v774
    %v792 = vmul.f32 %v723, %v776
    %v793 = vmul.f32 %v724, %v777
    %v794 = vmul.f32 %v725, %v778
    %v795 = vmul.f32 %v726, %v779
    %v796 = vmul.f32 %v727, %v780
    %v797 = vmul.f32 %v728, %v781
    %v798 = vmul.f32 %v729, %v782
    %v800 = vperm.slane %v678, 0
    %v802 = vmul.f32 %v791, %v800
    %v803 = vmul.f32 %v792, %v800
    %v804 = vmul.f32 %v793, %v800
    %v805 = vmul.f32 %v794, %v800
    %v806 = vmul.f32 %v795, %v800
    %v807 = vmul.f32 %v796, %v800
    %v808 = vmul.f32 %v797, %v800
    %v809 = vmul.f32 %v798, %v800
    %v811 = vperm.slane %v679, 0
    %v813 = vadd.f32 %v802, %v811
    %v814 = vadd.f32 %v803, %v811
    %v815 = vadd.f32 %v804, %v811
    %v816 = vadd.f32 %v805, %v811
    %v817 = vadd.f32 %v806, %v811
    %v818 = vadd.f32 %v807, %v811
    %v819 = vadd.f32 %v808, %v811
    %v820 = vadd.f32 %v809, %v811
    %v821 = vld [vmem:[%s8] sm:$0x1]
    %v822 = vld [vmem:[%s9] sm:$0x1]
    %v831 = vrot.slane %v814, 7
    %v832 = vsel %vm445, %v831, %v813
    %v833 = vrot.slane %v815, 6
    %v834 = vsel %vm447, %v833, %v832
    %v835 = vrot.slane %v816, 5
    %v836 = vsel %vm449, %v835, %v834
    %v837 = vrot.slane %v817, 4
    %v838 = vsel %vm451, %v837, %v836
    %v839 = vrot.slane %v818, 3
    %v840 = vsel %vm453, %v839, %v838
    %v841 = vrot.slane %v819, 2
    %v842 = vsel %vm455, %v841, %v840
    %v843 = vrot.slane %v820, 1
    %v844 = vsel %vm457, %v843, %v842
    %846 = vadd.xlane.f32.xlu0 %v844
    %v847 = vpop.xlane.xlu0 %846
    %v848 = vmul.f32 %v847, %v704
    %v850 = vrot.slane %v848, 1
    %v851 = vrot.slane %v848, 2
    %v852 = vrot.slane %v848, 3
    %v853 = vrot.slane %v848, 4
    %v854 = vrot.slane %v848, 5
    %v855 = vrot.slane %v848, 6
    %v856 = vrot.slane %v848, 7
    %v865 = vsub.f32 %v813, %v848
    %v866 = vsub.f32 %v814, %v850
    %v867 = vsub.f32 %v815, %v851
    %v868 = vsub.f32 %v816, %v852
    %v869 = vsub.f32 %v817, %v853
    %v870 = vsub.f32 %v818, %v854
    %v871 = vsub.f32 %v819, %v855
    %v872 = vsub.f32 %v820, %v856
    %v873 = vmul.f32 %v865, %v865
    %v874 = vmul.f32 %v866, %v866
    %v875 = vmul.f32 %v867, %v867
    %v876 = vmul.f32 %v868, %v868
    %v877 = vmul.f32 %v869, %v869
    %v878 = vmul.f32 %v870, %v870
    %v879 = vmul.f32 %v871, %v871
    %v880 = vmul.f32 %v872, %v872
    %v889 = vrot.slane %v874, 7
    %v890 = vsel %vm445, %v889, %v873
    %v891 = vrot.slane %v875, 6
    %v892 = vsel %vm447, %v891, %v890
    %v893 = vrot.slane %v876, 5
    %v894 = vsel %vm449, %v893, %v892
    %v895 = vrot.slane %v877, 4
    %v896 = vsel %vm451, %v895, %v894
    %v897 = vrot.slane %v878, 3
    %v898 = vsel %vm453, %v897, %v896
    %v899 = vrot.slane %v879, 2
    %v900 = vsel %vm455, %v899, %v898
    %v901 = vrot.slane %v880, 1
    %v902 = vsel %vm457, %v901, %v900
    %904 = vadd.xlane.f32.xlu0 %v902
    %v905 = vpop.xlane.xlu0 %904
    %v906 = vmul.f32 %v905, %v704
    %v907 = vadd.f32 %v906, 1e-05
    %v908 = vrsqrt.pop %v907
    %v909 = vmul.f32 %v908, %v907
    %v910 = vmul.f32 %v909, %v908
    %v911 = vmul.f32 0.5, %v910
    %v912 = vsub.f32 1.5, %v911
    %v913 = vmul.f32 %v908, %v912
    %vm914 = vweird.f32 %v907
    %vm915 = vweird.f32 %v908
    %vm916 = vmor %vm914, %vm915
    %v917 = vsel %vm916, %v908, %v913
    %v919 = vrot.slane %v917, 1
    %v920 = vrot.slane %v917, 2
    %v921 = vrot.slane %v917, 3
    %v922 = vrot.slane %v917, 4
    %v923 = vrot.slane %v917, 5
    %v924 = vrot.slane %v917, 6
    %v925 = vrot.slane %v917, 7
    %v934 = vmul.f32 %v865, %v917
    %v935 = vmul.f32 %v866, %v919
    %v936 = vmul.f32 %v867, %v920
    %v937 = vmul.f32 %v868, %v921
    %v938 = vmul.f32 %v869, %v922
    %v939 = vmul.f32 %v870, %v923
    %v940 = vmul.f32 %v871, %v924
    %v941 = vmul.f32 %v872, %v925
    %v943 = vperm.slane %v821, 0
    %v945 = vmul.f32 %v934, %v943
    %v946 = vmul.f32 %v935, %v943
    %v947 = vmul.f32 %v936, %v943
    %v948 = vmul.f32 %v937, %v943
    %v949 = vmul.f32 %v938, %v943
    %v950 = vmul.f32 %v939, %v943
    %v951 = vmul.f32 %v940, %v943
    %v952 = vmul.f32 %v941, %v943
    %v954 = vperm.slane %v822, 0
    %v956 = vadd.f32 %v945, %v954
    %v957 = vadd.f32 %v946, %v954
    %v958 = vadd.f32 %v947, %v954
    %v959 = vadd.f32 %v948, %v954
    %v960 = vadd.f32 %v949, %v954
    %v961 = vadd.f32 %v950, %v954
    %v962 = vadd.f32 %v951, %v954
    %v963 = vadd.f32 %v952, %v954
    %v964 = vpack.c.bf16 %v956, %v956
    %v965 = vpack.c.bf16 %v957, %v957
    %v966 = vpack.c.bf16 %v958, %v958
    %v967 = vpack.c.bf16 %v959, %v959
    %v968 = vpack.c.bf16 %v960, %v960
    %v969 = vpack.c.bf16 %v961, %v961
    %v970 = vpack.c.bf16 %v962, %v962
    %v971 = vpack.c.bf16 %v963, %v963
    %v972 = vld [vmem:[#allocation9] sm:$0xf]
    %v973 = vld [vmem:[#allocation9 + $0x4] sm:$0xf]
    %v974 = vld [vmem:[#allocation9 + $0x8] sm:$0xf]
    %v975 = vld [vmem:[#allocation9 + $0xc] sm:$0xf]
    %v976 = vld [vmem:[#allocation9 + $0x10] sm:$0xf]
    %v977 = vld [vmem:[#allocation9 + $0x14] sm:$0xf]
    %v978 = vld [vmem:[#allocation9 + $0x18] sm:$0xf]
    %v979 = vld [vmem:[#allocation9 + $0x1c] sm:$0xf]
    %v980 = vld [vmem:[#allocation9 + $0x20] sm:$0xf]
    %v981 = vld [vmem:[#allocation9 + $0x24] sm:$0xf]
    %v982 = vld [vmem:[#allocation9 + $0x28] sm:$0xf]
    %v983 = vld [vmem:[#allocation9 + $0x2c] sm:$0xf]
    %v984 = vld [vmem:[#allocation9 + $0x30] sm:$0xf]
    %v985 = vld [vmem:[#allocation9 + $0x34] sm:$0xf]
    %v986 = vld [vmem:[#allocation9 + $0x38] sm:$0xf]
    %v987 = vld [vmem:[#allocation9 + $0x3c] sm:$0xf]
    %v988 = vld [vmem:[%s11] sm:$0x1]
    %v990 = vperm.slane %v988, 0
    %v1000 = vunpack.c.l.b16 %v964
    %v1001 = vunpack.c.l.b16 %v965
    %v1002 = vunpack.c.l.b16 %v966
    %v1003 = vunpack.c.l.b16 %v967
    %v1004 = vunpack.c.l.b16 %v968
    %v1005 = vunpack.c.l.b16 %v969
    %v1006 = vunpack.c.l.b16 %v970
    %v1007 = vunpack.c.l.b16 %v971
    %v1008 = vrot.slane %v1001, 7
    %v1009 = vsel %vm445, %v1008, %v1000
    %v1010 = vrot.slane %v1002, 6
    %v1011 = vsel %vm447, %v1010, %v1009
    %v1012 = vrot.slane %v1003, 5
    %v1013 = vsel %vm449, %v1012, %v1011
    %v1014 = vrot.slane %v1004, 4
    %v1015 = vsel %vm451, %v1014, %v1013
    %v1016 = vrot.slane %v1005, 3
    %v1017 = vsel %vm453, %v1016, %v1015
    %v1018 = vrot.slane %v1006, 2
    %v1019 = vsel %vm455, %v1018, %v1017
    %v1020 = vrot.slane %v1007, 1
    %v1021 = vsel %vm457, %v1020, %v1019
    %v1022 = vpack.c.b16 %v1021, %v1021
    %v1040 = vunpack.c.l.b16 %v972
    %v1041 = vunpack.c.l.b16 %v973
    %v1042 = vunpack.c.l.b16 %v974
    %v1043 = vunpack.c.l.b16 %v975
    %v1044 = vunpack.c.l.b16 %v976
    %v1045 = vunpack.c.l.b16 %v977
    %v1046 = vunpack.c.l.b16 %v978
    %v1047 = vunpack.c.l.b16 %v979
    %v1048 = vunpack.c.l.b16 %v980
    %v1049 = vunpack.c.l.b16 %v981
    %v1050 = vunpack.c.l.b16 %v982
    %v1051 = vunpack.c.l.b16 %v983
    %v1052 = vunpack.c.l.b16 %v984
    %v1053 = vunpack.c.l.b16 %v985
    %v1054 = vunpack.c.l.b16 %v986
    %v1055 = vunpack.c.l.b16 %v987
    %v1056 = vpack.c.b16 %v1041, %v1040
    %v1057 = vpack.c.b16 %v1043, %v1042
    %v1058 = vpack.c.b16 %v1045, %v1044
    %v1059 = vpack.c.b16 %v1047, %v1046
    %v1060 = vpack.c.b16 %v1049, %v1048
    %v1061 = vpack.c.b16 %v1051, %v1050
    %v1062 = vpack.c.b16 %v1053, %v1052
    %v1063 = vpack.c.b16 %v1055, %v1054
    %1072 = vmatpush.bf16.msra.mxu0 %v1063
    %1073 = vmatpush.bf16.msra.mxu0 %v1062
    %1074 = vmatpush.bf16.msra.mxu0 %v1061
    %1075 = vmatpush.bf16.msra.mxu0 %v1060
    %1076 = vmatpush.bf16.msra.mxu0 %v1059
    %1077 = vmatpush.bf16.msra.mxu0 %v1058
    %1078 = vmatpush.bf16.msra.mxu0 %v1057
    %1079 = vmatpush.bf16.msra.mxu0 %v1056
    %1080 = vmatmul.bf16.gmra.mxu0 %v1022
    %v1081 = vpop.f32.mrf.mxu0
    %v1082 = vadd.f32 %v990, %v1081
    %v1083 = vpop.f32.mrf.mxu0
    %1084 = vdwg.mxu0
    %v1085 = vmax.f32 %v1082, 0.0
    %v1086 = vld [vmem:[%s12] sm:$0x1]
    %v1087 = vld [vmem:[%s13] sm:$0x1]
    %1088 = vadd.xlane.f32.xlu0 %v1085
    %v1089 = vpop.xlane.xlu0 %1088
    %v1090 = vmul.f32 %v1089, %v704
    %v1091 = vsub.f32 %v1085, %v1090
    %v1092 = vmul.f32 %v1091, %v1091
    %1093 = vadd.xlane.f32.xlu0 %v1092
    %v1094 = vpop.xlane.xlu0 %1093
    %v1095 = vmul.f32 %v1094, %v704
    %v1096 = vadd.f32 %v1095, 1e-05
    %v1097 = vrsqrt.pop %v1096
    %v1098 = vmul.f32 %v1097, %v1096
    %v1099 = vmul.f32 %v1098, %v1097
    %v1100 = vmul.f32 0.5, %v1099
    %v1101 = vsub.f32 1.5, %v1100
    %v1102 = vmul.f32 %v1097, %v1101
    %vm1103 = vweird.f32 %v1096
    %vm1104 = vweird.f32 %v1097
    %vm1105 = vmor %vm1103, %vm1104
    %v1106 = vsel %vm1105, %v1097, %v1102
    %v1107 = vmul.f32 %v1091, %v1106
    %v1109 = vperm.slane %v1086, 0
    %v1111 = vmul.f32 %v1107, %v1109
    %v1113 = vperm.slane %v1087, 0
    %v1115 = vadd.f32 %v1111, %v1113
    %v1116 = vpack.c.bf16 %v1115, %v1115
    %v1117 = vld [vmem:[#allocation11] sm:$0xf]
    %v1118 = vld [vmem:[#allocation11 + $0x4] sm:$0xf]
    %v1119 = vld [vmem:[#allocation11 + $0x8] sm:$0xf]
    %v1120 = vld [vmem:[#allocation11 + $0xc] sm:$0xf]
    %v1121 = vld [vmem:[#allocation11 + $0x10] sm:$0xf]
    %v1122 = vld [vmem:[#allocation11 + $0x14] sm:$0xf]
    %v1123 = vld [vmem:[#allocation11 + $0x18] sm:$0xf]
    %v1124 = vld [vmem:[#allocation11 + $0x1c] sm:$0xf]
    %v1125 = vld [vmem:[#allocation11 + $0x20] sm:$0xf]
    %v1126 = vld [vmem:[#allocation11 + $0x24] sm:$0xf]
    %v1127 = vld [vmem:[#allocation11 + $0x28] sm:$0xf]
    %v1128 = vld [vmem:[#allocation11 + $0x2c] sm:$0xf]
    %v1129 = vld [vmem:[#allocation11 + $0x30] sm:$0xf]
    %v1130 = vld [vmem:[#allocation11 + $0x34] sm:$0xf]
    %v1131 = vld [vmem:[#allocation11 + $0x38] sm:$0xf]
    %v1132 = vld [vmem:[#allocation11 + $0x3c] sm:$0xf]
    %v1133 = vld [vmem:[%s15] sm:$0x1]
    %v1135 = vperm.slane %v1133, 0
    %v1153 = vunpack.c.l.b16 %v1117
    %v1154 = vunpack.c.l.b16 %v1118
    %v1155 = vunpack.c.l.b16 %v1119
    %v1156 = vunpack.c.l.b16 %v1120
    %v1157 = vunpack.c.l.b16 %v1121
    %v1158 = vunpack.c.l.b16 %v1122
    %v1159 = vunpack.c.l.b16 %v1123
    %v1160 = vunpack.c.l.b16 %v1124
    %v1161 = vunpack.c.l.b16 %v1125
    %v1162 = vunpack.c.l.b16 %v1126
    %v1163 = vunpack.c.l.b16 %v1127
    %v1164 = vunpack.c.l.b16 %v1128
    %v1165 = vunpack.c.l.b16 %v1129
    %v1166 = vunpack.c.l.b16 %v1130
    %v1167 = vunpack.c.l.b16 %v1131
    %v1168 = vunpack.c.l.b16 %v1132
    %v1169 = vpack.c.b16 %v1154, %v1153
    %v1170 = vpack.c.b16 %v1156, %v1155
    %v1171 = vpack.c.b16 %v1158, %v1157
    %v1172 = vpack.c.b16 %v1160, %v1159
    %v1173 = vpack.c.b16 %v1162, %v1161
    %v1174 = vpack.c.b16 %v1164, %v1163
    %v1175 = vpack.c.b16 %v1166, %v1165
    %v1176 = vpack.c.b16 %v1168, %v1167
    %1185 = vmatpush.bf16.msra.mxu0 %v1176
    %1186 = vmatpush.bf16.msra.mxu0 %v1175
    %1187 = vmatpush.bf16.msra.mxu0 %v1174
    %1188 = vmatpush.bf16.msra.mxu0 %v1173
    %1189 = vmatpush.bf16.msra.mxu0 %v1172
    %1190 = vmatpush.bf16.msra.mxu0 %v1171
    %1191 = vmatpush.bf16.msra.mxu0 %v1170
    %1192 = vmatpush.bf16.msra.mxu0 %v1169
    %1193 = vmatmul.bf16.gmra.mxu0 %v1116
    %v1194 = vpop.f32.mrf.mxu0
    %v1195 = vadd.f32 %v1135, %v1194
    %v1196 = vpop.f32.mrf.mxu0
    %1197 = vdwg.mxu0
    %v1198 = vmax.f32 %v1195, 0.0
    %v1199 = vpack.c.bf16 %v1198, %v1198
    %v1200 = vld [vmem:[#allocation12] sm:$0xf]
    %v1201 = vld [vmem:[#allocation12 + $0x4] sm:$0xf]
    %v1202 = vld [vmem:[#allocation12 + $0x8] sm:$0xf]
    %v1203 = vld [vmem:[#allocation12 + $0xc] sm:$0xf]
    %v1204 = vld [vmem:[#allocation12 + $0x10] sm:$0xf]
    %v1205 = vld [vmem:[#allocation12 + $0x14] sm:$0xf]
    %v1206 = vld [vmem:[#allocation12 + $0x18] sm:$0xf]
    %v1207 = vld [vmem:[#allocation12 + $0x1c] sm:$0xf]
    %v1208 = vld [vmem:[#allocation12 + $0x20] sm:$0xf]
    %v1209 = vld [vmem:[#allocation12 + $0x24] sm:$0xf]
    %v1210 = vld [vmem:[#allocation12 + $0x28] sm:$0xf]
    %v1211 = vld [vmem:[#allocation12 + $0x2c] sm:$0xf]
    %v1212 = vld [vmem:[#allocation12 + $0x30] sm:$0xf]
    %v1213 = vld [vmem:[#allocation12 + $0x34] sm:$0xf]
    %v1214 = vld [vmem:[#allocation12 + $0x38] sm:$0xf]
    %v1215 = vld [vmem:[#allocation12 + $0x3c] sm:$0xf]
    %v1216 = vld [vmem:[%s17] sm:$0x1]
    %v1218 = vperm.slane %v1216, 0
    %v1236 = vunpack.c.l.b16 %v1200
    %v1237 = vunpack.c.l.b16 %v1201
    %v1238 = vunpack.c.l.b16 %v1202
    %v1239 = vunpack.c.l.b16 %v1203
    %v1240 = vunpack.c.l.b16 %v1204
    %v1241 = vunpack.c.l.b16 %v1205
    %v1242 = vunpack.c.l.b16 %v1206
    %v1243 = vunpack.c.l.b16 %v1207
    %v1244 = vunpack.c.l.b16 %v1208
    %v1245 = vunpack.c.l.b16 %v1209
    %v1246 = vunpack.c.l.b16 %v1210
    %v1247 = vunpack.c.l.b16 %v1211
    %v1248 = vunpack.c.l.b16 %v1212
    %v1249 = vunpack.c.l.b16 %v1213
    %v1250 = vunpack.c.l.b16 %v1214
    %v1251 = vunpack.c.l.b16 %v1215
    %v1252 = vpack.c.b16 %v1237, %v1236
    %v1253 = vpack.c.b16 %v1239, %v1238
    %v1254 = vpack.c.b16 %v1241, %v1240
    %v1255 = vpack.c.b16 %v1243, %v1242
    %v1256 = vpack.c.b16 %v1245, %v1244
    %v1257 = vpack.c.b16 %v1247, %v1246
    %v1258 = vpack.c.b16 %v1249, %v1248
    %v1259 = vpack.c.b16 %v1251, %v1250
    %1268 = vmatpush.bf16.msra.mxu0 %v1259
    %1269 = vmatpush.bf16.msra.mxu0 %v1258
    %1270 = vmatpush.bf16.msra.mxu0 %v1257
    %1271 = vmatpush.bf16.msra.mxu0 %v1256
    %1272 = vmatpush.bf16.msra.mxu0 %v1255
    %1273 = vmatpush.bf16.msra.mxu0 %v1254
    %1274 = vmatpush.bf16.msra.mxu0 %v1253
    %1275 = vmatpush.bf16.msra.mxu0 %v1252
    %1276 = vmatmul.bf16.gmra.mxu0 %v1199
    %v1277 = vpop.f32.mrf.mxu0
    %v1278 = vadd.f32 %v1218, %v1277
    %v1279 = vpop.f32.mrf.mxu0
    %1280 = vdwg.mxu0
    %v1281 = vmul.f32 %v1195, %v1195
    %1282 = vadd.xlane.f32.xlu0 %v1281
    %v1283 = vpop.xlane.xlu0 %1282
    %v1284 = vmax.f32 %v1283, 1e-24
    %v1285 = vrsqrt.pop %v1284
    %v1286 = vmul.f32 %v1285, %v1284
    %v1287 = vmul.f32 %v1286, %v1285
    %v1288 = vmul.f32 0.5, %v1287
    %v1289 = vsub.f32 1.5, %v1288
    %v1290 = vmul.f32 %v1285, %v1289
    %vm1291 = vweird.f32 %v1284
    %vm1292 = vweird.f32 %v1285
    %vm1293 = vmor %vm1291, %vm1292
    %v1294 = vsel %vm1293, %v1285, %v1290
    %v1295 = vmul.f32 %v1195, %v1294
    %1296 = vst [vmem:[#allocation14] sm:$0xff] %v1295
    %1297 = vst [vmem:[#allocation15] sm:$0xff] %v1278
    // Predicated region
    $region98: #{tpu_custom_call.1} parent=1 // pred_check
      _
    $region99: #{tpu_custom_call.1} parent=1 // pred_check_branch
      %1299 = sbr.rel (0) target = $region101
    $region100: #{tpu_custom_call.1} parent=1 // pred_region
      %1301 = vsyncadd [#allocation5], 0
      %s1303 = sshll.u32 [#allocation14], 4
      %s1304 = int_to_ptr.vmem [resolvable:$true] %s1303
      %s1305 = sshll.u32 %s18, 4
      %s1306 = int_to_ptr.hbm [resolvable:$true] %s1305
      %1308 = dma.vmem_to_hbm [thread:$0]  %s1304, 128, %s1306, [#allocation5]
    $region101: #{tpu_custom_call.1} parent=1 // pred_fallthru
      _
    // Predicated region
    $region102: #{tpu_custom_call.1} parent=1 // pred_check
      _
    $region103: #{tpu_custom_call.1} parent=1 // pred_check_branch
      %1310 = sbr.rel (0) target = $region105
    $region104: #{tpu_custom_call.1} parent=1 // pred_region
      %1312 = vsyncadd [#allocation16], 0
      %s1314 = sshll.u32 [#allocation15], 4
      %s1315 = int_to_ptr.vmem [resolvable:$true] %s1314
      %s1316 = sshll.u32 %s19, 4
      %s1317 = int_to_ptr.hbm [resolvable:$true] %s1316
      %1319 = dma.vmem_to_hbm [thread:$0]  %s1315, 128, %s1317, [#allocation16]
    $region105: #{tpu_custom_call.1} parent=1 // pred_fallthru
      _
    // Predicated region
    $region106: #{tpu_custom_call.1} parent=1 // pred_check
      _
    $region107: #{tpu_custom_call.1} parent=1 // pred_check_branch
      %1321 = sbr.rel (0) target = $region109
    $region108: #{tpu_custom_call.1} parent=1 // pred_region
      %1323 = dma.done [#allocation5], 128
    $region109: #{tpu_custom_call.1} parent=1 // pred_fallthru
      _
    // Predicated region
    $region110: #{tpu_custom_call.1} parent=1 // pred_check
      _
    $region111: #{tpu_custom_call.1} parent=1 // pred_check_branch
      %1325 = sbr.rel (0) target = $region113
    $region112: #{tpu_custom_call.1} parent=1 // pred_region
      %1327 = dma.done [#allocation16], 128
    $region113: #{tpu_custom_call.1} parent=1 // pred_fallthru
      _
    %1328 = vsyncpa [#allocation4], 1
    %1329 = vsyncpa [#allocation7], 1
    %1330 = vsyncpa [#allocation10], 1
    %1331 = vsyncpa [#allocation13], 1
    %1332 = vsyncpa [#allocation5], 1
    %1333 = vsyncpa [#allocation16], 1

</llo_original>
